<compile_context>
chip_gen: v7x
topology: tpu7x:2x2x1
jax: 0.10.0
libtpu: 0.0.40
codegen_flags: <defaults>
</compile_context>

<pallas_src>
import math

import jax
import jax.numpy as jnp
from jax import lax
from jax.experimental import pallas as pl
from jax.experimental.pallas import tpu as pltpu

# ----------------------- small, module-consistent config -----------------------
INPUT_DIM = 4        # input_dim
D_MODEL   = 32       # d_model
N_HEADS   = 4        # n_heads
N_LAYERS  = 2        # n_layers
D_FF      = 64       # d_ff
HEAD_DIM  = D_MODEL // N_HEADS
BATCH     = 2
SEQ       = 8
N_TOK     = BATCH * SEQ          # batch folded into sublanes: 16 rows
OUT_PAD   = 128                  # lane-dense output width (wrapper slices to INPUT_DIM)

LN_EPS  = 1e-5
NEG_INF = -1e30      # additive causal-mask value (softmax-equivalent to -inf)


# ----------------------------- in-kernel helpers -------------------------------
def _gelu_exact(x):
    # torch.nn.GELU() default = exact erf formulation
    return 0.5 * x * (1.0 + lax.erf(x * (1.0 / math.sqrt(2.0))))


def _layer_norm(x):
    # gamma=1, beta=0 per MusicTransformer._init_weights
    mean = jnp.mean(x, axis=-1, keepdims=True)
    var = jnp.mean(jnp.square(x - mean), axis=-1, keepdims=True)
    return (x - mean) * lax.rsqrt(var + LN_EPS)


# ------------------------------ fused forward kernel ---------------------------
def fused_forward_kernel(x_ref, pe_ref, mask_ref,
                         win_ref, bin_ref,
                         wqkv_ref, bqkv_ref, wo_ref, bo_ref,
                         w1_ref, b1_ref, w2_ref, b2_ref,
                         wout1_ref, bout1_ref, wout2_ref, bout2_ref,
                         o_ref):
    # x: (N_TOK, INPUT_DIM)   pe: (N_TOK, D)   mask: (N_HEADS*N_TOK, N_TOK) additive
    # stacked per-layer weights: wqkv (L, D, 3D), wo (L, D, D), w1 (L, D, D_FF), w2 (L, D_FF, D)

    # --- input projection * sqrt(d_model) + positional encoding (dropout = identity) ---
    h = jnp.dot(x_ref[...], win_ref[...], preferred_element_type=jnp.float32) + bin_ref[...]
    h = h * jnp.float32(math.sqrt(D_MODEL)) + pe_ref[...]

    mask = mask_ref[...]                              # block-diag causal bias, tiled per head
    scale = jnp.float32(1.0 / math.sqrt(HEAD_DIM))

    for l in range(N_LAYERS):
        # --- self attention (PyTorch nn.MultiheadAttention semantics) ---
        qkv = jnp.dot(h, wqkv_ref[l], preferred_element_type=jnp.float32) + bqkv_ref[l]
        q = qkv[:, 0 * D_MODEL:1 * D_MODEL] * scale
        k = qkv[:, 1 * D_MODEL:2 * D_MODEL]
        v = qkv[:, 2 * D_MODEL:3 * D_MODEL]

        # per-head scores stacked along the sublane axis -> a single softmax pass
        s_heads = []
        for hh in range(N_HEADS):
            lo, hi = hh * HEAD_DIM, (hh + 1) * HEAD_DIM
            s_heads.append(
                lax.dot_general(q[:, lo:hi], k[:, lo:hi],
                                (((1,), (1,)), ((), ())),
                                preferred_element_type=jnp.float32))    # (N_TOK, N_TOK)
        s = jnp.concatenate(s_heads, axis=0) + mask                     # (H*N_TOK, N_TOK)
        s = s - jnp.max(s, axis=-1, keepdims=True)
        p = jnp.exp(s)
        p = p * pl.reciprocal(jnp.sum(p, axis=-1, keepdims=True), approx=True)

        # per-head PV products; heads reassembled along the lane axis
        head_outs = []
        for hh in range(N_HEADS):
            lo, hi = hh * HEAD_DIM, (hh + 1) * HEAD_DIM
            p_h = p[hh * N_TOK:(hh + 1) * N_TOK, :]                     # sublane slice
            head_outs.append(jnp.dot(p_h, v[:, lo:hi],
                                     preferred_element_type=jnp.float32))
        attn = jnp.concatenate(head_outs, axis=-1)                      # (N_TOK, D)
        attn = jnp.dot(attn, wo_ref[l], preferred_element_type=jnp.float32) + bo_ref[l]

        # --- residual + norm1 ---
        h = _layer_norm(h + attn)

        # --- feed forward: Linear -> GELU -> Linear (dropouts = identity) ---
        ff = jnp.dot(h, w1_ref[l], preferred_element_type=jnp.float32) + b1_ref[l]
        ff = _gelu_exact(ff)
        ff = jnp.dot(ff, w2_ref[l], preferred_element_type=jnp.float32) + b2_ref[l]

        # --- residual + norm2 ---
        h = _layer_norm(h + ff)

    # --- output projection: LayerNorm -> Linear -> GELU -> Linear (lane-padded to 128) ---
    y = _layer_norm(h)
    y = jnp.dot(y, wout1_ref[...], preferred_element_type=jnp.float32) + bout1_ref[...]
    y = _gelu_exact(y)
    o_ref[...] = jnp.dot(y, wout2_ref[...], preferred_element_type=jnp.float32) + bout2_ref[...]


# ------------------------------ pallas_call wrapper -----------------------------
_N_INPUTS = 17
_VMEM_SPEC = pl.BlockSpec(memory_space=pltpu.MemorySpace.VMEM)


def music_transformer_forward(x, params, pe, mask_bias):
    """x: (B, S, INPUT_DIM) -> (B, S, INPUT_DIM). Entire forward in one pallas_call."""
    B, S, _ = x.shape
    n = B * S
    x2d = x.reshape(n, INPUT_DIM)
    pe2d = jnp.tile(pe, (B, 1))                       # (B*S, D)

    out_padded = pl.pallas_call(
        fused_forward_kernel,
        out_shape=jax.ShapeDtypeStruct((n, OUT_PAD), jnp.float32),
        in_specs=[_VMEM_SPEC] * _N_INPUTS,
        out_specs=_VMEM_SPEC,
    )(x2d, pe2d, mask_bias,
      params["in_w"], params["in_b"],
      params["wqkv"], params["bqkv"], params["wo"], params["bo"],
      params["w1"], params["b1"], params["w2"], params["b2"],
      params["out_w1"], params["out_b1"], params["out_w2_pad"], params["out_b2_pad"])

    return out_padded[:, :INPUT_DIM].reshape(B, S, INPUT_DIM)


# ------------------------------- parameter setup --------------------------------
def make_params(key):
    """Deterministic synthetic parameters (normal * 0.02 weights, zero biases),
    stored pre-transposed so kernels compute x @ W (PyTorch Linear does x @ W^T).
    Per-layer weights are stacked along a leading layer axis so the fused kernel
    indexes them with a static layer id."""
    def nrm(k, shape):
        return 0.02 * jax.random.normal(k, shape, dtype=jnp.float32)

    keys = jax.random.split(key, 3 + 4 * N_LAYERS)
    ki = iter(keys)

    p = {
        "in_w": nrm(next(ki), (INPUT_DIM, D_MODEL)),
        "in_b": jnp.zeros((1, D_MODEL), jnp.float32),
        "out_w1": nrm(next(ki), (D_MODEL, D_FF // 2)),
        "out_b1": jnp.zeros((1, D_FF // 2), jnp.float32),
    }
    # Final linear zero-padded to a lane-dense 128-wide output slab.
    out_w2 = nrm(next(ki), (D_FF // 2, INPUT_DIM))
    p["out_w2_pad"] = jnp.zeros((D_FF // 2, OUT_PAD), jnp.float32).at[:, :INPUT_DIM].set(out_w2)
    p["out_b2_pad"] = jnp.zeros((1, OUT_PAD), jnp.float32)

    wqkv, bqkv, wo, bo, w1, b1, w2, b2 = ([] for _ in range(8))
    for _ in range(N_LAYERS):
        wqkv.append(nrm(next(ki), (D_MODEL, 3 * D_MODEL)))   # in_proj_weight^T
        bqkv.append(jnp.zeros((1, 3 * D_MODEL), jnp.float32))
        wo.append(nrm(next(ki), (D_MODEL, D_MODEL)))          # out_proj.weight^T
        bo.append(jnp.zeros((1, D_MODEL), jnp.float32))
        w1.append(nrm(next(ki), (D_MODEL, D_FF)))
        b1.append(jnp.zeros((1, D_FF), jnp.float32))
        w2.append(nrm(next(ki), (D_FF, D_MODEL)))
        b2.append(jnp.zeros((1, D_MODEL), jnp.float32))
    p["wqkv"] = jnp.stack(wqkv); p["bqkv"] = jnp.stack(bqkv)
    p["wo"] = jnp.stack(wo);     p["bo"] = jnp.stack(bo)
    p["w1"] = jnp.stack(w1);     p["b1"] = jnp.stack(b1)
    p["w2"] = jnp.stack(w2);     p["b2"] = jnp.stack(b2)
    return p


def make_positional_encoding(seq_len, d_model):
    pos = jnp.arange(seq_len, dtype=jnp.float32)[:, None]                     # (S, 1)
    div_term = jnp.exp(jnp.arange(0, d_model, 2, dtype=jnp.float32)
                       * (-math.log(10000.0) / d_model))                      # (D/2,)
    pe = jnp.zeros((seq_len, d_model), jnp.float32)
    pe = pe.at[:, 0::2].set(jnp.sin(pos * div_term))
    pe = pe.at[:, 1::2].set(jnp.cos(pos * div_term))
    return pe


def make_fused_mask_bias(batch, seq, n_heads):
    """Block-diagonal (no cross-batch attention) + causal additive mask for the
    batch-folded (B*S, B*S) token layout, tiled per head along the sublane axis."""
    idx = jnp.arange(batch * seq)
    same_batch = (idx[:, None] // seq) == (idx[None, :] // seq)
    causal = (idx[None, :] % seq) <= (idx[:, None] % seq)
    bias = jnp.where(same_batch & causal, 0.0, NEG_INF).astype(jnp.float32)   # (B*S, B*S)
    return jnp.tile(bias, (n_heads, 1))                                        # (H*B*S, B*S)


# ------------------------------------ main ----------------------------------------
if __name__ == "__main__":
    key = jax.random.PRNGKey(0)
    k_param, k_x = jax.random.split(key)

    params = make_params(k_param)
    pe = make_positional_encoding(SEQ, D_MODEL)
    mask_bias = make_fused_mask_bias(BATCH, SEQ, N_HEADS)

    x = jax.random.normal(k_x, (BATCH, SEQ, INPUT_DIM), dtype=jnp.float32)

    fwd = jax.jit(music_transformer_forward)
    out = fwd(x, params, pe, mask_bias)
    out = jax.block_until_ready(out)

    assert out.shape == (BATCH, SEQ, INPUT_DIM), out.shape
    assert out.dtype == jnp.float32
    assert bool(jnp.all(jnp.isfinite(out)))
    print("KERNEL_OK")
</pallas_src>

<mosaic_0001>
module attributes {stable_mosaic.version = 11 : i64} {
  func.func @fused_forward_kernel(%arg0: memref<16x4xf32, #tpu.memory_space<vmem>>, %arg1: memref<16x32xf32, #tpu.memory_space<vmem>>, %arg2: memref<64x16xf32, #tpu.memory_space<vmem>>, %arg3: memref<4x32xf32, #tpu.memory_space<vmem>>, %arg4: memref<1x32xf32, #tpu.memory_space<vmem>>, %arg5: memref<2x32x96xf32, #tpu.memory_space<vmem>>, %arg6: memref<2x1x96xf32, #tpu.memory_space<vmem>>, %arg7: memref<2x32x32xf32, #tpu.memory_space<vmem>>, %arg8: memref<2x1x32xf32, #tpu.memory_space<vmem>>, %arg9: memref<2x32x64xf32, #tpu.memory_space<vmem>>, %arg10: memref<2x1x64xf32, #tpu.memory_space<vmem>>, %arg11: memref<2x64x32xf32, #tpu.memory_space<vmem>>, %arg12: memref<2x1x32xf32, #tpu.memory_space<vmem>>, %arg13: memref<32x32xf32, #tpu.memory_space<vmem>>, %arg14: memref<1x32xf32, #tpu.memory_space<vmem>>, %arg15: memref<32x128xf32, #tpu.memory_space<vmem>>, %arg16: memref<1x128xf32, #tpu.memory_space<vmem>>, %arg17: memref<16x128xf32, #tpu.memory_space<vmem>>) attributes {dimension_semantics = [], scalar_prefetch = 0 : i64, scratch_operands = 0 : i64, tpu.core_type = #tpu.core_type<tc>} {
    %c0 = arith.constant 0 : index
    %c0_0 = arith.constant 0 : index
    %0 = vector.load %arg0[%c0, %c0_0] : memref<16x4xf32, #tpu.memory_space<vmem>>, vector<16x4xf32>
    %c0_1 = arith.constant 0 : index
    %c0_2 = arith.constant 0 : index
    %1 = vector.load %arg3[%c0_1, %c0_2] : memref<4x32xf32, #tpu.memory_space<vmem>>, vector<4x32xf32>
    %cst = arith.constant dense<0.000000e+00> : vector<16x32xf32>
    %2 = tpu.matmul %0, %1, %cst {dimension_numbers = #tpu.dot_dimension_numbers<[1], [0], [0], [1], [0, 0, 1, 1], [], []>} : vector<16x4xf32>, vector<4x32xf32>, vector<16x32xf32> -> vector<16x32xf32>
    %c0_3 = arith.constant 0 : index
    %c0_4 = arith.constant 0 : index
    %3 = vector.load %arg4[%c0_3, %c0_4] : memref<1x32xf32, #tpu.memory_space<vmem>>, vector<1x32xf32>
    %4 = vector.broadcast %3 : vector<1x32xf32> to vector<16x32xf32>
    %5 = arith.addf %2, %4 : vector<16x32xf32>
    %cst_5 = arith.constant 5.65685415 : f32
    %6 = vector.broadcast %cst_5 : f32 to vector<16x32xf32>
    %7 = arith.mulf %5, %6 : vector<16x32xf32>
    %c0_6 = arith.constant 0 : index
    %c0_7 = arith.constant 0 : index
    %8 = vector.load %arg1[%c0_6, %c0_7] : memref<16x32xf32, #tpu.memory_space<vmem>>, vector<16x32xf32>
    %9 = arith.addf %7, %8 : vector<16x32xf32>
    %c0_8 = arith.constant 0 : index
    %c0_9 = arith.constant 0 : index
    %10 = vector.load %arg2[%c0_8, %c0_9] : memref<64x16xf32, #tpu.memory_space<vmem>>, vector<64x16xf32>
    %c0_10 = arith.constant 0 : index
    %c0_11 = arith.constant 0 : index
    %c0_12 = arith.constant 0 : index
    %11 = vector.load %arg5[%c0_10, %c0_11, %c0_12] : memref<2x32x96xf32, #tpu.memory_space<vmem>>, vector<1x32x96xf32>
    %12 = vector.shape_cast %11 : vector<1x32x96xf32> to vector<32x96xf32>
    %cst_13 = arith.constant dense<0.000000e+00> : vector<16x96xf32>
    %13 = tpu.matmul %9, %12, %cst_13 {dimension_numbers = #tpu.dot_dimension_numbers<[1], [0], [0], [1], [0, 0, 1, 1], [], []>} : vector<16x32xf32>, vector<32x96xf32>, vector<16x96xf32> -> vector<16x96xf32>
    %c0_14 = arith.constant 0 : index
    %c0_15 = arith.constant 0 : index
    %c0_16 = arith.constant 0 : index
    %14 = vector.load %arg6[%c0_14, %c0_15, %c0_16] : memref<2x1x96xf32, #tpu.memory_space<vmem>>, vector<1x1x96xf32>
    %15 = vector.shape_cast %14 : vector<1x1x96xf32> to vector<1x96xf32>
    %16 = vector.broadcast %15 : vector<1x96xf32> to vector<16x96xf32>
    %17 = arith.addf %13, %16 : vector<16x96xf32>
    %18 = vector.extract_strided_slice %17 {offsets = [0, 0], sizes = [16, 32], strides = [1, 1]} : vector<16x96xf32> to vector<16x32xf32>
    %cst_17 = arith.constant 0.353553385 : f32
    %19 = vector.broadcast %cst_17 : f32 to vector<16x32xf32>
    %20 = arith.mulf %18, %19 : vector<16x32xf32>
    %21 = vector.extract_strided_slice %17 {offsets = [0, 32], sizes = [16, 32], strides = [1, 1]} : vector<16x96xf32> to vector<16x32xf32>
    %22 = vector.extract_strided_slice %17 {offsets = [0, 64], sizes = [16, 32], strides = [1, 1]} : vector<16x96xf32> to vector<16x32xf32>
    %23 = vector.extract_strided_slice %20 {offsets = [0, 0], sizes = [16, 8], strides = [1, 1]} : vector<16x32xf32> to vector<16x8xf32>
    %24 = vector.extract_strided_slice %21 {offsets = [0, 0], sizes = [16, 8], strides = [1, 1]} : vector<16x32xf32> to vector<16x8xf32>
    %cst_18 = arith.constant dense<0.000000e+00> : vector<16x16xf32>
    %25 = tpu.matmul %23, %24, %cst_18 {dimension_numbers = #tpu.dot_dimension_numbers<[1], [1], [0], [0], [0, 0, 1, 0], [], []>} : vector<16x8xf32>, vector<16x8xf32>, vector<16x16xf32> -> vector<16x16xf32>
    %26 = vector.extract_strided_slice %20 {offsets = [0, 8], sizes = [16, 8], strides = [1, 1]} : vector<16x32xf32> to vector<16x8xf32>
    %27 = vector.extract_strided_slice %21 {offsets = [0, 8], sizes = [16, 8], strides = [1, 1]} : vector<16x32xf32> to vector<16x8xf32>
    %cst_19 = arith.constant dense<0.000000e+00> : vector<16x16xf32>
    %28 = tpu.matmul %26, %27, %cst_19 {dimension_numbers = #tpu.dot_dimension_numbers<[1], [1], [0], [0], [0, 0, 1, 0], [], []>} : vector<16x8xf32>, vector<16x8xf32>, vector<16x16xf32> -> vector<16x16xf32>
    %29 = vector.extract_strided_slice %20 {offsets = [0, 16], sizes = [16, 8], strides = [1, 1]} : vector<16x32xf32> to vector<16x8xf32>
    %30 = vector.extract_strided_slice %21 {offsets = [0, 16], sizes = [16, 8], strides = [1, 1]} : vector<16x32xf32> to vector<16x8xf32>
    %cst_20 = arith.constant dense<0.000000e+00> : vector<16x16xf32>
    %31 = tpu.matmul %29, %30, %cst_20 {dimension_numbers = #tpu.dot_dimension_numbers<[1], [1], [0], [0], [0, 0, 1, 0], [], []>} : vector<16x8xf32>, vector<16x8xf32>, vector<16x16xf32> -> vector<16x16xf32>
    %32 = vector.extract_strided_slice %20 {offsets = [0, 24], sizes = [16, 8], strides = [1, 1]} : vector<16x32xf32> to vector<16x8xf32>
    %33 = vector.extract_strided_slice %21 {offsets = [0, 24], sizes = [16, 8], strides = [1, 1]} : vector<16x32xf32> to vector<16x8xf32>
    %cst_21 = arith.constant dense<0.000000e+00> : vector<16x16xf32>
    %34 = tpu.matmul %32, %33, %cst_21 {dimension_numbers = #tpu.dot_dimension_numbers<[1], [1], [0], [0], [0, 0, 1, 0], [], []>} : vector<16x8xf32>, vector<16x8xf32>, vector<16x16xf32> -> vector<16x16xf32>
    %35 = tpu.concatenate %25, %28, %31, %34 in 0 : vector<16x16xf32>, vector<16x16xf32>, vector<16x16xf32>, vector<16x16xf32> -> vector<64x16xf32>
    %36 = arith.addf %35, %10 : vector<64x16xf32>
    %cst_22 = arith.constant dense<0xFF800000> : vector<64xf32>
    %37 = vector.multi_reduction <maximumf>, %36, %cst_22 [1] : vector<64x16xf32> to vector<64xf32>
    %38 = vector.shape_cast %37 : vector<64xf32> to vector<64x1xf32>
    %39 = vector.broadcast %38 : vector<64x1xf32> to vector<64x16xf32>
    %40 = arith.subf %36, %39 : vector<64x16xf32>
    %41 = math.exp %40 : vector<64x16xf32>
    %cst_23 = arith.constant dense<0.000000e+00> : vector<64xf32>
    %42 = vector.multi_reduction <add>, %41, %cst_23 [1] : vector<64x16xf32> to vector<64xf32>
    %43 = vector.shape_cast %42 : vector<64xf32> to vector<64x1xf32>
    %44 = tpu.reciprocal %43 {approx = true} : vector<64x1xf32> -> vector<64x1xf32>
    %45 = vector.broadcast %44 : vector<64x1xf32> to vector<64x16xf32>
    %46 = arith.mulf %41, %45 : vector<64x16xf32>
    %47 = vector.extract_strided_slice %46 {offsets = [0, 0], sizes = [16, 16], strides = [1, 1]} : vector<64x16xf32> to vector<16x16xf32>
    %48 = vector.extract_strided_slice %22 {offsets = [0, 0], sizes = [16, 8], strides = [1, 1]} : vector<16x32xf32> to vector<16x8xf32>
    %cst_24 = arith.constant dense<0.000000e+00> : vector<16x8xf32>
    %49 = tpu.matmul %47, %48, %cst_24 {dimension_numbers = #tpu.dot_dimension_numbers<[1], [0], [0], [1], [0, 0, 1, 1], [], []>} : vector<16x16xf32>, vector<16x8xf32>, vector<16x8xf32> -> vector<16x8xf32>
    %50 = vector.extract_strided_slice %46 {offsets = [16, 0], sizes = [16, 16], strides = [1, 1]} : vector<64x16xf32> to vector<16x16xf32>
    %51 = vector.extract_strided_slice %22 {offsets = [0, 8], sizes = [16, 8], strides = [1, 1]} : vector<16x32xf32> to vector<16x8xf32>
    %cst_25 = arith.constant dense<0.000000e+00> : vector<16x8xf32>
    %52 = tpu.matmul %50, %51, %cst_25 {dimension_numbers = #tpu.dot_dimension_numbers<[1], [0], [0], [1], [0, 0, 1, 1], [], []>} : vector<16x16xf32>, vector<16x8xf32>, vector<16x8xf32> -> vector<16x8xf32>
    %53 = vector.extract_strided_slice %46 {offsets = [32, 0], sizes = [16, 16], strides = [1, 1]} : vector<64x16xf32> to vector<16x16xf32>
    %54 = vector.extract_strided_slice %22 {offsets = [0, 16], sizes = [16, 8], strides = [1, 1]} : vector<16x32xf32> to vector<16x8xf32>
    %cst_26 = arith.constant dense<0.000000e+00> : vector<16x8xf32>
    %55 = tpu.matmul %53, %54, %cst_26 {dimension_numbers = #tpu.dot_dimension_numbers<[1], [0], [0], [1], [0, 0, 1, 1], [], []>} : vector<16x16xf32>, vector<16x8xf32>, vector<16x8xf32> -> vector<16x8xf32>
    %56 = vector.extract_strided_slice %46 {offsets = [48, 0], sizes = [16, 16], strides = [1, 1]} : vector<64x16xf32> to vector<16x16xf32>
    %57 = vector.extract_strided_slice %22 {offsets = [0, 24], sizes = [16, 8], strides = [1, 1]} : vector<16x32xf32> to vector<16x8xf32>
    %cst_27 = arith.constant dense<0.000000e+00> : vector<16x8xf32>
    %58 = tpu.matmul %56, %57, %cst_27 {dimension_numbers = #tpu.dot_dimension_numbers<[1], [0], [0], [1], [0, 0, 1, 1], [], []>} : vector<16x16xf32>, vector<16x8xf32>, vector<16x8xf32> -> vector<16x8xf32>
    %59 = tpu.concatenate %49, %52, %55, %58 in 1 : vector<16x8xf32>, vector<16x8xf32>, vector<16x8xf32>, vector<16x8xf32> -> vector<16x32xf32>
    %c0_28 = arith.constant 0 : index
    %c0_29 = arith.constant 0 : index
    %c0_30 = arith.constant 0 : index
    %60 = vector.load %arg7[%c0_28, %c0_29, %c0_30] : memref<2x32x32xf32, #tpu.memory_space<vmem>>, vector<1x32x32xf32>
    %61 = vector.shape_cast %60 : vector<1x32x32xf32> to vector<32x32xf32>
    %cst_31 = arith.constant dense<0.000000e+00> : vector<16x32xf32>
    %62 = tpu.matmul %59, %61, %cst_31 {dimension_numbers = #tpu.dot_dimension_numbers<[1], [0], [0], [1], [0, 0, 1, 1], [], []>} : vector<16x32xf32>, vector<32x32xf32>, vector<16x32xf32> -> vector<16x32xf32>
    %c0_32 = arith.constant 0 : index
    %c0_33 = arith.constant 0 : index
    %c0_34 = arith.constant 0 : index
    %63 = vector.load %arg8[%c0_32, %c0_33, %c0_34] : memref<2x1x32xf32, #tpu.memory_space<vmem>>, vector<1x1x32xf32>
    %64 = vector.shape_cast %63 : vector<1x1x32xf32> to vector<1x32xf32>
    %65 = vector.broadcast %64 : vector<1x32xf32> to vector<16x32xf32>
    %66 = arith.addf %62, %65 : vector<16x32xf32>
    %67 = arith.addf %9, %66 : vector<16x32xf32>
    %cst_35 = arith.constant dense<0.000000e+00> : vector<16xf32>
    %68 = vector.multi_reduction <add>, %67, %cst_35 [1] : vector<16x32xf32> to vector<16xf32>
    %69 = vector.shape_cast %68 : vector<16xf32> to vector<16x1xf32>
    %cst_36 = arith.constant 3.200000e+01 : f32
    %70 = vector.broadcast %cst_36 : f32 to vector<16x1xf32>
    %71 = arith.divf %69, %70 : vector<16x1xf32>
    %72 = vector.broadcast %71 : vector<16x1xf32> to vector<16x32xf32>
    %73 = arith.subf %67, %72 : vector<16x32xf32>
    %74 = arith.mulf %73, %73 : vector<16x32xf32>
    %cst_37 = arith.constant dense<0.000000e+00> : vector<16xf32>
    %75 = vector.multi_reduction <add>, %74, %cst_37 [1] : vector<16x32xf32> to vector<16xf32>
    %76 = vector.shape_cast %75 : vector<16xf32> to vector<16x1xf32>
    %cst_38 = arith.constant 3.200000e+01 : f32
    %77 = vector.broadcast %cst_38 : f32 to vector<16x1xf32>
    %78 = arith.divf %76, %77 : vector<16x1xf32>
    %79 = vector.broadcast %71 : vector<16x1xf32> to vector<16x32xf32>
    %80 = arith.subf %67, %79 : vector<16x32xf32>
    %cst_39 = arith.constant 9.99999974E-6 : f32
    %81 = vector.broadcast %cst_39 : f32 to vector<16x1xf32>
    %82 = arith.addf %78, %81 : vector<16x1xf32>
    %83 = math.rsqrt %82 : vector<16x1xf32>
    %84 = vector.broadcast %83 : vector<16x1xf32> to vector<16x32xf32>
    %85 = arith.mulf %80, %84 : vector<16x32xf32>
    %c0_40 = arith.constant 0 : index
    %c0_41 = arith.constant 0 : index
    %c0_42 = arith.constant 0 : index
    %86 = vector.load %arg9[%c0_40, %c0_41, %c0_42] : memref<2x32x64xf32, #tpu.memory_space<vmem>>, vector<1x32x64xf32>
    %87 = vector.shape_cast %86 : vector<1x32x64xf32> to vector<32x64xf32>
    %cst_43 = arith.constant dense<0.000000e+00> : vector<16x64xf32>
    %88 = tpu.matmul %85, %87, %cst_43 {dimension_numbers = #tpu.dot_dimension_numbers<[1], [0], [0], [1], [0, 0, 1, 1], [], []>} : vector<16x32xf32>, vector<32x64xf32>, vector<16x64xf32> -> vector<16x64xf32>
    %c0_44 = arith.constant 0 : index
    %c0_45 = arith.constant 0 : index
    %c0_46 = arith.constant 0 : index
    %89 = vector.load %arg10[%c0_44, %c0_45, %c0_46] : memref<2x1x64xf32, #tpu.memory_space<vmem>>, vector<1x1x64xf32>
    %90 = vector.shape_cast %89 : vector<1x1x64xf32> to vector<1x64xf32>
    %91 = vector.broadcast %90 : vector<1x64xf32> to vector<16x64xf32>
    %92 = arith.addf %88, %91 : vector<16x64xf32>
    %cst_47 = arith.constant 5.000000e-01 : f32
    %93 = vector.broadcast %cst_47 : f32 to vector<16x64xf32>
    %94 = arith.mulf %93, %92 : vector<16x64xf32>
    %cst_48 = arith.constant 0.707106769 : f32
    %95 = vector.broadcast %cst_48 : f32 to vector<16x64xf32>
    %96 = arith.mulf %92, %95 : vector<16x64xf32>
    %97 = math.erf %96 : vector<16x64xf32>
    %cst_49 = arith.constant 1.000000e+00 : f32
    %98 = vector.broadcast %cst_49 : f32 to vector<16x64xf32>
    %99 = arith.addf %98, %97 : vector<16x64xf32>
    %100 = arith.mulf %94, %99 : vector<16x64xf32>
    %c0_50 = arith.constant 0 : index
    %c0_51 = arith.constant 0 : index
    %c0_52 = arith.constant 0 : index
    %101 = vector.load %arg11[%c0_50, %c0_51, %c0_52] : memref<2x64x32xf32, #tpu.memory_space<vmem>>, vector<1x64x32xf32>
    %102 = vector.shape_cast %101 : vector<1x64x32xf32> to vector<64x32xf32>
    %cst_53 = arith.constant dense<0.000000e+00> : vector<16x32xf32>
    %103 = tpu.matmul %100, %102, %cst_53 {dimension_numbers = #tpu.dot_dimension_numbers<[1], [0], [0], [1], [0, 0, 1, 1], [], []>} : vector<16x64xf32>, vector<64x32xf32>, vector<16x32xf32> -> vector<16x32xf32>
    %c0_54 = arith.constant 0 : index
    %c0_55 = arith.constant 0 : index
    %c0_56 = arith.constant 0 : index
    %104 = vector.load %arg12[%c0_54, %c0_55, %c0_56] : memref<2x1x32xf32, #tpu.memory_space<vmem>>, vector<1x1x32xf32>
    %105 = vector.shape_cast %104 : vector<1x1x32xf32> to vector<1x32xf32>
    %106 = vector.broadcast %105 : vector<1x32xf32> to vector<16x32xf32>
    %107 = arith.addf %103, %106 : vector<16x32xf32>
    %108 = arith.addf %85, %107 : vector<16x32xf32>
    %cst_57 = arith.constant dense<0.000000e+00> : vector<16xf32>
    %109 = vector.multi_reduction <add>, %108, %cst_57 [1] : vector<16x32xf32> to vector<16xf32>
    %110 = vector.shape_cast %109 : vector<16xf32> to vector<16x1xf32>
    %cst_58 = arith.constant 3.200000e+01 : f32
    %111 = vector.broadcast %cst_58 : f32 to vector<16x1xf32>
    %112 = arith.divf %110, %111 : vector<16x1xf32>
    %113 = vector.broadcast %112 : vector<16x1xf32> to vector<16x32xf32>
    %114 = arith.subf %108, %113 : vector<16x32xf32>
    %115 = arith.mulf %114, %114 : vector<16x32xf32>
    %cst_59 = arith.constant dense<0.000000e+00> : vector<16xf32>
    %116 = vector.multi_reduction <add>, %115, %cst_59 [1] : vector<16x32xf32> to vector<16xf32>
    %117 = vector.shape_cast %116 : vector<16xf32> to vector<16x1xf32>
    %cst_60 = arith.constant 3.200000e+01 : f32
    %118 = vector.broadcast %cst_60 : f32 to vector<16x1xf32>
    %119 = arith.divf %117, %118 : vector<16x1xf32>
    %120 = vector.broadcast %112 : vector<16x1xf32> to vector<16x32xf32>
    %121 = arith.subf %108, %120 : vector<16x32xf32>
    %cst_61 = arith.constant 9.99999974E-6 : f32
    %122 = vector.broadcast %cst_61 : f32 to vector<16x1xf32>
    %123 = arith.addf %119, %122 : vector<16x1xf32>
    %124 = math.rsqrt %123 : vector<16x1xf32>
    %125 = vector.broadcast %124 : vector<16x1xf32> to vector<16x32xf32>
    %126 = arith.mulf %121, %125 : vector<16x32xf32>
    %c1 = arith.constant 1 : index
    %c0_62 = arith.constant 0 : index
    %c0_63 = arith.constant 0 : index
    %127 = vector.load %arg5[%c1, %c0_62, %c0_63] : memref<2x32x96xf32, #tpu.memory_space<vmem>>, vector<1x32x96xf32>
    %128 = vector.shape_cast %127 : vector<1x32x96xf32> to vector<32x96xf32>
    %cst_64 = arith.constant dense<0.000000e+00> : vector<16x96xf32>
    %129 = tpu.matmul %126, %128, %cst_64 {dimension_numbers = #tpu.dot_dimension_numbers<[1], [0], [0], [1], [0, 0, 1, 1], [], []>} : vector<16x32xf32>, vector<32x96xf32>, vector<16x96xf32> -> vector<16x96xf32>
    %c1_65 = arith.constant 1 : index
    %c0_66 = arith.constant 0 : index
    %c0_67 = arith.constant 0 : index
    %130 = vector.load %arg6[%c1_65, %c0_66, %c0_67] : memref<2x1x96xf32, #tpu.memory_space<vmem>>, vector<1x1x96xf32>
    %131 = vector.shape_cast %130 : vector<1x1x96xf32> to vector<1x96xf32>
    %132 = vector.broadcast %131 : vector<1x96xf32> to vector<16x96xf32>
    %133 = arith.addf %129, %132 : vector<16x96xf32>
    %134 = vector.extract_strided_slice %133 {offsets = [0, 0], sizes = [16, 32], strides = [1, 1]} : vector<16x96xf32> to vector<16x32xf32>
    %cst_68 = arith.constant 0.353553385 : f32
    %135 = vector.broadcast %cst_68 : f32 to vector<16x32xf32>
    %136 = arith.mulf %134, %135 : vector<16x32xf32>
    %137 = vector.extract_strided_slice %133 {offsets = [0, 32], sizes = [16, 32], strides = [1, 1]} : vector<16x96xf32> to vector<16x32xf32>
    %138 = vector.extract_strided_slice %133 {offsets = [0, 64], sizes = [16, 32], strides = [1, 1]} : vector<16x96xf32> to vector<16x32xf32>
    %139 = vector.extract_strided_slice %136 {offsets = [0, 0], sizes = [16, 8], strides = [1, 1]} : vector<16x32xf32> to vector<16x8xf32>
    %140 = vector.extract_strided_slice %137 {offsets = [0, 0], sizes = [16, 8], strides = [1, 1]} : vector<16x32xf32> to vector<16x8xf32>
    %cst_69 = arith.constant dense<0.000000e+00> : vector<16x16xf32>
    %141 = tpu.matmul %139, %140, %cst_69 {dimension_numbers = #tpu.dot_dimension_numbers<[1], [1], [0], [0], [0, 0, 1, 0], [], []>} : vector<16x8xf32>, vector<16x8xf32>, vector<16x16xf32> -> vector<16x16xf32>
    %142 = vector.extract_strided_slice %136 {offsets = [0, 8], sizes = [16, 8], strides = [1, 1]} : vector<16x32xf32> to vector<16x8xf32>
    %143 = vector.extract_strided_slice %137 {offsets = [0, 8], sizes = [16, 8], strides = [1, 1]} : vector<16x32xf32> to vector<16x8xf32>
    %cst_70 = arith.constant dense<0.000000e+00> : vector<16x16xf32>
    %144 = tpu.matmul %142, %143, %cst_70 {dimension_numbers = #tpu.dot_dimension_numbers<[1], [1], [0], [0], [0, 0, 1, 0], [], []>} : vector<16x8xf32>, vector<16x8xf32>, vector<16x16xf32> -> vector<16x16xf32>
    %145 = vector.extract_strided_slice %136 {offsets = [0, 16], sizes = [16, 8], strides = [1, 1]} : vector<16x32xf32> to vector<16x8xf32>
    %146 = vector.extract_strided_slice %137 {offsets = [0, 16], sizes = [16, 8], strides = [1, 1]} : vector<16x32xf32> to vector<16x8xf32>
    %cst_71 = arith.constant dense<0.000000e+00> : vector<16x16xf32>
    %147 = tpu.matmul %145, %146, %cst_71 {dimension_numbers = #tpu.dot_dimension_numbers<[1], [1], [0], [0], [0, 0, 1, 0], [], []>} : vector<16x8xf32>, vector<16x8xf32>, vector<16x16xf32> -> vector<16x16xf32>
    %148 = vector.extract_strided_slice %136 {offsets = [0, 24], sizes = [16, 8], strides = [1, 1]} : vector<16x32xf32> to vector<16x8xf32>
    %149 = vector.extract_strided_slice %137 {offsets = [0, 24], sizes = [16, 8], strides = [1, 1]} : vector<16x32xf32> to vector<16x8xf32>
    %cst_72 = arith.constant dense<0.000000e+00> : vector<16x16xf32>
    %150 = tpu.matmul %148, %149, %cst_72 {dimension_numbers = #tpu.dot_dimension_numbers<[1], [1], [0], [0], [0, 0, 1, 0], [], []>} : vector<16x8xf32>, vector<16x8xf32>, vector<16x16xf32> -> vector<16x16xf32>
    %151 = tpu.concatenate %141, %144, %147, %150 in 0 : vector<16x16xf32>, vector<16x16xf32>, vector<16x16xf32>, vector<16x16xf32> -> vector<64x16xf32>
    %152 = arith.addf %151, %10 : vector<64x16xf32>
    %cst_73 = arith.constant dense<0xFF800000> : vector<64xf32>
    %153 = vector.multi_reduction <maximumf>, %152, %cst_73 [1] : vector<64x16xf32> to vector<64xf32>
    %154 = vector.shape_cast %153 : vector<64xf32> to vector<64x1xf32>
    %155 = vector.broadcast %154 : vector<64x1xf32> to vector<64x16xf32>
    %156 = arith.subf %152, %155 : vector<64x16xf32>
    %157 = math.exp %156 : vector<64x16xf32>
    %cst_74 = arith.constant dense<0.000000e+00> : vector<64xf32>
    %158 = vector.multi_reduction <add>, %157, %cst_74 [1] : vector<64x16xf32> to vector<64xf32>
    %159 = vector.shape_cast %158 : vector<64xf32> to vector<64x1xf32>
    %160 = tpu.reciprocal %159 {approx = true} : vector<64x1xf32> -> vector<64x1xf32>
    %161 = vector.broadcast %160 : vector<64x1xf32> to vector<64x16xf32>
    %162 = arith.mulf %157, %161 : vector<64x16xf32>
    %163 = vector.extract_strided_slice %162 {offsets = [0, 0], sizes = [16, 16], strides = [1, 1]} : vector<64x16xf32> to vector<16x16xf32>
    %164 = vector.extract_strided_slice %138 {offsets = [0, 0], sizes = [16, 8], strides = [1, 1]} : vector<16x32xf32> to vector<16x8xf32>
    %cst_75 = arith.constant dense<0.000000e+00> : vector<16x8xf32>
    %165 = tpu.matmul %163, %164, %cst_75 {dimension_numbers = #tpu.dot_dimension_numbers<[1], [0], [0], [1], [0, 0, 1, 1], [], []>} : vector<16x16xf32>, vector<16x8xf32>, vector<16x8xf32> -> vector<16x8xf32>
    %166 = vector.extract_strided_slice %162 {offsets = [16, 0], sizes = [16, 16], strides = [1, 1]} : vector<64x16xf32> to vector<16x16xf32>
    %167 = vector.extract_strided_slice %138 {offsets = [0, 8], sizes = [16, 8], strides = [1, 1]} : vector<16x32xf32> to vector<16x8xf32>
    %cst_76 = arith.constant dense<0.000000e+00> : vector<16x8xf32>
    %168 = tpu.matmul %166, %167, %cst_76 {dimension_numbers = #tpu.dot_dimension_numbers<[1], [0], [0], [1], [0, 0, 1, 1], [], []>} : vector<16x16xf32>, vector<16x8xf32>, vector<16x8xf32> -> vector<16x8xf32>
    %169 = vector.extract_strided_slice %162 {offsets = [32, 0], sizes = [16, 16], strides = [1, 1]} : vector<64x16xf32> to vector<16x16xf32>
    %170 = vector.extract_strided_slice %138 {offsets = [0, 16], sizes = [16, 8], strides = [1, 1]} : vector<16x32xf32> to vector<16x8xf32>
    %cst_77 = arith.constant dense<0.000000e+00> : vector<16x8xf32>
    %171 = tpu.matmul %169, %170, %cst_77 {dimension_numbers = #tpu.dot_dimension_numbers<[1], [0], [0], [1], [0, 0, 1, 1], [], []>} : vector<16x16xf32>, vector<16x8xf32>, vector<16x8xf32> -> vector<16x8xf32>
    %172 = vector.extract_strided_slice %162 {offsets = [48, 0], sizes = [16, 16], strides = [1, 1]} : vector<64x16xf32> to vector<16x16xf32>
    %173 = vector.extract_strided_slice %138 {offsets = [0, 24], sizes = [16, 8], strides = [1, 1]} : vector<16x32xf32> to vector<16x8xf32>
    %cst_78 = arith.constant dense<0.000000e+00> : vector<16x8xf32>
    %174 = tpu.matmul %172, %173, %cst_78 {dimension_numbers = #tpu.dot_dimension_numbers<[1], [0], [0], [1], [0, 0, 1, 1], [], []>} : vector<16x16xf32>, vector<16x8xf32>, vector<16x8xf32> -> vector<16x8xf32>
    %175 = tpu.concatenate %165, %168, %171, %174 in 1 : vector<16x8xf32>, vector<16x8xf32>, vector<16x8xf32>, vector<16x8xf32> -> vector<16x32xf32>
    %c1_79 = arith.constant 1 : index
    %c0_80 = arith.constant 0 : index
    %c0_81 = arith.constant 0 : index
    %176 = vector.load %arg7[%c1_79, %c0_80, %c0_81] : memref<2x32x32xf32, #tpu.memory_space<vmem>>, vector<1x32x32xf32>
    %177 = vector.shape_cast %176 : vector<1x32x32xf32> to vector<32x32xf32>
    %cst_82 = arith.constant dense<0.000000e+00> : vector<16x32xf32>
    %178 = tpu.matmul %175, %177, %cst_82 {dimension_numbers = #tpu.dot_dimension_numbers<[1], [0], [0], [1], [0, 0, 1, 1], [], []>} : vector<16x32xf32>, vector<32x32xf32>, vector<16x32xf32> -> vector<16x32xf32>
    %c1_83 = arith.constant 1 : index
    %c0_84 = arith.constant 0 : index
    %c0_85 = arith.constant 0 : index
    %179 = vector.load %arg8[%c1_83, %c0_84, %c0_85] : memref<2x1x32xf32, #tpu.memory_space<vmem>>, vector<1x1x32xf32>
    %180 = vector.shape_cast %179 : vector<1x1x32xf32> to vector<1x32xf32>
    %181 = vector.broadcast %180 : vector<1x32xf32> to vector<16x32xf32>
    %182 = arith.addf %178, %181 : vector<16x32xf32>
    %183 = arith.addf %126, %182 : vector<16x32xf32>
    %cst_86 = arith.constant dense<0.000000e+00> : vector<16xf32>
    %184 = vector.multi_reduction <add>, %183, %cst_86 [1] : vector<16x32xf32> to vector<16xf32>
    %185 = vector.shape_cast %184 : vector<16xf32> to vector<16x1xf32>
    %cst_87 = arith.constant 3.200000e+01 : f32
    %186 = vector.broadcast %cst_87 : f32 to vector<16x1xf32>
    %187 = arith.divf %185, %186 : vector<16x1xf32>
    %188 = vector.broadcast %187 : vector<16x1xf32> to vector<16x32xf32>
    %189 = arith.subf %183, %188 : vector<16x32xf32>
    %190 = arith.mulf %189, %189 : vector<16x32xf32>
    %cst_88 = arith.constant dense<0.000000e+00> : vector<16xf32>
    %191 = vector.multi_reduction <add>, %190, %cst_88 [1] : vector<16x32xf32> to vector<16xf32>
    %192 = vector.shape_cast %191 : vector<16xf32> to vector<16x1xf32>
    %cst_89 = arith.constant 3.200000e+01 : f32
    %193 = vector.broadcast %cst_89 : f32 to vector<16x1xf32>
    %194 = arith.divf %192, %193 : vector<16x1xf32>
    %195 = vector.broadcast %187 : vector<16x1xf32> to vector<16x32xf32>
    %196 = arith.subf %183, %195 : vector<16x32xf32>
    %cst_90 = arith.constant 9.99999974E-6 : f32
    %197 = vector.broadcast %cst_90 : f32 to vector<16x1xf32>
    %198 = arith.addf %194, %197 : vector<16x1xf32>
    %199 = math.rsqrt %198 : vector<16x1xf32>
    %200 = vector.broadcast %199 : vector<16x1xf32> to vector<16x32xf32>
    %201 = arith.mulf %196, %200 : vector<16x32xf32>
    %c1_91 = arith.constant 1 : index
    %c0_92 = arith.constant 0 : index
    %c0_93 = arith.constant 0 : index
    %202 = vector.load %arg9[%c1_91, %c0_92, %c0_93] : memref<2x32x64xf32, #tpu.memory_space<vmem>>, vector<1x32x64xf32>
    %203 = vector.shape_cast %202 : vector<1x32x64xf32> to vector<32x64xf32>
    %cst_94 = arith.constant dense<0.000000e+00> : vector<16x64xf32>
    %204 = tpu.matmul %201, %203, %cst_94 {dimension_numbers = #tpu.dot_dimension_numbers<[1], [0], [0], [1], [0, 0, 1, 1], [], []>} : vector<16x32xf32>, vector<32x64xf32>, vector<16x64xf32> -> vector<16x64xf32>
    %c1_95 = arith.constant 1 : index
    %c0_96 = arith.constant 0 : index
    %c0_97 = arith.constant 0 : index
    %205 = vector.load %arg10[%c1_95, %c0_96, %c0_97] : memref<2x1x64xf32, #tpu.memory_space<vmem>>, vector<1x1x64xf32>
    %206 = vector.shape_cast %205 : vector<1x1x64xf32> to vector<1x64xf32>
    %207 = vector.broadcast %206 : vector<1x64xf32> to vector<16x64xf32>
    %208 = arith.addf %204, %207 : vector<16x64xf32>
    %cst_98 = arith.constant 5.000000e-01 : f32
    %209 = vector.broadcast %cst_98 : f32 to vector<16x64xf32>
    %210 = arith.mulf %209, %208 : vector<16x64xf32>
    %cst_99 = arith.constant 0.707106769 : f32
    %211 = vector.broadcast %cst_99 : f32 to vector<16x64xf32>
    %212 = arith.mulf %208, %211 : vector<16x64xf32>
    %213 = math.erf %212 : vector<16x64xf32>
    %cst_100 = arith.constant 1.000000e+00 : f32
    %214 = vector.broadcast %cst_100 : f32 to vector<16x64xf32>
    %215 = arith.addf %214, %213 : vector<16x64xf32>
    %216 = arith.mulf %210, %215 : vector<16x64xf32>
    %c1_101 = arith.constant 1 : index
    %c0_102 = arith.constant 0 : index
    %c0_103 = arith.constant 0 : index
    %217 = vector.load %arg11[%c1_101, %c0_102, %c0_103] : memref<2x64x32xf32, #tpu.memory_space<vmem>>, vector<1x64x32xf32>
    %218 = vector.shape_cast %217 : vector<1x64x32xf32> to vector<64x32xf32>
    %cst_104 = arith.constant dense<0.000000e+00> : vector<16x32xf32>
    %219 = tpu.matmul %216, %218, %cst_104 {dimension_numbers = #tpu.dot_dimension_numbers<[1], [0], [0], [1], [0, 0, 1, 1], [], []>} : vector<16x64xf32>, vector<64x32xf32>, vector<16x32xf32> -> vector<16x32xf32>
    %c1_105 = arith.constant 1 : index
    %c0_106 = arith.constant 0 : index
    %c0_107 = arith.constant 0 : index
    %220 = vector.load %arg12[%c1_105, %c0_106, %c0_107] : memref<2x1x32xf32, #tpu.memory_space<vmem>>, vector<1x1x32xf32>
    %221 = vector.shape_cast %220 : vector<1x1x32xf32> to vector<1x32xf32>
    %222 = vector.broadcast %221 : vector<1x32xf32> to vector<16x32xf32>
    %223 = arith.addf %219, %222 : vector<16x32xf32>
    %224 = arith.addf %201, %223 : vector<16x32xf32>
    %cst_108 = arith.constant dense<0.000000e+00> : vector<16xf32>
    %225 = vector.multi_reduction <add>, %224, %cst_108 [1] : vector<16x32xf32> to vector<16xf32>
    %226 = vector.shape_cast %225 : vector<16xf32> to vector<16x1xf32>
    %cst_109 = arith.constant 3.200000e+01 : f32
    %227 = vector.broadcast %cst_109 : f32 to vector<16x1xf32>
    %228 = arith.divf %226, %227 : vector<16x1xf32>
    %229 = vector.broadcast %228 : vector<16x1xf32> to vector<16x32xf32>
    %230 = arith.subf %224, %229 : vector<16x32xf32>
    %231 = arith.mulf %230, %230 : vector<16x32xf32>
    %cst_110 = arith.constant dense<0.000000e+00> : vector<16xf32>
    %232 = vector.multi_reduction <add>, %231, %cst_110 [1] : vector<16x32xf32> to vector<16xf32>
    %233 = vector.shape_cast %232 : vector<16xf32> to vector<16x1xf32>
    %cst_111 = arith.constant 3.200000e+01 : f32
    %234 = vector.broadcast %cst_111 : f32 to vector<16x1xf32>
    %235 = arith.divf %233, %234 : vector<16x1xf32>
    %236 = vector.broadcast %228 : vector<16x1xf32> to vector<16x32xf32>
    %237 = arith.subf %224, %236 : vector<16x32xf32>
    %cst_112 = arith.constant 9.99999974E-6 : f32
    %238 = vector.broadcast %cst_112 : f32 to vector<16x1xf32>
    %239 = arith.addf %235, %238 : vector<16x1xf32>
    %240 = math.rsqrt %239 : vector<16x1xf32>
    %241 = vector.broadcast %240 : vector<16x1xf32> to vector<16x32xf32>
    %242 = arith.mulf %237, %241 : vector<16x32xf32>
    %cst_113 = arith.constant dense<0.000000e+00> : vector<16xf32>
    %243 = vector.multi_reduction <add>, %242, %cst_113 [1] : vector<16x32xf32> to vector<16xf32>
    %244 = vector.shape_cast %243 : vector<16xf32> to vector<16x1xf32>
    %cst_114 = arith.constant 3.200000e+01 : f32
    %245 = vector.broadcast %cst_114 : f32 to vector<16x1xf32>
    %246 = arith.divf %244, %245 : vector<16x1xf32>
    %247 = vector.broadcast %246 : vector<16x1xf32> to vector<16x32xf32>
    %248 = arith.subf %242, %247 : vector<16x32xf32>
    %249 = arith.mulf %248, %248 : vector<16x32xf32>
    %cst_115 = arith.constant dense<0.000000e+00> : vector<16xf32>
    %250 = vector.multi_reduction <add>, %249, %cst_115 [1] : vector<16x32xf32> to vector<16xf32>
    %251 = vector.shape_cast %250 : vector<16xf32> to vector<16x1xf32>
    %cst_116 = arith.constant 3.200000e+01 : f32
    %252 = vector.broadcast %cst_116 : f32 to vector<16x1xf32>
    %253 = arith.divf %251, %252 : vector<16x1xf32>
    %254 = vector.broadcast %246 : vector<16x1xf32> to vector<16x32xf32>
    %255 = arith.subf %242, %254 : vector<16x32xf32>
    %cst_117 = arith.constant 9.99999974E-6 : f32
    %256 = vector.broadcast %cst_117 : f32 to vector<16x1xf32>
    %257 = arith.addf %253, %256 : vector<16x1xf32>
    %258 = math.rsqrt %257 : vector<16x1xf32>
    %259 = vector.broadcast %258 : vector<16x1xf32> to vector<16x32xf32>
    %260 = arith.mulf %255, %259 : vector<16x32xf32>
    %c0_118 = arith.constant 0 : index
    %c0_119 = arith.constant 0 : index
    %261 = vector.load %arg13[%c0_118, %c0_119] : memref<32x32xf32, #tpu.memory_space<vmem>>, vector<32x32xf32>
    %cst_120 = arith.constant dense<0.000000e+00> : vector<16x32xf32>
    %262 = tpu.matmul %260, %261, %cst_120 {dimension_numbers = #tpu.dot_dimension_numbers<[1], [0], [0], [1], [0, 0, 1, 1], [], []>} : vector<16x32xf32>, vector<32x32xf32>, vector<16x32xf32> -> vector<16x32xf32>
    %c0_121 = arith.constant 0 : index
    %c0_122 = arith.constant 0 : index
    %263 = vector.load %arg14[%c0_121, %c0_122] : memref<1x32xf32, #tpu.memory_space<vmem>>, vector<1x32xf32>
    %264 = vector.broadcast %263 : vector<1x32xf32> to vector<16x32xf32>
    %265 = arith.addf %262, %264 : vector<16x32xf32>
    %cst_123 = arith.constant 5.000000e-01 : f32
    %266 = vector.broadcast %cst_123 : f32 to vector<16x32xf32>
    %267 = arith.mulf %266, %265 : vector<16x32xf32>
    %cst_124 = arith.constant 0.707106769 : f32
    %268 = vector.broadcast %cst_124 : f32 to vector<16x32xf32>
    %269 = arith.mulf %265, %268 : vector<16x32xf32>
    %270 = math.erf %269 : vector<16x32xf32>
    %cst_125 = arith.constant 1.000000e+00 : f32
    %271 = vector.broadcast %cst_125 : f32 to vector<16x32xf32>
    %272 = arith.addf %271, %270 : vector<16x32xf32>
    %273 = arith.mulf %267, %272 : vector<16x32xf32>
    %c0_126 = arith.constant 0 : index
    %c0_127 = arith.constant 0 : index
    %274 = vector.load %arg15[%c0_126, %c0_127] : memref<32x128xf32, #tpu.memory_space<vmem>>, vector<32x128xf32>
    %cst_128 = arith.constant dense<0.000000e+00> : vector<16x128xf32>
    %275 = tpu.matmul %273, %274, %cst_128 {dimension_numbers = #tpu.dot_dimension_numbers<[1], [0], [0], [1], [0, 0, 1, 1], [], []>} : vector<16x32xf32>, vector<32x128xf32>, vector<16x128xf32> -> vector<16x128xf32>
    %c0_129 = arith.constant 0 : index
    %c0_130 = arith.constant 0 : index
    %276 = vector.load %arg16[%c0_129, %c0_130] : memref<1x128xf32, #tpu.memory_space<vmem>>, vector<1x128xf32>
    %277 = vector.broadcast %276 : vector<1x128xf32> to vector<16x128xf32>
    %278 = arith.addf %275, %277 : vector<16x128xf32>
    %c0_131 = arith.constant 0 : index
    %c0_132 = arith.constant 0 : index
    %279 = vector.load %arg17[%c0_131, %c0_132] : memref<16x128xf32, #tpu.memory_space<vmem>>, vector<16x128xf32>
    tpu.vector_store %arg17[%c0_131, %c0_132], %278 {strides = array<i32>} : memref<16x128xf32, #tpu.memory_space<vmem>>, vector<16x128xf32>,
    return
  }
}

</mosaic_0001>

<llo_original>
// kernel: music_transformer_forward.1
$region0: #{music_transformer_forward.1}
  #allocation0 [shape = 'u32[]', space=smem, size = 0x4, offset = 0x4, fixed_abs, tag = 'smem constant byte address 0x4 - core index']
  #allocation1 [shape = 'u32[144,128]{1,0:T(1,128)}', space=vmem, size = 0x12000, scoped, tag = 'internal scratch']
  %s0 = inlined_call_operand.vmem [shape: f32[16,4], index: 0, kind: input, shape index: {}]
  %s1 = inlined_call_operand.vmem [shape: f32[16,32], index: 1, kind: input, shape index: {}]
  %s2 = inlined_call_operand.vmem [shape: f32[64,16], index: 2, kind: input, shape index: {}]
  %s3 = inlined_call_operand.vmem [shape: f32[4,32], index: 3, kind: input, shape index: {}]
  %s4 = inlined_call_operand.hbm [shape: f32[1,32], index: 4, kind: input, shape index: {}]
  %s5 = inlined_call_operand.vmem [shape: f32[2,32,96], index: 5, kind: input, shape index: {}]
  %s6 = inlined_call_operand.vmem [shape: f32[2,1,96], index: 6, kind: input, shape index: {}]
  %s7 = inlined_call_operand.vmem [shape: f32[2,32,32], index: 7, kind: input, shape index: {}]
  %s8 = inlined_call_operand.hbm [shape: f32[2,1,32], index: 8, kind: input, shape index: {}]
  %s9 = inlined_call_operand.vmem [shape: f32[2,32,64], index: 9, kind: input, shape index: {}]
  %s10 = inlined_call_operand.hbm [shape: f32[2,1,64], index: 10, kind: input, shape index: {}]
  %s11 = inlined_call_operand.vmem [shape: f32[2,64,32], index: 11, kind: input, shape index: {}]
  %s12 = inlined_call_operand.hbm [shape: f32[2,1,32], index: 12, kind: input, shape index: {}]
  %s13 = inlined_call_operand.vmem [shape: f32[32,32], index: 13, kind: input, shape index: {}]
  %s14 = inlined_call_operand.vmem [shape: f32[1,32], index: 14, kind: input, shape index: {}]
  %s15 = inlined_call_operand.vmem [shape: f32[32,128], index: 15, kind: input, shape index: {}]
  %s16 = inlined_call_operand.vmem [shape: f32[1,128], index: 16, kind: input, shape index: {}]
  %s17 = inlined_call_operand.vmem [shape: f32[16,128], index: 17, kind: output, shape index: {}]
  %s18 = sld [smem:[#allocation0]]
  $region94: #{music_transformer_forward.1} parent=0
    _
  %s20 = ssub.s32 1, %s18
  %s21 = scalar_select 0, %s20, %s18
  $region1: #{music_transformer_forward.1} parent=0
    #allocation2 [shape = 'u8[512]{0}', space=vmem, size = 0x400, scoped, tag = 'input window, operand 4, single buffered']
    #allocation3 [shape = 's32[1]{0}', space=sflag, size = 0x4, scoped, tag = 'scoped memory for music_transformer_forward.1']
    #allocation4 [shape = 'u8[1024]{0}', space=vmem, size = 0x400, scoped, tag = 'input window, operand 8, single buffered']
    #allocation5 [shape = 's32[1]{0}', space=sflag, size = 0x4, scoped, tag = 'scoped memory for music_transformer_forward.1']
    #allocation6 [shape = 'u8[1024]{0}', space=vmem, size = 0x400, scoped, tag = 'input window, operand 10, single buffered']
    #allocation7 [shape = 'u8[1024]{0}', space=vmem, size = 0x400, scoped, tag = 'input window, operand 12, single buffered']
    #allocation8 [shape = 's32[1]{0}', space=sflag, size = 0x4, scoped, tag = 'scoped memory for music_transformer_forward.1']
    %22 = vsyncpa [#allocation3], 0
    %23 = vsyncpa [#allocation5], 0
    %24 = vsyncpa [#allocation8], 0
    // Predicated region
    $region2: #{music_transformer_forward.1} parent=1 // pred_check
      _
    $region3: #{music_transformer_forward.1} parent=1 // pred_check_branch
      %26 = sbr.rel (0) target = $region5
    $region4: #{music_transformer_forward.1} parent=1 // pred_region
      _
    $region5: #{music_transformer_forward.1} parent=1 // pred_fallthru
      _
    // Predicated region
    $region6: #{music_transformer_forward.1} parent=1 // pred_check
      _
    $region7: #{music_transformer_forward.1} parent=1 // pred_check_branch
      %28 = sbr.rel (0) target = $region9
    $region8: #{music_transformer_forward.1} parent=1 // pred_region
      _
    $region9: #{music_transformer_forward.1} parent=1 // pred_fallthru
      _
    // Predicated region
    $region10: #{music_transformer_forward.1} parent=1 // pred_check
      _
    $region11: #{music_transformer_forward.1} parent=1 // pred_check_branch
      %30 = sbr.rel (0) target = $region13
    $region12: #{music_transformer_forward.1} parent=1 // pred_region
      _
    $region13: #{music_transformer_forward.1} parent=1 // pred_fallthru
      _
    // Predicated region
    $region14: #{music_transformer_forward.1} parent=1 // pred_check
      _
    $region15: #{music_transformer_forward.1} parent=1 // pred_check_branch
      %32 = sbr.rel (0) target = $region17
    $region16: #{music_transformer_forward.1} parent=1 // pred_region
      _
    $region17: #{music_transformer_forward.1} parent=1 // pred_fallthru
      _
    // Predicated region
    $region18: #{music_transformer_forward.1} parent=1 // pred_check
      _
    $region19: #{music_transformer_forward.1} parent=1 // pred_check_branch
      %34 = sbr.rel (0) target = $region21
    $region20: #{music_transformer_forward.1} parent=1 // pred_region
      %s36 = ssub.s32 16, 16
      %37 = vsyncadd [#allocation3], %s36
      %s39 = sshll.u32 [#allocation2], 4
      %s40 = int_to_ptr.vmem [resolvable:$true] %s39
      %42 = dma.hbm_to_vmem [thread:$0]  %s4, 16, %s40, [#allocation3]
    $region21: #{music_transformer_forward.1} parent=1 // pred_fallthru
      _
    // Predicated region
    $region22: #{music_transformer_forward.1} parent=1 // pred_check
      _
    $region23: #{music_transformer_forward.1} parent=1 // pred_check_branch
      %44 = sbr.rel (0) target = $region25
    $region24: #{music_transformer_forward.1} parent=1 // pred_region
      _
    $region25: #{music_transformer_forward.1} parent=1 // pred_fallthru
      _
    // Predicated region
    $region26: #{music_transformer_forward.1} parent=1 // pred_check
      _
    $region27: #{music_transformer_forward.1} parent=1 // pred_check_branch
      %46 = sbr.rel (0) target = $region29
    $region28: #{music_transformer_forward.1} parent=1 // pred_region
      _
    $region29: #{music_transformer_forward.1} parent=1 // pred_fallthru
      _
    // Predicated region
    $region30: #{music_transformer_forward.1} parent=1 // pred_check
      _
    $region31: #{music_transformer_forward.1} parent=1 // pred_check_branch
      %48 = sbr.rel (0) target = $region33
    $region32: #{music_transformer_forward.1} parent=1 // pred_region
      _
    $region33: #{music_transformer_forward.1} parent=1 // pred_fallthru
      _
    // Predicated region
    $region34: #{music_transformer_forward.1} parent=1 // pred_check
      _
    $region35: #{music_transformer_forward.1} parent=1 // pred_check_branch
      %50 = sbr.rel (0) target = $region37
    $region36: #{music_transformer_forward.1} parent=1 // pred_region
      %s52 = ssub.s32 32, 32
      %53 = vsyncadd [#allocation5], %s52
      %s54 = sshll.u32 [#allocation4], 4
      %s55 = int_to_ptr.vmem [resolvable:$true] %s54
      %60 = dma.hbm_to_vmem [thread:$0]  %s8, 32, %s55, [#allocation5], 16, 16, 1
    $region37: #{music_transformer_forward.1} parent=1 // pred_fallthru
      _
    // Predicated region
    $region38: #{music_transformer_forward.1} parent=1 // pred_check
      _
    $region39: #{music_transformer_forward.1} parent=1 // pred_check_branch
      %62 = sbr.rel (0) target = $region41
    $region40: #{music_transformer_forward.1} parent=1 // pred_region
      _
    $region41: #{music_transformer_forward.1} parent=1 // pred_fallthru
      _
    // Predicated region
    $region42: #{music_transformer_forward.1} parent=1 // pred_check
      _
    $region43: #{music_transformer_forward.1} parent=1 // pred_check_branch
      %64 = sbr.rel (0) target = $region45
    $region44: #{music_transformer_forward.1} parent=1 // pred_region
      %s66 = ssub.s32 32, 32
      %67 = vsyncadd [#allocation5], %s66
      %s68 = sshll.u32 [#allocation6], 4
      %s69 = int_to_ptr.vmem [resolvable:$true] %s68
      %74 = dma.hbm_to_vmem [thread:$0]  %s10, 32, %s69, [#allocation5], 16, 16, 1
    $region45: #{music_transformer_forward.1} parent=1 // pred_fallthru
      _
    // Predicated region
    $region46: #{music_transformer_forward.1} parent=1 // pred_check
      _
    $region47: #{music_transformer_forward.1} parent=1 // pred_check_branch
      %76 = sbr.rel (0) target = $region49
    $region48: #{music_transformer_forward.1} parent=1 // pred_region
      _
    $region49: #{music_transformer_forward.1} parent=1 // pred_fallthru
      _
    // Predicated region
    $region50: #{music_transformer_forward.1} parent=1 // pred_check
      _
    $region51: #{music_transformer_forward.1} parent=1 // pred_check_branch
      %78 = sbr.rel (0) target = $region53
    $region52: #{music_transformer_forward.1} parent=1 // pred_region
      %s80 = ssub.s32 32, 32
      %81 = vsyncadd [#allocation8], %s80
      %s82 = sshll.u32 [#allocation7], 4
      %s83 = int_to_ptr.vmem [resolvable:$true] %s82
      %88 = dma.hbm_to_vmem [thread:$0]  %s12, 32, %s83, [#allocation8], 16, 16, 1
    $region53: #{music_transformer_forward.1} parent=1 // pred_fallthru
      _
    // Predicated region
    $region54: #{music_transformer_forward.1} parent=1 // pred_check
      _
    $region55: #{music_transformer_forward.1} parent=1 // pred_check_branch
      %90 = sbr.rel (0) target = $region57
    $region56: #{music_transformer_forward.1} parent=1 // pred_region
      _
    $region57: #{music_transformer_forward.1} parent=1 // pred_fallthru
      _
    // Predicated region
    $region58: #{music_transformer_forward.1} parent=1 // pred_check
      _
    $region59: #{music_transformer_forward.1} parent=1 // pred_check_branch
      %92 = sbr.rel (0) target = $region61
    $region60: #{music_transformer_forward.1} parent=1 // pred_region
      _
    $region61: #{music_transformer_forward.1} parent=1 // pred_fallthru
      _
    // Predicated region
    $region62: #{music_transformer_forward.1} parent=1 // pred_check
      _
    $region63: #{music_transformer_forward.1} parent=1 // pred_check_branch
      %94 = sbr.rel (0) target = $region65
    $region64: #{music_transformer_forward.1} parent=1 // pred_region
      _
    $region65: #{music_transformer_forward.1} parent=1 // pred_fallthru
      _
    // Predicated region
    $region66: #{music_transformer_forward.1} parent=1 // pred_check
      _
    $region67: #{music_transformer_forward.1} parent=1 // pred_check_branch
      %96 = sbr.rel (0) target = $region69
    $region68: #{music_transformer_forward.1} parent=1 // pred_region
      _
    $region69: #{music_transformer_forward.1} parent=1 // pred_fallthru
      _
    // Predicated region
    $region70: #{music_transformer_forward.1} parent=1 // pred_check
      _
    $region71: #{music_transformer_forward.1} parent=1 // pred_check_branch
      %98 = sbr.rel (0) target = $region73
    $region72: #{music_transformer_forward.1} parent=1 // pred_region
      %99 = dma.done [#allocation3], 16
    $region73: #{music_transformer_forward.1} parent=1 // pred_fallthru
      _
    // Predicated region
    $region74: #{music_transformer_forward.1} parent=1 // pred_check
      _
    $region75: #{music_transformer_forward.1} parent=1 // pred_check_branch
      %101 = sbr.rel (0) target = $region77
    $region76: #{music_transformer_forward.1} parent=1 // pred_region
      %102 = dma.done [#allocation5], 32
    $region77: #{music_transformer_forward.1} parent=1 // pred_fallthru
      _
    // Predicated region
    $region78: #{music_transformer_forward.1} parent=1 // pred_check
      _
    $region79: #{music_transformer_forward.1} parent=1 // pred_check_branch
      %104 = sbr.rel (0) target = $region81
    $region80: #{music_transformer_forward.1} parent=1 // pred_region
      %105 = dma.done [#allocation5], 32
    $region81: #{music_transformer_forward.1} parent=1 // pred_fallthru
      _
    // Predicated region
    $region82: #{music_transformer_forward.1} parent=1 // pred_check
      _
    $region83: #{music_transformer_forward.1} parent=1 // pred_check_branch
      %107 = sbr.rel (0) target = $region85
    $region84: #{music_transformer_forward.1} parent=1 // pred_region
      %108 = dma.done [#allocation8], 32
    $region85: #{music_transformer_forward.1} parent=1 // pred_fallthru
      _
    %v109 = vld [vmem:[%s0] sm:$0xff]
    %v110 = vld [vmem:[%s0 + $0x8] sm:$0xff]
    %v111 = vld [vmem:[%s3] sm:$0xf]
    %v112 = vld [vmem:[#allocation2] sm:$0x1]
    %v114 = vlaneseq
    %v115 = vshrl.u32 %v114, 7
    %v116 = vsub.s32 0, %v115
    %v117 = vrot.slane %v112, %v116
    %vm119 = vcmask 31744
    %v121 = vsel %vm119, %v109, 0
    %v124 = vsel %vm119, %v110, 0
    %vm126 = vcmask 1043456
    %v128 = vsel %vm126, %v111, 0
    %130 = vmatprep.subr.mxu0 0.0
    %131 = vmatpush1.msra.mxu0 %v128
    %132 = vmatprep.subr.mxu0 0.0
    %133 = vmatpush1.msra.mxu0 0.0
    %134 = vmatprep.subr.mxu0 0.0
    %135 = vmatpush1.msra.mxu0 0.0
    %136 = vmatprep.subr.mxu0 0.0
    %137 = vmatpush1.msra.mxu0 0.0
    %138 = vmatprep.subr.mxu0 0.0
    %139 = vmatpush1.msra.mxu0 0.0
    %140 = vmatprep.subr.mxu0 0.0
    %141 = vmatpush1.msra.mxu0 0.0
    %142 = vmatprep.subr.mxu0 0.0
    %143 = vmatpush1.msra.mxu0 0.0
    %144 = vmatprep.subr.mxu0 0.0
    %145 = vmatpush1.msra.mxu0 0.0
    %146 = vmatprep.subr.mxu0 0.0
    %147 = vmatpush1.msra.mxu0 0.0
    %148 = vmatprep.subr.mxu0 0.0
    %149 = vmatpush1.msra.mxu0 0.0
    %150 = vmatprep.subr.mxu0 0.0
    %151 = vmatpush1.msra.mxu0 0.0
    %152 = vmatprep.subr.mxu0 0.0
    %153 = vmatpush1.msra.mxu0 0.0
    %154 = vmatprep.subr.mxu0 0.0
    %155 = vmatpush1.msra.mxu0 0.0
    %156 = vmatprep.subr.mxu0 0.0
    %157 = vmatpush1.msra.mxu0 0.0
    %158 = vmatprep.subr.mxu0 0.0
    %159 = vmatpush1.msra.mxu0 0.0
    %160 = vmatprep.subr.mxu0 0.0
    %161 = vmatpush1.msra.mxu0 0.0
    %162 = vmatprep.subr.mxu0 0.0
    %163 = vmatpush1.msra.mxu0 0.0
    %164 = vmatprep.subr.mxu0 0.0
    %165 = vmatpush1.msra.mxu0 0.0
    %166 = vmatprep.subr.mxu0 0.0
    %167 = vmatpush1.msra.mxu0 0.0
    %168 = vmatprep.subr.mxu0 0.0
    %169 = vmatpush1.msra.mxu0 0.0
    %170 = vmatprep.subr.mxu0 0.0
    %171 = vmatpush1.msra.mxu0 0.0
    %172 = vmatprep.subr.mxu0 0.0
    %173 = vmatpush1.msra.mxu0 0.0
    %174 = vmatprep.subr.mxu0 0.0
    %175 = vmatpush1.msra.mxu0 0.0
    %176 = vmatprep.subr.mxu0 0.0
    %177 = vmatpush1.msra.mxu0 0.0
    %178 = vmatprep.subr.mxu0 0.0
    %179 = vmatpush1.msra.mxu0 0.0
    %180 = vmatprep.subr.mxu0 0.0
    %181 = vmatpush1.msra.mxu0 0.0
    %182 = vmatprep.subr.mxu0 0.0
    %183 = vmatpush1.msra.mxu0 0.0
    %184 = vmatprep.subr.mxu0 0.0
    %185 = vmatpush1.msra.mxu0 0.0
    %186 = vmatprep.subr.mxu0 0.0
    %187 = vmatpush1.msra.mxu0 0.0
    %188 = vmatprep.subr.mxu0 0.0
    %189 = vmatpush1.msra.mxu0 0.0
    %190 = vmatprep.subr.mxu0 0.0
    %191 = vmatpush1.msra.mxu0 0.0
    %192 = vmatprep.subr.mxu0 0.0
    %193 = vmatpush1.msra.mxu0 0.0
    %194 = vmatprep.mubr.f32.mxu0 0.0
    %195 = vmatmul.mubr.f32.gmra.mrb[0].mxu0 %v121
    %v196 = vpop.f32.mrb[0].mxu0
    %v197 = vadd.f32 %v117, %v196
    %v198 = vpop.f32.mrb[0].mxu0
    %199 = vmatprep.mubr.f32.mxu0 0.0
    %200 = vmatmul.mubr.f32.gmra.mrb[0].mxu0 %v124
    %v201 = vpop.f32.mrb[0].mxu0
    %v202 = vadd.f32 %v117, %v201
    %v203 = vpop.f32.mrb[0].mxu0
    %204 = vdwg.mxu0
    %v205 = vmul.f32 %v197, 5.656854
    %v206 = vmul.f32 %v202, 5.656854
    %v207 = vld [vmem:[%s1] sm:$0xff]
    %v208 = vld [vmem:[%s1 + $0x8] sm:$0xff]
    %v209 = vadd.f32 %v205, %v207
    %v210 = vadd.f32 %v206, %v208
    %v211 = vld [vmem:[%s2] sm:$0xff]
    %v212 = vld [vmem:[%s2 + $0x8] sm:$0xff]
    %v213 = vld [vmem:[%s2 + $0x10] sm:$0xff]
    %v214 = vld [vmem:[%s2 + $0x18] sm:$0xff]
    %v215 = vld [vmem:[%s2 + $0x20] sm:$0xff]
    %v216 = vld [vmem:[%s2 + $0x28] sm:$0xff]
    %v217 = vld [vmem:[%s2 + $0x30] sm:$0xff]
    %v218 = vld [vmem:[%s2 + $0x38] sm:$0xff]
    %v219 = vld [vmem:[%s5] sm:$0xff]
    %v220 = vld [vmem:[%s5 + $0x8] sm:$0xff]
    %v221 = vld [vmem:[%s5 + $0x10] sm:$0xff]
    %v222 = vld [vmem:[%s5 + $0x18] sm:$0xff]
    %v223 = vld [vmem:[%s6] sm:$0x1]
    %v225 = vlaneseq
    %v226 = vshrl.u32 %v225, 7
    %v227 = vsub.s32 0, %v226
    %v228 = vrot.slane %v223, %v227
    %vm230 = vcmask 261120
    %v232 = vsel %vm230, %v209, 0
    %v235 = vsel %vm230, %v210, 0
    %237 = vmatprep.subr.mxu0 0.0
    %238 = vmatpush1.msra.mxu0 %v219
    %239 = vmatprep.subr.mxu0 0.0
    %240 = vmatpush1.msra.mxu0 %v220
    %241 = vmatprep.subr.mxu0 0.0
    %242 = vmatpush1.msra.mxu0 %v221
    %243 = vmatprep.subr.mxu0 0.0
    %244 = vmatpush1.msra.mxu0 %v222
    %245 = vmatprep.subr.mxu0 0.0
    %246 = vmatpush1.msra.mxu0 0.0
    %247 = vmatprep.subr.mxu0 0.0
    %248 = vmatpush1.msra.mxu0 0.0
    %249 = vmatprep.subr.mxu0 0.0
    %250 = vmatpush1.msra.mxu0 0.0
    %251 = vmatprep.subr.mxu0 0.0
    %252 = vmatpush1.msra.mxu0 0.0
    %253 = vmatprep.subr.mxu0 0.0
    %254 = vmatpush1.msra.mxu0 0.0
    %255 = vmatprep.subr.mxu0 0.0
    %256 = vmatpush1.msra.mxu0 0.0
    %257 = vmatprep.subr.mxu0 0.0
    %258 = vmatpush1.msra.mxu0 0.0
    %259 = vmatprep.subr.mxu0 0.0
    %260 = vmatpush1.msra.mxu0 0.0
    %261 = vmatprep.subr.mxu0 0.0
    %262 = vmatpush1.msra.mxu0 0.0
    %263 = vmatprep.subr.mxu0 0.0
    %264 = vmatpush1.msra.mxu0 0.0
    %265 = vmatprep.subr.mxu0 0.0
    %266 = vmatpush1.msra.mxu0 0.0
    %267 = vmatprep.subr.mxu0 0.0
    %268 = vmatpush1.msra.mxu0 0.0
    %269 = vmatprep.subr.mxu0 0.0
    %270 = vmatpush1.msra.mxu0 0.0
    %271 = vmatprep.subr.mxu0 0.0
    %272 = vmatpush1.msra.mxu0 0.0
    %273 = vmatprep.subr.mxu0 0.0
    %274 = vmatpush1.msra.mxu0 0.0
    %275 = vmatprep.subr.mxu0 0.0
    %276 = vmatpush1.msra.mxu0 0.0
    %277 = vmatprep.subr.mxu0 0.0
    %278 = vmatpush1.msra.mxu0 0.0
    %279 = vmatprep.subr.mxu0 0.0
    %280 = vmatpush1.msra.mxu0 0.0
    %281 = vmatprep.subr.mxu0 0.0
    %282 = vmatpush1.msra.mxu0 0.0
    %283 = vmatprep.subr.mxu0 0.0
    %284 = vmatpush1.msra.mxu0 0.0
    %285 = vmatprep.subr.mxu0 0.0
    %286 = vmatpush1.msra.mxu0 0.0
    %287 = vmatprep.subr.mxu0 0.0
    %288 = vmatpush1.msra.mxu0 0.0
    %289 = vmatprep.subr.mxu0 0.0
    %290 = vmatpush1.msra.mxu0 0.0
    %291 = vmatprep.subr.mxu0 0.0
    %292 = vmatpush1.msra.mxu0 0.0
    %293 = vmatprep.subr.mxu0 0.0
    %294 = vmatpush1.msra.mxu0 0.0
    %295 = vmatprep.subr.mxu0 0.0
    %296 = vmatpush1.msra.mxu0 0.0
    %297 = vmatprep.subr.mxu0 0.0
    %298 = vmatpush1.msra.mxu0 0.0
    %299 = vmatprep.subr.mxu0 0.0
    %300 = vmatpush1.msra.mxu0 0.0
    %301 = vmatprep.mubr.f32.mxu0 0.0
    %302 = vmatmul.mubr.f32.gmra.mrb[0].mxu0 %v232
    %v303 = vpop.f32.mrb[0].mxu0
    %v304 = vadd.f32 %v228, %v303
    %v305 = vpop.f32.mrb[0].mxu0
    %306 = vmatprep.mubr.f32.mxu0 0.0
    %307 = vmatmul.mubr.f32.gmra.mrb[0].mxu0 %v235
    %v308 = vpop.f32.mrb[0].mxu0
    %v309 = vadd.f32 %v228, %v308
    %v310 = vpop.f32.mrb[0].mxu0
    %311 = vdwg.mxu0
    %v312 = vmul.f32 %v304, 0.35355338
    %v313 = vmul.f32 %v309, 0.35355338
    %316 = vrot.lane.b32.xlu0 %v304, 96
    %v317 = vpop.permute.xlu0 %316
    %318 = vrot.lane.b32.xlu0 %v309, 96
    %v319 = vpop.permute.xlu0 %318
    %vm320 = vcmask 64512
    %v322 = vsel %vm320, %v312, 0
    %v325 = vsel %vm320, %v313, 0
    %v327 = vsel %vm320, %v317, 0
    %v329 = vsel %vm320, %v319, 0
    %331 = vmatprep.subr.mxu0 0.0
    %332 = vmatpush1.xpose.msra.mxu0 %v327
    %333 = vmatprep.subr.mxu0 0.0
    %334 = vmatpush1.xpose.msra.mxu0 %v329
    %335 = vmatprep.subr.mxu0 0.0
    %336 = vmatpush1.xpose.msra.mxu0 0.0
    %337 = vmatprep.subr.mxu0 0.0
    %338 = vmatpush1.xpose.msra.mxu0 0.0
    %339 = vmatprep.subr.mxu0 0.0
    %340 = vmatpush1.xpose.msra.mxu0 0.0
    %341 = vmatprep.subr.mxu0 0.0
    %342 = vmatpush1.xpose.msra.mxu0 0.0
    %343 = vmatprep.subr.mxu0 0.0
    %344 = vmatpush1.xpose.msra.mxu0 0.0
    %345 = vmatprep.subr.mxu0 0.0
    %346 = vmatpush1.xpose.msra.mxu0 0.0
    %347 = vmatprep.subr.mxu0 0.0
    %348 = vmatpush1.xpose.msra.mxu0 0.0
    %349 = vmatprep.subr.mxu0 0.0
    %350 = vmatpush1.xpose.msra.mxu0 0.0
    %351 = vmatprep.subr.mxu0 0.0
    %352 = vmatpush1.xpose.msra.mxu0 0.0
    %353 = vmatprep.subr.mxu0 0.0
    %354 = vmatpush1.xpose.msra.mxu0 0.0
    %355 = vmatprep.subr.mxu0 0.0
    %356 = vmatpush1.xpose.msra.mxu0 0.0
    %357 = vmatprep.subr.mxu0 0.0
    %358 = vmatpush1.xpose.msra.mxu0 0.0
    %359 = vmatprep.subr.mxu0 0.0
    %360 = vmatpush1.xpose.msra.mxu0 0.0
    %361 = vmatprep.subr.mxu0 0.0
    %362 = vmatpush1.xpose.msra.mxu0 0.0
    %363 = vmatprep.subr.mxu0 0.0
    %364 = vmatpush1.xpose.msra.mxu0 0.0
    %365 = vmatprep.subr.mxu0 0.0
    %366 = vmatpush1.xpose.msra.mxu0 0.0
    %367 = vmatprep.subr.mxu0 0.0
    %368 = vmatpush1.xpose.msra.mxu0 0.0
    %369 = vmatprep.subr.mxu0 0.0
    %370 = vmatpush1.xpose.msra.mxu0 0.0
    %371 = vmatprep.subr.mxu0 0.0
    %372 = vmatpush1.xpose.msra.mxu0 0.0
    %373 = vmatprep.subr.mxu0 0.0
    %374 = vmatpush1.xpose.msra.mxu0 0.0
    %375 = vmatprep.subr.mxu0 0.0
    %376 = vmatpush1.xpose.msra.mxu0 0.0
    %377 = vmatprep.subr.mxu0 0.0
    %378 = vmatpush1.xpose.msra.mxu0 0.0
    %379 = vmatprep.subr.mxu0 0.0
    %380 = vmatpush1.xpose.msra.mxu0 0.0
    %381 = vmatprep.subr.mxu0 0.0
    %382 = vmatpush1.xpose.msra.mxu0 0.0
    %383 = vmatprep.subr.mxu0 0.0
    %384 = vmatpush1.xpose.msra.mxu0 0.0
    %385 = vmatprep.subr.mxu0 0.0
    %386 = vmatpush1.xpose.msra.mxu0 0.0
    %387 = vmatprep.subr.mxu0 0.0
    %388 = vmatpush1.xpose.msra.mxu0 0.0
    %389 = vmatprep.subr.mxu0 0.0
    %390 = vmatpush1.xpose.msra.mxu0 0.0
    %391 = vmatprep.subr.mxu0 0.0
    %392 = vmatpush1.xpose.msra.mxu0 0.0
    %393 = vmatprep.subr.mxu0 0.0
    %394 = vmatpush1.xpose.msra.mxu0 0.0
    %395 = vmatprep.mubr.f32.mxu0 0.0
    %396 = vmatmul.mubr.f32.gmra.mrb[0].mxu0 %v322
    %v397 = vpop.f32.mrb[0].mxu0
    %v398 = vadd.f32 0.0, %v397
    %v399 = vpop.f32.mrb[0].mxu0
    %400 = vmatprep.mubr.f32.mxu0 0.0
    %401 = vmatmul.mubr.f32.gmra.mrb[0].mxu0 %v325
    %v402 = vpop.f32.mrb[0].mxu0
    %v403 = vadd.f32 0.0, %v402
    %v404 = vpop.f32.mrb[0].mxu0
    %405 = vdwg.mxu0
    %406 = vrot.lane.b32.xlu0 %v312, 120
    %v407 = vpop.permute.xlu0 %406
    %408 = vrot.lane.b32.xlu0 %v313, 120
    %v409 = vpop.permute.xlu0 %408
    %410 = vrot.lane.b32.xlu0 %v304, 88
    %v411 = vpop.permute.xlu0 %410
    %412 = vrot.lane.b32.xlu0 %v309, 88
    %v413 = vpop.permute.xlu0 %412
    %v414 = vsel %vm320, %v407, 0
    %v416 = vsel %vm320, %v409, 0
    %v418 = vsel %vm320, %v411, 0
    %v420 = vsel %vm320, %v413, 0
    %422 = vmatprep.subr.mxu0 0.0
    %423 = vmatpush1.xpose.msra.mxu0 %v418
    %424 = vmatprep.subr.mxu0 0.0
    %425 = vmatpush1.xpose.msra.mxu0 %v420
    %426 = vmatprep.subr.mxu0 0.0
    %427 = vmatpush1.xpose.msra.mxu0 0.0
    %428 = vmatprep.subr.mxu0 0.0
    %429 = vmatpush1.xpose.msra.mxu0 0.0
    %430 = vmatprep.subr.mxu0 0.0
    %431 = vmatpush1.xpose.msra.mxu0 0.0
    %432 = vmatprep.subr.mxu0 0.0
    %433 = vmatpush1.xpose.msra.mxu0 0.0
    %434 = vmatprep.subr.mxu0 0.0
    %435 = vmatpush1.xpose.msra.mxu0 0.0
    %436 = vmatprep.subr.mxu0 0.0
    %437 = vmatpush1.xpose.msra.mxu0 0.0
    %438 = vmatprep.subr.mxu0 0.0
    %439 = vmatpush1.xpose.msra.mxu0 0.0
    %440 = vmatprep.subr.mxu0 0.0
    %441 = vmatpush1.xpose.msra.mxu0 0.0
    %442 = vmatprep.subr.mxu0 0.0
    %443 = vmatpush1.xpose.msra.mxu0 0.0
    %444 = vmatprep.subr.mxu0 0.0
    %445 = vmatpush1.xpose.msra.mxu0 0.0
    %446 = vmatprep.subr.mxu0 0.0
    %447 = vmatpush1.xpose.msra.mxu0 0.0
    %448 = vmatprep.subr.mxu0 0.0
    %449 = vmatpush1.xpose.msra.mxu0 0.0
    %450 = vmatprep.subr.mxu0 0.0
    %451 = vmatpush1.xpose.msra.mxu0 0.0
    %452 = vmatprep.subr.mxu0 0.0
    %453 = vmatpush1.xpose.msra.mxu0 0.0
    %454 = vmatprep.subr.mxu0 0.0
    %455 = vmatpush1.xpose.msra.mxu0 0.0
    %456 = vmatprep.subr.mxu0 0.0
    %457 = vmatpush1.xpose.msra.mxu0 0.0
    %458 = vmatprep.subr.mxu0 0.0
    %459 = vmatpush1.xpose.msra.mxu0 0.0
    %460 = vmatprep.subr.mxu0 0.0
    %461 = vmatpush1.xpose.msra.mxu0 0.0
    %462 = vmatprep.subr.mxu0 0.0
    %463 = vmatpush1.xpose.msra.mxu0 0.0
    %464 = vmatprep.subr.mxu0 0.0
    %465 = vmatpush1.xpose.msra.mxu0 0.0
    %466 = vmatprep.subr.mxu0 0.0
    %467 = vmatpush1.xpose.msra.mxu0 0.0
    %468 = vmatprep.subr.mxu0 0.0
    %469 = vmatpush1.xpose.msra.mxu0 0.0
    %470 = vmatprep.subr.mxu0 0.0
    %471 = vmatpush1.xpose.msra.mxu0 0.0
    %472 = vmatprep.subr.mxu0 0.0
    %473 = vmatpush1.xpose.msra.mxu0 0.0
    %474 = vmatprep.subr.mxu0 0.0
    %475 = vmatpush1.xpose.msra.mxu0 0.0
    %476 = vmatprep.subr.mxu0 0.0
    %477 = vmatpush1.xpose.msra.mxu0 0.0
    %478 = vmatprep.subr.mxu0 0.0
    %479 = vmatpush1.xpose.msra.mxu0 0.0
    %480 = vmatprep.subr.mxu0 0.0
    %481 = vmatpush1.xpose.msra.mxu0 0.0
    %482 = vmatprep.subr.mxu0 0.0
    %483 = vmatpush1.xpose.msra.mxu0 0.0
    %484 = vmatprep.subr.mxu0 0.0
    %485 = vmatpush1.xpose.msra.mxu0 0.0
    %486 = vmatprep.mubr.f32.mxu0 0.0
    %487 = vmatmul.mubr.f32.gmra.mrb[0].mxu0 %v414
    %v488 = vpop.f32.mrb[0].mxu0
    %v489 = vadd.f32 0.0, %v488
    %v490 = vpop.f32.mrb[0].mxu0
    %491 = vmatprep.mubr.f32.mxu0 0.0
    %492 = vmatmul.mubr.f32.gmra.mrb[0].mxu0 %v416
    %v493 = vpop.f32.mrb[0].mxu0
    %v494 = vadd.f32 0.0, %v493
    %v495 = vpop.f32.mrb[0].mxu0
    %496 = vdwg.mxu0
    %497 = vrot.lane.b32.xlu0 %v312, 112
    %v498 = vpop.permute.xlu0 %497
    %499 = vrot.lane.b32.xlu0 %v313, 112
    %v500 = vpop.permute.xlu0 %499
    %501 = vrot.lane.b32.xlu0 %v304, 80
    %v502 = vpop.permute.xlu0 %501
    %503 = vrot.lane.b32.xlu0 %v309, 80
    %v504 = vpop.permute.xlu0 %503
    %v505 = vsel %vm320, %v498, 0
    %v507 = vsel %vm320, %v500, 0
    %v509 = vsel %vm320, %v502, 0
    %v511 = vsel %vm320, %v504, 0
    %513 = vmatprep.subr.mxu0 0.0
    %514 = vmatpush1.xpose.msra.mxu0 %v509
    %515 = vmatprep.subr.mxu0 0.0
    %516 = vmatpush1.xpose.msra.mxu0 %v511
    %517 = vmatprep.subr.mxu0 0.0
    %518 = vmatpush1.xpose.msra.mxu0 0.0
    %519 = vmatprep.subr.mxu0 0.0
    %520 = vmatpush1.xpose.msra.mxu0 0.0
    %521 = vmatprep.subr.mxu0 0.0
    %522 = vmatpush1.xpose.msra.mxu0 0.0
    %523 = vmatprep.subr.mxu0 0.0
    %524 = vmatpush1.xpose.msra.mxu0 0.0
    %525 = vmatprep.subr.mxu0 0.0
    %526 = vmatpush1.xpose.msra.mxu0 0.0
    %527 = vmatprep.subr.mxu0 0.0
    %528 = vmatpush1.xpose.msra.mxu0 0.0
    %529 = vmatprep.subr.mxu0 0.0
    %530 = vmatpush1.xpose.msra.mxu0 0.0
    %531 = vmatprep.subr.mxu0 0.0
    %532 = vmatpush1.xpose.msra.mxu0 0.0
    %533 = vmatprep.subr.mxu0 0.0
    %534 = vmatpush1.xpose.msra.mxu0 0.0
    %535 = vmatprep.subr.mxu0 0.0
    %536 = vmatpush1.xpose.msra.mxu0 0.0
    %537 = vmatprep.subr.mxu0 0.0
    %538 = vmatpush1.xpose.msra.mxu0 0.0
    %539 = vmatprep.subr.mxu0 0.0
    %540 = vmatpush1.xpose.msra.mxu0 0.0
    %541 = vmatprep.subr.mxu0 0.0
    %542 = vmatpush1.xpose.msra.mxu0 0.0
    %543 = vmatprep.subr.mxu0 0.0
    %544 = vmatpush1.xpose.msra.mxu0 0.0
    %545 = vmatprep.subr.mxu0 0.0
    %546 = vmatpush1.xpose.msra.mxu0 0.0
    %547 = vmatprep.subr.mxu0 0.0
    %548 = vmatpush1.xpose.msra.mxu0 0.0
    %549 = vmatprep.subr.mxu0 0.0
    %550 = vmatpush1.xpose.msra.mxu0 0.0
    %551 = vmatprep.subr.mxu0 0.0
    %552 = vmatpush1.xpose.msra.mxu0 0.0
    %553 = vmatprep.subr.mxu0 0.0
    %554 = vmatpush1.xpose.msra.mxu0 0.0
    %555 = vmatprep.subr.mxu0 0.0
    %556 = vmatpush1.xpose.msra.mxu0 0.0
    %557 = vmatprep.subr.mxu0 0.0
    %558 = vmatpush1.xpose.msra.mxu0 0.0
    %559 = vmatprep.subr.mxu0 0.0
    %560 = vmatpush1.xpose.msra.mxu0 0.0
    %561 = vmatprep.subr.mxu0 0.0
    %562 = vmatpush1.xpose.msra.mxu0 0.0
    %563 = vmatprep.subr.mxu0 0.0
    %564 = vmatpush1.xpose.msra.mxu0 0.0
    %565 = vmatprep.subr.mxu0 0.0
    %566 = vmatpush1.xpose.msra.mxu0 0.0
    %567 = vmatprep.subr.mxu0 0.0
    %568 = vmatpush1.xpose.msra.mxu0 0.0
    %569 = vmatprep.subr.mxu0 0.0
    %570 = vmatpush1.xpose.msra.mxu0 0.0
    %571 = vmatprep.subr.mxu0 0.0
    %572 = vmatpush1.xpose.msra.mxu0 0.0
    %573 = vmatprep.subr.mxu0 0.0
    %574 = vmatpush1.xpose.msra.mxu0 0.0
    %575 = vmatprep.subr.mxu0 0.0
    %576 = vmatpush1.xpose.msra.mxu0 0.0
    %577 = vmatprep.mubr.f32.mxu0 0.0
    %578 = vmatmul.mubr.f32.gmra.mrb[0].mxu0 %v505
    %v579 = vpop.f32.mrb[0].mxu0
    %v580 = vadd.f32 0.0, %v579
    %v581 = vpop.f32.mrb[0].mxu0
    %582 = vmatprep.mubr.f32.mxu0 0.0
    %583 = vmatmul.mubr.f32.gmra.mrb[0].mxu0 %v507
    %v584 = vpop.f32.mrb[0].mxu0
    %v585 = vadd.f32 0.0, %v584
    %v586 = vpop.f32.mrb[0].mxu0
    %587 = vdwg.mxu0
    %588 = vrot.lane.b32.xlu0 %v312, 104
    %v589 = vpop.permute.xlu0 %588
    %590 = vrot.lane.b32.xlu0 %v313, 104
    %v591 = vpop.permute.xlu0 %590
    %592 = vrot.lane.b32.xlu0 %v304, 72
    %v593 = vpop.permute.xlu0 %592
    %594 = vrot.lane.b32.xlu0 %v309, 72
    %v595 = vpop.permute.xlu0 %594
    %v596 = vsel %vm320, %v589, 0
    %v598 = vsel %vm320, %v591, 0
    %v600 = vsel %vm320, %v593, 0
    %v602 = vsel %vm320, %v595, 0
    %604 = vmatprep.subr.mxu0 0.0
    %605 = vmatpush1.xpose.msra.mxu0 %v600
    %606 = vmatprep.subr.mxu0 0.0
    %607 = vmatpush1.xpose.msra.mxu0 %v602
    %608 = vmatprep.subr.mxu0 0.0
    %609 = vmatpush1.xpose.msra.mxu0 0.0
    %610 = vmatprep.subr.mxu0 0.0
    %611 = vmatpush1.xpose.msra.mxu0 0.0
    %612 = vmatprep.subr.mxu0 0.0
    %613 = vmatpush1.xpose.msra.mxu0 0.0
    %614 = vmatprep.subr.mxu0 0.0
    %615 = vmatpush1.xpose.msra.mxu0 0.0
    %616 = vmatprep.subr.mxu0 0.0
    %617 = vmatpush1.xpose.msra.mxu0 0.0
    %618 = vmatprep.subr.mxu0 0.0
    %619 = vmatpush1.xpose.msra.mxu0 0.0
    %620 = vmatprep.subr.mxu0 0.0
    %621 = vmatpush1.xpose.msra.mxu0 0.0
    %622 = vmatprep.subr.mxu0 0.0
    %623 = vmatpush1.xpose.msra.mxu0 0.0
    %624 = vmatprep.subr.mxu0 0.0
    %625 = vmatpush1.xpose.msra.mxu0 0.0
    %626 = vmatprep.subr.mxu0 0.0
    %627 = vmatpush1.xpose.msra.mxu0 0.0
    %628 = vmatprep.subr.mxu0 0.0
    %629 = vmatpush1.xpose.msra.mxu0 0.0
    %630 = vmatprep.subr.mxu0 0.0
    %631 = vmatpush1.xpose.msra.mxu0 0.0
    %632 = vmatprep.subr.mxu0 0.0
    %633 = vmatpush1.xpose.msra.mxu0 0.0
    %634 = vmatprep.subr.mxu0 0.0
    %635 = vmatpush1.xpose.msra.mxu0 0.0
    %636 = vmatprep.subr.mxu0 0.0
    %637 = vmatpush1.xpose.msra.mxu0 0.0
    %638 = vmatprep.subr.mxu0 0.0
    %639 = vmatpush1.xpose.msra.mxu0 0.0
    %640 = vmatprep.subr.mxu0 0.0
    %641 = vmatpush1.xpose.msra.mxu0 0.0
    %642 = vmatprep.subr.mxu0 0.0
    %643 = vmatpush1.xpose.msra.mxu0 0.0
    %644 = vmatprep.subr.mxu0 0.0
    %645 = vmatpush1.xpose.msra.mxu0 0.0
    %646 = vmatprep.subr.mxu0 0.0
    %647 = vmatpush1.xpose.msra.mxu0 0.0
    %648 = vmatprep.subr.mxu0 0.0
    %649 = vmatpush1.xpose.msra.mxu0 0.0
    %650 = vmatprep.subr.mxu0 0.0
    %651 = vmatpush1.xpose.msra.mxu0 0.0
    %652 = vmatprep.subr.mxu0 0.0
    %653 = vmatpush1.xpose.msra.mxu0 0.0
    %654 = vmatprep.subr.mxu0 0.0
    %655 = vmatpush1.xpose.msra.mxu0 0.0
    %656 = vmatprep.subr.mxu0 0.0
    %657 = vmatpush1.xpose.msra.mxu0 0.0
    %658 = vmatprep.subr.mxu0 0.0
    %659 = vmatpush1.xpose.msra.mxu0 0.0
    %660 = vmatprep.subr.mxu0 0.0
    %661 = vmatpush1.xpose.msra.mxu0 0.0
    %662 = vmatprep.subr.mxu0 0.0
    %663 = vmatpush1.xpose.msra.mxu0 0.0
    %664 = vmatprep.subr.mxu0 0.0
    %665 = vmatpush1.xpose.msra.mxu0 0.0
    %666 = vmatprep.subr.mxu0 0.0
    %667 = vmatpush1.xpose.msra.mxu0 0.0
    %668 = vmatprep.mubr.f32.mxu0 0.0
    %669 = vmatmul.mubr.f32.gmra.mrb[0].mxu0 %v596
    %v670 = vpop.f32.mrb[0].mxu0
    %v671 = vadd.f32 0.0, %v670
    %v672 = vpop.f32.mrb[0].mxu0
    %673 = vmatprep.mubr.f32.mxu0 0.0
    %674 = vmatmul.mubr.f32.gmra.mrb[0].mxu0 %v598
    %v675 = vpop.f32.mrb[0].mxu0
    %v676 = vadd.f32 0.0, %v675
    %v677 = vpop.f32.mrb[0].mxu0
    %678 = vdwg.mxu0
    %v679 = vadd.f32 %v398, %v211
    %v680 = vadd.f32 %v403, %v212
    %v681 = vadd.f32 %v489, %v213
    %v682 = vadd.f32 %v494, %v214
    %v683 = vadd.f32 %v580, %v215
    %v684 = vadd.f32 %v585, %v216
    %v685 = vadd.f32 %v671, %v217
    %v686 = vadd.f32 %v676, %v218
    %vm687 = vcmask 130048
    %v688 = vsel %vm687, %v679, -inf
    %689 = vmax.xlane.f32.xlu0 %v688
    %v690 = vpop.xlane.xlu0 %689
    %v691 = vsel %vm687, %v680, -inf
    %692 = vmax.xlane.f32.xlu0 %v691
    %v693 = vpop.xlane.xlu0 %692
    %v694 = vsel %vm687, %v681, -inf
    %695 = vmax.xlane.f32.xlu0 %v694
    %v696 = vpop.xlane.xlu0 %695
    %v697 = vsel %vm687, %v682, -inf
    %698 = vmax.xlane.f32.xlu0 %v697
    %v699 = vpop.xlane.xlu0 %698
    %v700 = vsel %vm687, %v683, -inf
    %701 = vmax.xlane.f32.xlu0 %v700
    %v702 = vpop.xlane.xlu0 %701
    %v703 = vsel %vm687, %v684, -inf
    %704 = vmax.xlane.f32.xlu0 %v703
    %v705 = vpop.xlane.xlu0 %704
    %v706 = vsel %vm687, %v685, -inf
    %707 = vmax.xlane.f32.xlu0 %v706
    %v708 = vpop.xlane.xlu0 %707
    %v709 = vsel %vm687, %v686, -inf
    %710 = vmax.xlane.f32.xlu0 %v709
    %v711 = vpop.xlane.xlu0 %710
    %v712 = vsub.f32 %v679, %v690
    %v713 = vsub.f32 %v680, %v693
    %v714 = vsub.f32 %v681, %v696
    %v715 = vsub.f32 %v682, %v699
    %v716 = vsub.f32 %v683, %v702
    %v717 = vsub.f32 %v684, %v705
    %v718 = vsub.f32 %v685, %v708
    %v719 = vsub.f32 %v686, %v711
    %v720 = vmul.f32 %v712, 1.442695
    %v721 = vpow.pop %v720
    %v722 = vmul.f32 %v713, 1.442695
    %v723 = vpow.pop %v722
    %v724 = vmul.f32 %v714, 1.442695
    %v725 = vpow.pop %v724
    %v726 = vmul.f32 %v715, 1.442695
    %v727 = vpow.pop %v726
    %v728 = vmul.f32 %v716, 1.442695
    %v729 = vpow.pop %v728
    %v730 = vmul.f32 %v717, 1.442695
    %v731 = vpow.pop %v730
    %v732 = vmul.f32 %v718, 1.442695
    %v733 = vpow.pop %v732
    %v734 = vmul.f32 %v719, 1.442695
    %v735 = vpow.pop %v734
    %v736 = vsel %vm687, %v721, 0.0
    %737 = vadd.xlane.f32.xlu0 %v736
    %v738 = vpop.xlane.xlu0 %737
    %v739 = vsel %vm687, %v723, 0.0
    %740 = vadd.xlane.f32.xlu0 %v739
    %v741 = vpop.xlane.xlu0 %740
    %v742 = vsel %vm687, %v725, 0.0
    %743 = vadd.xlane.f32.xlu0 %v742
    %v744 = vpop.xlane.xlu0 %743
    %v745 = vsel %vm687, %v727, 0.0
    %746 = vadd.xlane.f32.xlu0 %v745
    %v747 = vpop.xlane.xlu0 %746
    %v748 = vsel %vm687, %v729, 0.0
    %749 = vadd.xlane.f32.xlu0 %v748
    %v750 = vpop.xlane.xlu0 %749
    %v751 = vsel %vm687, %v731, 0.0
    %752 = vadd.xlane.f32.xlu0 %v751
    %v753 = vpop.xlane.xlu0 %752
    %v754 = vsel %vm687, %v733, 0.0
    %755 = vadd.xlane.f32.xlu0 %v754
    %v756 = vpop.xlane.xlu0 %755
    %v757 = vsel %vm687, %v735, 0.0
    %758 = vadd.xlane.f32.xlu0 %v757
    %v759 = vpop.xlane.xlu0 %758
    %v760 = vrcp.pop %v738
    %v761 = vrcp.pop %v741
    %v762 = vrcp.pop %v744
    %v763 = vrcp.pop %v747
    %v764 = vrcp.pop %v750
    %v765 = vrcp.pop %v753
    %v766 = vrcp.pop %v756
    %v767 = vrcp.pop %v759
    %v768 = vmul.f32 %v721, %v760
    %v769 = vmul.f32 %v723, %v761
    %v770 = vmul.f32 %v725, %v762
    %v771 = vmul.f32 %v727, %v763
    %v772 = vmul.f32 %v729, %v764
    %v773 = vmul.f32 %v731, %v765
    %v774 = vmul.f32 %v733, %v766
    %v775 = vmul.f32 %v735, %v767
    %776 = vrot.lane.b32.xlu0 %v304, 64
    %v777 = vpop.permute.xlu0 %776
    %778 = vrot.lane.b32.xlu0 %v309, 64
    %v779 = vpop.permute.xlu0 %778
    %v783 = vsel %vm687, %v768, 0
    %v786 = vsel %vm687, %v769, 0
    %788 = vmatprep.subr.mxu0 0.0
    %789 = vmatpush1.msra.mxu0 %v777
    %790 = vmatprep.subr.mxu0 0.0
    %791 = vmatpush1.msra.mxu0 %v779
    %792 = vmatprep.subr.mxu0 0.0
    %793 = vmatpush1.msra.mxu0 0.0
    %794 = vmatprep.subr.mxu0 0.0
    %795 = vmatpush1.msra.mxu0 0.0
    %796 = vmatprep.subr.mxu0 0.0
    %797 = vmatpush1.msra.mxu0 0.0
    %798 = vmatprep.subr.mxu0 0.0
    %799 = vmatpush1.msra.mxu0 0.0
    %800 = vmatprep.subr.mxu0 0.0
    %801 = vmatpush1.msra.mxu0 0.0
    %802 = vmatprep.subr.mxu0 0.0
    %803 = vmatpush1.msra.mxu0 0.0
    %804 = vmatprep.subr.mxu0 0.0
    %805 = vmatpush1.msra.mxu0 0.0
    %806 = vmatprep.subr.mxu0 0.0
    %807 = vmatpush1.msra.mxu0 0.0
    %808 = vmatprep.subr.mxu0 0.0
    %809 = vmatpush1.msra.mxu0 0.0
    %810 = vmatprep.subr.mxu0 0.0
    %811 = vmatpush1.msra.mxu0 0.0
    %812 = vmatprep.subr.mxu0 0.0
    %813 = vmatpush1.msra.mxu0 0.0
    %814 = vmatprep.subr.mxu0 0.0
    %815 = vmatpush1.msra.mxu0 0.0
    %816 = vmatprep.subr.mxu0 0.0
    %817 = vmatpush1.msra.mxu0 0.0
    %818 = vmatprep.subr.mxu0 0.0
    %819 = vmatpush1.msra.mxu0 0.0
    %820 = vmatprep.subr.mxu0 0.0
    %821 = vmatpush1.msra.mxu0 0.0
    %822 = vmatprep.subr.mxu0 0.0
    %823 = vmatpush1.msra.mxu0 0.0
    %824 = vmatprep.subr.mxu0 0.0
    %825 = vmatpush1.msra.mxu0 0.0
    %826 = vmatprep.subr.mxu0 0.0
    %827 = vmatpush1.msra.mxu0 0.0
    %828 = vmatprep.subr.mxu0 0.0
    %829 = vmatpush1.msra.mxu0 0.0
    %830 = vmatprep.subr.mxu0 0.0
    %831 = vmatpush1.msra.mxu0 0.0
    %832 = vmatprep.subr.mxu0 0.0
    %833 = vmatpush1.msra.mxu0 0.0
    %834 = vmatprep.subr.mxu0 0.0
    %835 = vmatpush1.msra.mxu0 0.0
    %836 = vmatprep.subr.mxu0 0.0
    %837 = vmatpush1.msra.mxu0 0.0
    %838 = vmatprep.subr.mxu0 0.0
    %839 = vmatpush1.msra.mxu0 0.0
    %840 = vmatprep.subr.mxu0 0.0
    %841 = vmatpush1.msra.mxu0 0.0
    %842 = vmatprep.subr.mxu0 0.0
    %843 = vmatpush1.msra.mxu0 0.0
    %844 = vmatprep.subr.mxu0 0.0
    %845 = vmatpush1.msra.mxu0 0.0
    %846 = vmatprep.subr.mxu0 0.0
    %847 = vmatpush1.msra.mxu0 0.0
    %848 = vmatprep.subr.mxu0 0.0
    %849 = vmatpush1.msra.mxu0 0.0
    %850 = vmatprep.subr.mxu0 0.0
    %851 = vmatpush1.msra.mxu0 0.0
    %852 = vmatprep.mubr.f32.mxu0 0.0
    %853 = vmatmul.mubr.f32.gmra.mrb[0].mxu0 %v783
    %v854 = vpop.f32.mrb[0].mxu0
    %v855 = vadd.f32 0.0, %v854
    %v856 = vpop.f32.mrb[0].mxu0
    %857 = vmatprep.mubr.f32.mxu0 0.0
    %858 = vmatmul.mubr.f32.gmra.mrb[0].mxu0 %v786
    %v859 = vpop.f32.mrb[0].mxu0
    %v860 = vadd.f32 0.0, %v859
    %v861 = vpop.f32.mrb[0].mxu0
    %862 = vdwg.mxu0
    %863 = vrot.lane.b32.xlu0 %v304, 56
    %v864 = vpop.permute.xlu0 %863
    %865 = vrot.lane.b32.xlu0 %v309, 56
    %v866 = vpop.permute.xlu0 %865
    %v870 = vsel %vm687, %v770, 0
    %v873 = vsel %vm687, %v771, 0
    %875 = vmatprep.subr.mxu0 0.0
    %876 = vmatpush1.msra.mxu0 %v864
    %877 = vmatprep.subr.mxu0 0.0
    %878 = vmatpush1.msra.mxu0 %v866
    %879 = vmatprep.subr.mxu0 0.0
    %880 = vmatpush1.msra.mxu0 0.0
    %881 = vmatprep.subr.mxu0 0.0
    %882 = vmatpush1.msra.mxu0 0.0
    %883 = vmatprep.subr.mxu0 0.0
    %884 = vmatpush1.msra.mxu0 0.0
    %885 = vmatprep.subr.mxu0 0.0
    %886 = vmatpush1.msra.mxu0 0.0
    %887 = vmatprep.subr.mxu0 0.0
    %888 = vmatpush1.msra.mxu0 0.0
    %889 = vmatprep.subr.mxu0 0.0
    %890 = vmatpush1.msra.mxu0 0.0
    %891 = vmatprep.subr.mxu0 0.0
    %892 = vmatpush1.msra.mxu0 0.0
    %893 = vmatprep.subr.mxu0 0.0
    %894 = vmatpush1.msra.mxu0 0.0
    %895 = vmatprep.subr.mxu0 0.0
    %896 = vmatpush1.msra.mxu0 0.0
    %897 = vmatprep.subr.mxu0 0.0
    %898 = vmatpush1.msra.mxu0 0.0
    %899 = vmatprep.subr.mxu0 0.0
    %900 = vmatpush1.msra.mxu0 0.0
    %901 = vmatprep.subr.mxu0 0.0
    %902 = vmatpush1.msra.mxu0 0.0
    %903 = vmatprep.subr.mxu0 0.0
    %904 = vmatpush1.msra.mxu0 0.0
    %905 = vmatprep.subr.mxu0 0.0
    %906 = vmatpush1.msra.mxu0 0.0
    %907 = vmatprep.subr.mxu0 0.0
    %908 = vmatpush1.msra.mxu0 0.0
    %909 = vmatprep.subr.mxu0 0.0
    %910 = vmatpush1.msra.mxu0 0.0
    %911 = vmatprep.subr.mxu0 0.0
    %912 = vmatpush1.msra.mxu0 0.0
    %913 = vmatprep.subr.mxu0 0.0
    %914 = vmatpush1.msra.mxu0 0.0
    %915 = vmatprep.subr.mxu0 0.0
    %916 = vmatpush1.msra.mxu0 0.0
    %917 = vmatprep.subr.mxu0 0.0
    %918 = vmatpush1.msra.mxu0 0.0
    %919 = vmatprep.subr.mxu0 0.0
    %920 = vmatpush1.msra.mxu0 0.0
    %921 = vmatprep.subr.mxu0 0.0
    %922 = vmatpush1.msra.mxu0 0.0
    %923 = vmatprep.subr.mxu0 0.0
    %924 = vmatpush1.msra.mxu0 0.0
    %925 = vmatprep.subr.mxu0 0.0
    %926 = vmatpush1.msra.mxu0 0.0
    %927 = vmatprep.subr.mxu0 0.0
    %928 = vmatpush1.msra.mxu0 0.0
    %929 = vmatprep.subr.mxu0 0.0
    %930 = vmatpush1.msra.mxu0 0.0
    %931 = vmatprep.subr.mxu0 0.0
    %932 = vmatpush1.msra.mxu0 0.0
    %933 = vmatprep.subr.mxu0 0.0
    %934 = vmatpush1.msra.mxu0 0.0
    %935 = vmatprep.subr.mxu0 0.0
    %936 = vmatpush1.msra.mxu0 0.0
    %937 = vmatprep.subr.mxu0 0.0
    %938 = vmatpush1.msra.mxu0 0.0
    %939 = vmatprep.mubr.f32.mxu0 0.0
    %940 = vmatmul.mubr.f32.gmra.mrb[0].mxu0 %v870
    %v941 = vpop.f32.mrb[0].mxu0
    %v942 = vadd.f32 0.0, %v941
    %v943 = vpop.f32.mrb[0].mxu0
    %944 = vmatprep.mubr.f32.mxu0 0.0
    %945 = vmatmul.mubr.f32.gmra.mrb[0].mxu0 %v873
    %v946 = vpop.f32.mrb[0].mxu0
    %v947 = vadd.f32 0.0, %v946
    %v948 = vpop.f32.mrb[0].mxu0
    %949 = vdwg.mxu0
    %950 = vrot.lane.b32.xlu0 %v304, 48
    %v951 = vpop.permute.xlu0 %950
    %952 = vrot.lane.b32.xlu0 %v309, 48
    %v953 = vpop.permute.xlu0 %952
    %v957 = vsel %vm687, %v772, 0
    %v960 = vsel %vm687, %v773, 0
    %962 = vmatprep.subr.mxu0 0.0
    %963 = vmatpush1.msra.mxu0 %v951
    %964 = vmatprep.subr.mxu0 0.0
    %965 = vmatpush1.msra.mxu0 %v953
    %966 = vmatprep.subr.mxu0 0.0
    %967 = vmatpush1.msra.mxu0 0.0
    %968 = vmatprep.subr.mxu0 0.0
    %969 = vmatpush1.msra.mxu0 0.0
    %970 = vmatprep.subr.mxu0 0.0
    %971 = vmatpush1.msra.mxu0 0.0
    %972 = vmatprep.subr.mxu0 0.0
    %973 = vmatpush1.msra.mxu0 0.0
    %974 = vmatprep.subr.mxu0 0.0
    %975 = vmatpush1.msra.mxu0 0.0
    %976 = vmatprep.subr.mxu0 0.0
    %977 = vmatpush1.msra.mxu0 0.0
    %978 = vmatprep.subr.mxu0 0.0
    %979 = vmatpush1.msra.mxu0 0.0
    %980 = vmatprep.subr.mxu0 0.0
    %981 = vmatpush1.msra.mxu0 0.0
    %982 = vmatprep.subr.mxu0 0.0
    %983 = vmatpush1.msra.mxu0 0.0
    %984 = vmatprep.subr.mxu0 0.0
    %985 = vmatpush1.msra.mxu0 0.0
    %986 = vmatprep.subr.mxu0 0.0
    %987 = vmatpush1.msra.mxu0 0.0
    %988 = vmatprep.subr.mxu0 0.0
    %989 = vmatpush1.msra.mxu0 0.0
    %990 = vmatprep.subr.mxu0 0.0
    %991 = vmatpush1.msra.mxu0 0.0
    %992 = vmatprep.subr.mxu0 0.0
    %993 = vmatpush1.msra.mxu0 0.0
    %994 = vmatprep.subr.mxu0 0.0
    %995 = vmatpush1.msra.mxu0 0.0
    %996 = vmatprep.subr.mxu0 0.0
    %997 = vmatpush1.msra.mxu0 0.0
    %998 = vmatprep.subr.mxu0 0.0
    %999 = vmatpush1.msra.mxu0 0.0
    %1000 = vmatprep.subr.mxu0 0.0
    %1001 = vmatpush1.msra.mxu0 0.0
    %1002 = vmatprep.subr.mxu0 0.0
    %1003 = vmatpush1.msra.mxu0 0.0
    %1004 = vmatprep.subr.mxu0 0.0
    %1005 = vmatpush1.msra.mxu0 0.0
    %1006 = vmatprep.subr.mxu0 0.0
    %1007 = vmatpush1.msra.mxu0 0.0
    %1008 = vmatprep.subr.mxu0 0.0
    %1009 = vmatpush1.msra.mxu0 0.0
    %1010 = vmatprep.subr.mxu0 0.0
    %1011 = vmatpush1.msra.mxu0 0.0
    %1012 = vmatprep.subr.mxu0 0.0
    %1013 = vmatpush1.msra.mxu0 0.0
    %1014 = vmatprep.subr.mxu0 0.0
    %1015 = vmatpush1.msra.mxu0 0.0
    %1016 = vmatprep.subr.mxu0 0.0
    %1017 = vmatpush1.msra.mxu0 0.0
    %1018 = vmatprep.subr.mxu0 0.0
    %1019 = vmatpush1.msra.mxu0 0.0
    %1020 = vmatprep.subr.mxu0 0.0
    %1021 = vmatpush1.msra.mxu0 0.0
    %1022 = vmatprep.subr.mxu0 0.0
    %1023 = vmatpush1.msra.mxu0 0.0
    %1024 = vmatprep.subr.mxu0 0.0
    %1025 = vmatpush1.msra.mxu0 0.0
    %1026 = vmatprep.mubr.f32.mxu0 0.0
    %1027 = vmatmul.mubr.f32.gmra.mrb[0].mxu0 %v957
    %v1028 = vpop.f32.mrb[0].mxu0
    %v1029 = vadd.f32 0.0, %v1028
    %v1030 = vpop.f32.mrb[0].mxu0
    %1031 = vmatprep.mubr.f32.mxu0 0.0
    %1032 = vmatmul.mubr.f32.gmra.mrb[0].mxu0 %v960
    %v1033 = vpop.f32.mrb[0].mxu0
    %v1034 = vadd.f32 0.0, %v1033
    %v1035 = vpop.f32.mrb[0].mxu0
    %1036 = vdwg.mxu0
    %1037 = vrot.lane.b32.xlu0 %v304, 40
    %v1038 = vpop.permute.xlu0 %1037
    %1039 = vrot.lane.b32.xlu0 %v309, 40
    %v1040 = vpop.permute.xlu0 %1039
    %v1044 = vsel %vm687, %v774, 0
    %v1047 = vsel %vm687, %v775, 0
    %1049 = vmatprep.subr.mxu0 0.0
    %1050 = vmatpush1.msra.mxu0 %v1038
    %1051 = vmatprep.subr.mxu0 0.0
    %1052 = vmatpush1.msra.mxu0 %v1040
    %1053 = vmatprep.subr.mxu0 0.0
    %1054 = vmatpush1.msra.mxu0 0.0
    %1055 = vmatprep.subr.mxu0 0.0
    %1056 = vmatpush1.msra.mxu0 0.0
    %1057 = vmatprep.subr.mxu0 0.0
    %1058 = vmatpush1.msra.mxu0 0.0
    %1059 = vmatprep.subr.mxu0 0.0
    %1060 = vmatpush1.msra.mxu0 0.0
    %1061 = vmatprep.subr.mxu0 0.0
    %1062 = vmatpush1.msra.mxu0 0.0
    %1063 = vmatprep.subr.mxu0 0.0
    %1064 = vmatpush1.msra.mxu0 0.0
    %1065 = vmatprep.subr.mxu0 0.0
    %1066 = vmatpush1.msra.mxu0 0.0
    %1067 = vmatprep.subr.mxu0 0.0
    %1068 = vmatpush1.msra.mxu0 0.0
    %1069 = vmatprep.subr.mxu0 0.0
    %1070 = vmatpush1.msra.mxu0 0.0
    %1071 = vmatprep.subr.mxu0 0.0
    %1072 = vmatpush1.msra.mxu0 0.0
    %1073 = vmatprep.subr.mxu0 0.0
    %1074 = vmatpush1.msra.mxu0 0.0
    %1075 = vmatprep.subr.mxu0 0.0
    %1076 = vmatpush1.msra.mxu0 0.0
    %1077 = vmatprep.subr.mxu0 0.0
    %1078 = vmatpush1.msra.mxu0 0.0
    %1079 = vmatprep.subr.mxu0 0.0
    %1080 = vmatpush1.msra.mxu0 0.0
    %1081 = vmatprep.subr.mxu0 0.0
    %1082 = vmatpush1.msra.mxu0 0.0
    %1083 = vmatprep.subr.mxu0 0.0
    %1084 = vmatpush1.msra.mxu0 0.0
    %1085 = vmatprep.subr.mxu0 0.0
    %1086 = vmatpush1.msra.mxu0 0.0
    %1087 = vmatprep.subr.mxu0 0.0
    %1088 = vmatpush1.msra.mxu0 0.0
    %1089 = vmatprep.subr.mxu0 0.0
    %1090 = vmatpush1.msra.mxu0 0.0
    %1091 = vmatprep.subr.mxu0 0.0
    %1092 = vmatpush1.msra.mxu0 0.0
    %1093 = vmatprep.subr.mxu0 0.0
    %1094 = vmatpush1.msra.mxu0 0.0
    %1095 = vmatprep.subr.mxu0 0.0
    %1096 = vmatpush1.msra.mxu0 0.0
    %1097 = vmatprep.subr.mxu0 0.0
    %1098 = vmatpush1.msra.mxu0 0.0
    %1099 = vmatprep.subr.mxu0 0.0
    %1100 = vmatpush1.msra.mxu0 0.0
    %1101 = vmatprep.subr.mxu0 0.0
    %1102 = vmatpush1.msra.mxu0 0.0
    %1103 = vmatprep.subr.mxu0 0.0
    %1104 = vmatpush1.msra.mxu0 0.0
    %1105 = vmatprep.subr.mxu0 0.0
    %1106 = vmatpush1.msra.mxu0 0.0
    %1107 = vmatprep.subr.mxu0 0.0
    %1108 = vmatpush1.msra.mxu0 0.0
    %1109 = vmatprep.subr.mxu0 0.0
    %1110 = vmatpush1.msra.mxu0 0.0
    %1111 = vmatprep.subr.mxu0 0.0
    %1112 = vmatpush1.msra.mxu0 0.0
    %1113 = vmatprep.mubr.f32.mxu0 0.0
    %1114 = vmatmul.mubr.f32.gmra.mrb[0].mxu0 %v1044
    %v1115 = vpop.f32.mrb[0].mxu0
    %v1116 = vadd.f32 0.0, %v1115
    %v1117 = vpop.f32.mrb[0].mxu0
    %1118 = vmatprep.mubr.f32.mxu0 0.0
    %1119 = vmatmul.mubr.f32.gmra.mrb[0].mxu0 %v1047
    %v1120 = vpop.f32.mrb[0].mxu0
    %v1121 = vadd.f32 0.0, %v1120
    %v1122 = vpop.f32.mrb[0].mxu0
    %1123 = vdwg.mxu0
    %1126 = vrot.lane.b32.xlu0 %v942, 8
    %v1127 = vpop.permute.xlu0 %1126
    %1128 = vrot.lane.b32.xlu0 %v947, 8
    %v1129 = vpop.permute.xlu0 %1128
    %1134 = vrot.lane.b32.xlu0 %v1029, 16
    %v1135 = vpop.permute.xlu0 %1134
    %1136 = vrot.lane.b32.xlu0 %v1034, 16
    %v1137 = vpop.permute.xlu0 %1136
    %1142 = vrot.lane.b32.xlu0 %v1116, 24
    %v1143 = vpop.permute.xlu0 %1142
    %1144 = vrot.lane.b32.xlu0 %v1121, 24
    %v1145 = vpop.permute.xlu0 %1144
    %v1148 = vsel %vm320, %v855, %v1127
    %v1149 = vsel %vm320, %v860, %v1129
    %v1150 = vsel %vm687, %v1148, %v1135
    %v1151 = vsel %vm687, %v1149, %v1137
    %vm1152 = vcmask 195584
    %v1153 = vsel %vm1152, %v1150, %v1143
    %v1154 = vsel %vm1152, %v1151, %v1145
    %v1155 = vld [vmem:[%s7] sm:$0xff]
    %v1156 = vld [vmem:[%s7 + $0x8] sm:$0xff]
    %v1157 = vld [vmem:[%s7 + $0x10] sm:$0xff]
    %v1158 = vld [vmem:[%s7 + $0x18] sm:$0xff]
    %v1159 = vld [vmem:[#allocation4] sm:$0x1]
    %v1161 = vlaneseq
    %v1162 = vshrl.u32 %v1161, 7
    %v1163 = vsub.s32 0, %v1162
    %v1164 = vrot.slane %v1159, %v1163
    %v1167 = vsel %vm230, %v1153, 0
    %v1170 = vsel %vm230, %v1154, 0
    %1172 = vmatprep.subr.mxu0 0.0
    %1173 = vmatpush1.msra.mxu0 %v1155
    %1174 = vmatprep.subr.mxu0 0.0
    %1175 = vmatpush1.msra.mxu0 %v1156
    %1176 = vmatprep.subr.mxu0 0.0
    %1177 = vmatpush1.msra.mxu0 %v1157
    %1178 = vmatprep.subr.mxu0 0.0
    %1179 = vmatpush1.msra.mxu0 %v1158
    %1180 = vmatprep.subr.mxu0 0.0
    %1181 = vmatpush1.msra.mxu0 0.0
    %1182 = vmatprep.subr.mxu0 0.0
    %1183 = vmatpush1.msra.mxu0 0.0
    %1184 = vmatprep.subr.mxu0 0.0
    %1185 = vmatpush1.msra.mxu0 0.0
    %1186 = vmatprep.subr.mxu0 0.0
    %1187 = vmatpush1.msra.mxu0 0.0
    %1188 = vmatprep.subr.mxu0 0.0
    %1189 = vmatpush1.msra.mxu0 0.0
    %1190 = vmatprep.subr.mxu0 0.0
    %1191 = vmatpush1.msra.mxu0 0.0
    %1192 = vmatprep.subr.mxu0 0.0
    %1193 = vmatpush1.msra.mxu0 0.0
    %1194 = vmatprep.subr.mxu0 0.0
    %1195 = vmatpush1.msra.mxu0 0.0
    %1196 = vmatprep.subr.mxu0 0.0
    %1197 = vmatpush1.msra.mxu0 0.0
    %1198 = vmatprep.subr.mxu0 0.0
    %1199 = vmatpush1.msra.mxu0 0.0
    %1200 = vmatprep.subr.mxu0 0.0
    %1201 = vmatpush1.msra.mxu0 0.0
    %1202 = vmatprep.subr.mxu0 0.0
    %1203 = vmatpush1.msra.mxu0 0.0
    %1204 = vmatprep.subr.mxu0 0.0
    %1205 = vmatpush1.msra.mxu0 0.0
    %1206 = vmatprep.subr.mxu0 0.0
    %1207 = vmatpush1.msra.mxu0 0.0
    %1208 = vmatprep.subr.mxu0 0.0
    %1209 = vmatpush1.msra.mxu0 0.0
    %1210 = vmatprep.subr.mxu0 0.0
    %1211 = vmatpush1.msra.mxu0 0.0
    %1212 = vmatprep.subr.mxu0 0.0
    %1213 = vmatpush1.msra.mxu0 0.0
    %1214 = vmatprep.subr.mxu0 0.0
    %1215 = vmatpush1.msra.mxu0 0.0
    %1216 = vmatprep.subr.mxu0 0.0
    %1217 = vmatpush1.msra.mxu0 0.0
    %1218 = vmatprep.subr.mxu0 0.0
    %1219 = vmatpush1.msra.mxu0 0.0
    %1220 = vmatprep.subr.mxu0 0.0
    %1221 = vmatpush1.msra.mxu0 0.0
    %1222 = vmatprep.subr.mxu0 0.0
    %1223 = vmatpush1.msra.mxu0 0.0
    %1224 = vmatprep.subr.mxu0 0.0
    %1225 = vmatpush1.msra.mxu0 0.0
    %1226 = vmatprep.subr.mxu0 0.0
    %1227 = vmatpush1.msra.mxu0 0.0
    %1228 = vmatprep.subr.mxu0 0.0
    %1229 = vmatpush1.msra.mxu0 0.0
    %1230 = vmatprep.subr.mxu0 0.0
    %1231 = vmatpush1.msra.mxu0 0.0
    %1232 = vmatprep.subr.mxu0 0.0
    %1233 = vmatpush1.msra.mxu0 0.0
    %1234 = vmatprep.subr.mxu0 0.0
    %1235 = vmatpush1.msra.mxu0 0.0
    %1236 = vmatprep.mubr.f32.mxu0 0.0
    %1237 = vmatmul.mubr.f32.gmra.mrb[0].mxu0 %v1167
    %v1238 = vpop.f32.mrb[0].mxu0
    %v1239 = vadd.f32 %v1164, %v1238
    %v1240 = vpop.f32.mrb[0].mxu0
    %1241 = vmatprep.mubr.f32.mxu0 0.0
    %1242 = vmatmul.mubr.f32.gmra.mrb[0].mxu0 %v1170
    %v1243 = vpop.f32.mrb[0].mxu0
    %v1244 = vadd.f32 %v1164, %v1243
    %v1245 = vpop.f32.mrb[0].mxu0
    %1246 = vdwg.mxu0
    %v1247 = vadd.f32 %v209, %v1239
    %v1248 = vadd.f32 %v210, %v1244
    %v1249 = vsel %vm230, %v1247, 0.0
    %1250 = vadd.xlane.f32.xlu0 %v1249
    %v1251 = vpop.xlane.xlu0 %1250
    %v1252 = vsel %vm230, %v1248, 0.0
    %1253 = vadd.xlane.f32.xlu0 %v1252
    %v1254 = vpop.xlane.xlu0 %1253
    %v1255 = vrcp.pop 32.0
    %v1256 = vmul.f32 %v1251, %v1255
    %v1257 = vmul.f32 %v1254, %v1255
    %v1258 = vsub.f32 %v1247, %v1256
    %v1259 = vsub.f32 %v1248, %v1257
    %v1260 = vmul.f32 %v1258, %v1258
    %v1261 = vmul.f32 %v1259, %v1259
    %v1262 = vsel %vm230, %v1260, 0.0
    %1263 = vadd.xlane.f32.xlu0 %v1262
    %v1264 = vpop.xlane.xlu0 %1263
    %v1265 = vsel %vm230, %v1261, 0.0
    %1266 = vadd.xlane.f32.xlu0 %v1265
    %v1267 = vpop.xlane.xlu0 %1266
    %v1268 = vmul.f32 %v1264, %v1255
    %v1269 = vmul.f32 %v1267, %v1255
    %v1270 = vadd.f32 %v1268, 1e-05
    %v1271 = vadd.f32 %v1269, 1e-05
    %v1272 = vrsqrt.pop %v1270
    %v1273 = vrsqrt.pop %v1271
    %v1274 = vmul.f32 %v1258, %v1272
    %v1275 = vmul.f32 %v1259, %v1273
    %v1276 = vld [vmem:[%s9] sm:$0xff]
    %v1277 = vld [vmem:[%s9 + $0x8] sm:$0xff]
    %v1278 = vld [vmem:[%s9 + $0x10] sm:$0xff]
    %v1279 = vld [vmem:[%s9 + $0x18] sm:$0xff]
    %v1280 = vld [vmem:[#allocation6] sm:$0x1]
    %v1282 = vlaneseq
    %v1283 = vshrl.u32 %v1282, 7
    %v1284 = vsub.s32 0, %v1283
    %v1285 = vrot.slane %v1280, %v1284
    %v1288 = vsel %vm230, %v1274, 0
    %v1291 = vsel %vm230, %v1275, 0
    %1293 = vmatprep.subr.mxu0 0.0
    %1294 = vmatpush1.msra.mxu0 %v1276
    %1295 = vmatprep.subr.mxu0 0.0
    %1296 = vmatpush1.msra.mxu0 %v1277
    %1297 = vmatprep.subr.mxu0 0.0
    %1298 = vmatpush1.msra.mxu0 %v1278
    %1299 = vmatprep.subr.mxu0 0.0
    %1300 = vmatpush1.msra.mxu0 %v1279
    %1301 = vmatprep.subr.mxu0 0.0
    %1302 = vmatpush1.msra.mxu0 0.0
    %1303 = vmatprep.subr.mxu0 0.0
    %1304 = vmatpush1.msra.mxu0 0.0
    %1305 = vmatprep.subr.mxu0 0.0
    %1306 = vmatpush1.msra.mxu0 0.0
    %1307 = vmatprep.subr.mxu0 0.0
    %1308 = vmatpush1.msra.mxu0 0.0
    %1309 = vmatprep.subr.mxu0 0.0
    %1310 = vmatpush1.msra.mxu0 0.0
    %1311 = vmatprep.subr.mxu0 0.0
    %1312 = vmatpush1.msra.mxu0 0.0
    %1313 = vmatprep.subr.mxu0 0.0
    %1314 = vmatpush1.msra.mxu0 0.0
    %1315 = vmatprep.subr.mxu0 0.0
    %1316 = vmatpush1.msra.mxu0 0.0
    %1317 = vmatprep.subr.mxu0 0.0
    %1318 = vmatpush1.msra.mxu0 0.0
    %1319 = vmatprep.subr.mxu0 0.0
    %1320 = vmatpush1.msra.mxu0 0.0
    %1321 = vmatprep.subr.mxu0 0.0
    %1322 = vmatpush1.msra.mxu0 0.0
    %1323 = vmatprep.subr.mxu0 0.0
    %1324 = vmatpush1.msra.mxu0 0.0
    %1325 = vmatprep.subr.mxu0 0.0
    %1326 = vmatpush1.msra.mxu0 0.0
    %1327 = vmatprep.subr.mxu0 0.0
    %1328 = vmatpush1.msra.mxu0 0.0
    %1329 = vmatprep.subr.mxu0 0.0
    %1330 = vmatpush1.msra.mxu0 0.0
    %1331 = vmatprep.subr.mxu0 0.0
    %1332 = vmatpush1.msra.mxu0 0.0
    %1333 = vmatprep.subr.mxu0 0.0
    %1334 = vmatpush1.msra.mxu0 0.0
    %1335 = vmatprep.subr.mxu0 0.0
    %1336 = vmatpush1.msra.mxu0 0.0
    %1337 = vmatprep.subr.mxu0 0.0
    %1338 = vmatpush1.msra.mxu0 0.0
    %1339 = vmatprep.subr.mxu0 0.0
    %1340 = vmatpush1.msra.mxu0 0.0
    %1341 = vmatprep.subr.mxu0 0.0
    %1342 = vmatpush1.msra.mxu0 0.0
    %1343 = vmatprep.subr.mxu0 0.0
    %1344 = vmatpush1.msra.mxu0 0.0
    %1345 = vmatprep.subr.mxu0 0.0
    %1346 = vmatpush1.msra.mxu0 0.0
    %1347 = vmatprep.subr.mxu0 0.0
    %1348 = vmatpush1.msra.mxu0 0.0
    %1349 = vmatprep.subr.mxu0 0.0
    %1350 = vmatpush1.msra.mxu0 0.0
    %1351 = vmatprep.subr.mxu0 0.0
    %1352 = vmatpush1.msra.mxu0 0.0
    %1353 = vmatprep.subr.mxu0 0.0
    %1354 = vmatpush1.msra.mxu0 0.0
    %1355 = vmatprep.subr.mxu0 0.0
    %1356 = vmatpush1.msra.mxu0 0.0
    %1357 = vmatprep.mubr.f32.mxu0 0.0
    %1358 = vmatmul.mubr.f32.gmra.mrb[0].mxu0 %v1288
    %v1359 = vpop.f32.mrb[0].mxu0
    %v1360 = vadd.f32 %v1285, %v1359
    %v1361 = vpop.f32.mrb[0].mxu0
    %1362 = vmatprep.mubr.f32.mxu0 0.0
    %1363 = vmatmul.mubr.f32.gmra.mrb[0].mxu0 %v1291
    %v1364 = vpop.f32.mrb[0].mxu0
    %v1365 = vadd.f32 %v1285, %v1364
    %v1366 = vpop.f32.mrb[0].mxu0
    %1367 = vdwg.mxu0
    %v1368 = vmul.f32 %v1360, 0.5
    %v1369 = vmul.f32 %v1365, 0.5
    %v1370 = vmul.f32 %v1360, 0.70710677
    %v1371 = vmul.f32 %v1365, 0.70710677
    %v1372 = verf.f32.pop %v1370
    %v1373 = verf.f32.pop %v1371
    %v1374 = vadd.f32 %v1372, 1.0
    %v1375 = vadd.f32 %v1373, 1.0
    %v1376 = vmul.f32 %v1368, %v1374
    %v1377 = vmul.f32 %v1369, %v1375
    %v1378 = vld [vmem:[%s11] sm:$0xff]
    %v1379 = vld [vmem:[%s11 + $0x8] sm:$0xff]
    %v1380 = vld [vmem:[%s11 + $0x10] sm:$0xff]
    %v1381 = vld [vmem:[%s11 + $0x18] sm:$0xff]
    %v1382 = vld [vmem:[%s11 + $0x20] sm:$0xff]
    %v1383 = vld [vmem:[%s11 + $0x28] sm:$0xff]
    %v1384 = vld [vmem:[%s11 + $0x30] sm:$0xff]
    %v1385 = vld [vmem:[%s11 + $0x38] sm:$0xff]
    %v1386 = vld [vmem:[#allocation7] sm:$0x1]
    %v1388 = vlaneseq
    %v1389 = vshrl.u32 %v1388, 7
    %v1390 = vsub.s32 0, %v1389
    %v1391 = vrot.slane %v1386, %v1390
    %vm1393 = vcmask 523264
    %v1395 = vsel %vm1393, %v1376, 0
    %v1398 = vsel %vm1393, %v1377, 0
    %1400 = vmatprep.subr.mxu0 0.0
    %1401 = vmatpush1.msra.mxu0 %v1378
    %1402 = vmatprep.subr.mxu0 0.0
    %1403 = vmatpush1.msra.mxu0 %v1379
    %1404 = vmatprep.subr.mxu0 0.0
    %1405 = vmatpush1.msra.mxu0 %v1380
    %1406 = vmatprep.subr.mxu0 0.0
    %1407 = vmatpush1.msra.mxu0 %v1381
    %1408 = vmatprep.subr.mxu0 0.0
    %1409 = vmatpush1.msra.mxu0 %v1382
    %1410 = vmatprep.subr.mxu0 0.0
    %1411 = vmatpush1.msra.mxu0 %v1383
    %1412 = vmatprep.subr.mxu0 0.0
    %1413 = vmatpush1.msra.mxu0 %v1384
    %1414 = vmatprep.subr.mxu0 0.0
    %1415 = vmatpush1.msra.mxu0 %v1385
    %1416 = vmatprep.subr.mxu0 0.0
    %1417 = vmatpush1.msra.mxu0 0.0
    %1418 = vmatprep.subr.mxu0 0.0
    %1419 = vmatpush1.msra.mxu0 0.0
    %1420 = vmatprep.subr.mxu0 0.0
    %1421 = vmatpush1.msra.mxu0 0.0
    %1422 = vmatprep.subr.mxu0 0.0
    %1423 = vmatpush1.msra.mxu0 0.0
    %1424 = vmatprep.subr.mxu0 0.0
    %1425 = vmatpush1.msra.mxu0 0.0
    %1426 = vmatprep.subr.mxu0 0.0
    %1427 = vmatpush1.msra.mxu0 0.0
    %1428 = vmatprep.subr.mxu0 0.0
    %1429 = vmatpush1.msra.mxu0 0.0
    %1430 = vmatprep.subr.mxu0 0.0
    %1431 = vmatpush1.msra.mxu0 0.0
    %1432 = vmatprep.subr.mxu0 0.0
    %1433 = vmatpush1.msra.mxu0 0.0
    %1434 = vmatprep.subr.mxu0 0.0
    %1435 = vmatpush1.msra.mxu0 0.0
    %1436 = vmatprep.subr.mxu0 0.0
    %1437 = vmatpush1.msra.mxu0 0.0
    %1438 = vmatprep.subr.mxu0 0.0
    %1439 = vmatpush1.msra.mxu0 0.0
    %1440 = vmatprep.subr.mxu0 0.0
    %1441 = vmatpush1.msra.mxu0 0.0
    %1442 = vmatprep.subr.mxu0 0.0
    %1443 = vmatpush1.msra.mxu0 0.0
    %1444 = vmatprep.subr.mxu0 0.0
    %1445 = vmatpush1.msra.mxu0 0.0
    %1446 = vmatprep.subr.mxu0 0.0
    %1447 = vmatpush1.msra.mxu0 0.0
    %1448 = vmatprep.subr.mxu0 0.0
    %1449 = vmatpush1.msra.mxu0 0.0
    %1450 = vmatprep.subr.mxu0 0.0
    %1451 = vmatpush1.msra.mxu0 0.0
    %1452 = vmatprep.subr.mxu0 0.0
    %1453 = vmatpush1.msra.mxu0 0.0
    %1454 = vmatprep.subr.mxu0 0.0
    %1455 = vmatpush1.msra.mxu0 0.0
    %1456 = vmatprep.subr.mxu0 0.0
    %1457 = vmatpush1.msra.mxu0 0.0
    %1458 = vmatprep.subr.mxu0 0.0
    %1459 = vmatpush1.msra.mxu0 0.0
    %1460 = vmatprep.subr.mxu0 0.0
    %1461 = vmatpush1.msra.mxu0 0.0
    %1462 = vmatprep.subr.mxu0 0.0
    %1463 = vmatpush1.msra.mxu0 0.0
    %1464 = vmatprep.mubr.f32.mxu0 0.0
    %1465 = vmatmul.mubr.f32.gmra.mrb[0].mxu0 %v1395
    %v1466 = vpop.f32.mrb[0].mxu0
    %v1467 = vadd.f32 %v1391, %v1466
    %v1468 = vpop.f32.mrb[0].mxu0
    %1469 = vmatprep.mubr.f32.mxu0 0.0
    %1470 = vmatmul.mubr.f32.gmra.mrb[0].mxu0 %v1398
    %v1471 = vpop.f32.mrb[0].mxu0
    %v1472 = vadd.f32 %v1391, %v1471
    %v1473 = vpop.f32.mrb[0].mxu0
    %1474 = vdwg.mxu0
    %v1475 = vadd.f32 %v1274, %v1467
    %v1476 = vadd.f32 %v1275, %v1472
    %v1477 = vsel %vm230, %v1475, 0.0
    %1478 = vadd.xlane.f32.xlu0 %v1477
    %v1479 = vpop.xlane.xlu0 %1478
    %v1480 = vsel %vm230, %v1476, 0.0
    %1481 = vadd.xlane.f32.xlu0 %v1480
    %v1482 = vpop.xlane.xlu0 %1481
    %v1483 = vmul.f32 %v1479, %v1255
    %v1484 = vmul.f32 %v1482, %v1255
    %v1485 = vsub.f32 %v1475, %v1483
    %v1486 = vsub.f32 %v1476, %v1484
    %v1487 = vmul.f32 %v1485, %v1485
    %v1488 = vmul.f32 %v1486, %v1486
    %v1489 = vsel %vm230, %v1487, 0.0
    %1490 = vadd.xlane.f32.xlu0 %v1489
    %v1491 = vpop.xlane.xlu0 %1490
    %v1492 = vsel %vm230, %v1488, 0.0
    %1493 = vadd.xlane.f32.xlu0 %v1492
    %v1494 = vpop.xlane.xlu0 %1493
    %v1495 = vmul.f32 %v1491, %v1255
    %v1496 = vmul.f32 %v1494, %v1255
    %v1497 = vadd.f32 %v1495, 1e-05
    %v1498 = vadd.f32 %v1496, 1e-05
    %v1499 = vrsqrt.pop %v1497
    %v1500 = vrsqrt.pop %v1498
    %v1501 = vmul.f32 %v1485, %v1499
    %v1502 = vmul.f32 %v1486, %v1500
    %s1503 = scalar_lea.vmem %s5, 32
    %v1504 = vld [vmem:[%s1503] sm:$0xff]
    %v1505 = vld [vmem:[%s1503 + $0x8] sm:$0xff]
    %v1506 = vld [vmem:[%s1503 + $0x10] sm:$0xff]
    %v1507 = vld [vmem:[%s1503 + $0x18] sm:$0xff]
    %s1508 = scalar_lea.vmem %s6, 1
    %v1509 = vld [vmem:[%s1508] sm:$0x1]
    %v1511 = vlaneseq
    %v1512 = vshrl.u32 %v1511, 7
    %v1513 = vsub.s32 0, %v1512
    %v1514 = vrot.slane %v1509, %v1513
    %v1517 = vsel %vm230, %v1501, 0
    %v1520 = vsel %vm230, %v1502, 0
    %1522 = vmatprep.subr.mxu0 0.0
    %1523 = vmatpush1.msra.mxu0 %v1504
    %1524 = vmatprep.subr.mxu0 0.0
    %1525 = vmatpush1.msra.mxu0 %v1505
    %1526 = vmatprep.subr.mxu0 0.0
    %1527 = vmatpush1.msra.mxu0 %v1506
    %1528 = vmatprep.subr.mxu0 0.0
    %1529 = vmatpush1.msra.mxu0 %v1507
    %1530 = vmatprep.subr.mxu0 0.0
    %1531 = vmatpush1.msra.mxu0 0.0
    %1532 = vmatprep.subr.mxu0 0.0
    %1533 = vmatpush1.msra.mxu0 0.0
    %1534 = vmatprep.subr.mxu0 0.0
    %1535 = vmatpush1.msra.mxu0 0.0
    %1536 = vmatprep.subr.mxu0 0.0
    %1537 = vmatpush1.msra.mxu0 0.0
    %1538 = vmatprep.subr.mxu0 0.0
    %1539 = vmatpush1.msra.mxu0 0.0
    %1540 = vmatprep.subr.mxu0 0.0
    %1541 = vmatpush1.msra.mxu0 0.0
    %1542 = vmatprep.subr.mxu0 0.0
    %1543 = vmatpush1.msra.mxu0 0.0
    %1544 = vmatprep.subr.mxu0 0.0
    %1545 = vmatpush1.msra.mxu0 0.0
    %1546 = vmatprep.subr.mxu0 0.0
    %1547 = vmatpush1.msra.mxu0 0.0
    %1548 = vmatprep.subr.mxu0 0.0
    %1549 = vmatpush1.msra.mxu0 0.0
    %1550 = vmatprep.subr.mxu0 0.0
    %1551 = vmatpush1.msra.mxu0 0.0
    %1552 = vmatprep.subr.mxu0 0.0
    %1553 = vmatpush1.msra.mxu0 0.0
    %1554 = vmatprep.subr.mxu0 0.0
    %1555 = vmatpush1.msra.mxu0 0.0
    %1556 = vmatprep.subr.mxu0 0.0
    %1557 = vmatpush1.msra.mxu0 0.0
    %1558 = vmatprep.subr.mxu0 0.0
    %1559 = vmatpush1.msra.mxu0 0.0
    %1560 = vmatprep.subr.mxu0 0.0
    %1561 = vmatpush1.msra.mxu0 0.0
    %1562 = vmatprep.subr.mxu0 0.0
    %1563 = vmatpush1.msra.mxu0 0.0
    %1564 = vmatprep.subr.mxu0 0.0
    %1565 = vmatpush1.msra.mxu0 0.0
    %1566 = vmatprep.subr.mxu0 0.0
    %1567 = vmatpush1.msra.mxu0 0.0
    %1568 = vmatprep.subr.mxu0 0.0
    %1569 = vmatpush1.msra.mxu0 0.0
    %1570 = vmatprep.subr.mxu0 0.0
    %1571 = vmatpush1.msra.mxu0 0.0
    %1572 = vmatprep.subr.mxu0 0.0
    %1573 = vmatpush1.msra.mxu0 0.0
    %1574 = vmatprep.subr.mxu0 0.0
    %1575 = vmatpush1.msra.mxu0 0.0
    %1576 = vmatprep.subr.mxu0 0.0
    %1577 = vmatpush1.msra.mxu0 0.0
    %1578 = vmatprep.subr.mxu0 0.0
    %1579 = vmatpush1.msra.mxu0 0.0
    %1580 = vmatprep.subr.mxu0 0.0
    %1581 = vmatpush1.msra.mxu0 0.0
    %1582 = vmatprep.subr.mxu0 0.0
    %1583 = vmatpush1.msra.mxu0 0.0
    %1584 = vmatprep.subr.mxu0 0.0
    %1585 = vmatpush1.msra.mxu0 0.0
    %1586 = vmatprep.mubr.f32.mxu0 0.0
    %1587 = vmatmul.mubr.f32.gmra.mrb[0].mxu0 %v1517
    %v1588 = vpop.f32.mrb[0].mxu0
    %v1589 = vadd.f32 %v1514, %v1588
    %v1590 = vpop.f32.mrb[0].mxu0
    %1591 = vmatprep.mubr.f32.mxu0 0.0
    %1592 = vmatmul.mubr.f32.gmra.mrb[0].mxu0 %v1520
    %v1593 = vpop.f32.mrb[0].mxu0
    %v1594 = vadd.f32 %v1514, %v1593
    %v1595 = vpop.f32.mrb[0].mxu0
    %1596 = vdwg.mxu0
    %v1597 = vmul.f32 %v1589, 0.35355338
    %v1598 = vmul.f32 %v1594, 0.35355338
    %1601 = vrot.lane.b32.xlu0 %v1589, 96
    %v1602 = vpop.permute.xlu0 %1601
    %1603 = vrot.lane.b32.xlu0 %v1594, 96
    %v1604 = vpop.permute.xlu0 %1603
    %v1606 = vsel %vm320, %v1597, 0
    %v1609 = vsel %vm320, %v1598, 0
    %v1611 = vsel %vm320, %v1602, 0
    %v1613 = vsel %vm320, %v1604, 0
    %1615 = vmatprep.subr.mxu0 0.0
    %1616 = vmatpush1.xpose.msra.mxu0 %v1611
    %1617 = vmatprep.subr.mxu0 0.0
    %1618 = vmatpush1.xpose.msra.mxu0 %v1613
    %1619 = vmatprep.subr.mxu0 0.0
    %1620 = vmatpush1.xpose.msra.mxu0 0.0
    %1621 = vmatprep.subr.mxu0 0.0
    %1622 = vmatpush1.xpose.msra.mxu0 0.0
    %1623 = vmatprep.subr.mxu0 0.0
    %1624 = vmatpush1.xpose.msra.mxu0 0.0
    %1625 = vmatprep.subr.mxu0 0.0
    %1626 = vmatpush1.xpose.msra.mxu0 0.0
    %1627 = vmatprep.subr.mxu0 0.0
    %1628 = vmatpush1.xpose.msra.mxu0 0.0
    %1629 = vmatprep.subr.mxu0 0.0
    %1630 = vmatpush1.xpose.msra.mxu0 0.0
    %1631 = vmatprep.subr.mxu0 0.0
    %1632 = vmatpush1.xpose.msra.mxu0 0.0
    %1633 = vmatprep.subr.mxu0 0.0
    %1634 = vmatpush1.xpose.msra.mxu0 0.0
    %1635 = vmatprep.subr.mxu0 0.0
    %1636 = vmatpush1.xpose.msra.mxu0 0.0
    %1637 = vmatprep.subr.mxu0 0.0
    %1638 = vmatpush1.xpose.msra.mxu0 0.0
    %1639 = vmatprep.subr.mxu0 0.0
    %1640 = vmatpush1.xpose.msra.mxu0 0.0
    %1641 = vmatprep.subr.mxu0 0.0
    %1642 = vmatpush1.xpose.msra.mxu0 0.0
    %1643 = vmatprep.subr.mxu0 0.0
    %1644 = vmatpush1.xpose.msra.mxu0 0.0
    %1645 = vmatprep.subr.mxu0 0.0
    %1646 = vmatpush1.xpose.msra.mxu0 0.0
    %1647 = vmatprep.subr.mxu0 0.0
    %1648 = vmatpush1.xpose.msra.mxu0 0.0
    %1649 = vmatprep.subr.mxu0 0.0
    %1650 = vmatpush1.xpose.msra.mxu0 0.0
    %1651 = vmatprep.subr.mxu0 0.0
    %1652 = vmatpush1.xpose.msra.mxu0 0.0
    %1653 = vmatprep.subr.mxu0 0.0
    %1654 = vmatpush1.xpose.msra.mxu0 0.0
    %1655 = vmatprep.subr.mxu0 0.0
    %1656 = vmatpush1.xpose.msra.mxu0 0.0
    %1657 = vmatprep.subr.mxu0 0.0
    %1658 = vmatpush1.xpose.msra.mxu0 0.0
    %1659 = vmatprep.subr.mxu0 0.0
    %1660 = vmatpush1.xpose.msra.mxu0 0.0
    %1661 = vmatprep.subr.mxu0 0.0
    %1662 = vmatpush1.xpose.msra.mxu0 0.0
    %1663 = vmatprep.subr.mxu0 0.0
    %1664 = vmatpush1.xpose.msra.mxu0 0.0
    %1665 = vmatprep.subr.mxu0 0.0
    %1666 = vmatpush1.xpose.msra.mxu0 0.0
    %1667 = vmatprep.subr.mxu0 0.0
    %1668 = vmatpush1.xpose.msra.mxu0 0.0
    %1669 = vmatprep.subr.mxu0 0.0
    %1670 = vmatpush1.xpose.msra.mxu0 0.0
    %1671 = vmatprep.subr.mxu0 0.0
    %1672 = vmatpush1.xpose.msra.mxu0 0.0
    %1673 = vmatprep.subr.mxu0 0.0
    %1674 = vmatpush1.xpose.msra.mxu0 0.0
    %1675 = vmatprep.subr.mxu0 0.0
    %1676 = vmatpush1.xpose.msra.mxu0 0.0
    %1677 = vmatprep.subr.mxu0 0.0
    %1678 = vmatpush1.xpose.msra.mxu0 0.0
    %1679 = vmatprep.mubr.f32.mxu0 0.0
    %1680 = vmatmul.mubr.f32.gmra.mrb[0].mxu0 %v1606
    %v1681 = vpop.f32.mrb[0].mxu0
    %v1682 = vadd.f32 0.0, %v1681
    %v1683 = vpop.f32.mrb[0].mxu0
    %1684 = vmatprep.mubr.f32.mxu0 0.0
    %1685 = vmatmul.mubr.f32.gmra.mrb[0].mxu0 %v1609
    %v1686 = vpop.f32.mrb[0].mxu0
    %v1687 = vadd.f32 0.0, %v1686
    %v1688 = vpop.f32.mrb[0].mxu0
    %1689 = vdwg.mxu0
    %1690 = vrot.lane.b32.xlu0 %v1597, 120
    %v1691 = vpop.permute.xlu0 %1690
    %1692 = vrot.lane.b32.xlu0 %v1598, 120
    %v1693 = vpop.permute.xlu0 %1692
    %1694 = vrot.lane.b32.xlu0 %v1589, 88
    %v1695 = vpop.permute.xlu0 %1694
    %1696 = vrot.lane.b32.xlu0 %v1594, 88
    %v1697 = vpop.permute.xlu0 %1696
    %v1698 = vsel %vm320, %v1691, 0
    %v1700 = vsel %vm320, %v1693, 0
    %v1702 = vsel %vm320, %v1695, 0
    %v1704 = vsel %vm320, %v1697, 0
    %1706 = vmatprep.subr.mxu0 0.0
    %1707 = vmatpush1.xpose.msra.mxu0 %v1702
    %1708 = vmatprep.subr.mxu0 0.0
    %1709 = vmatpush1.xpose.msra.mxu0 %v1704
    %1710 = vmatprep.subr.mxu0 0.0
    %1711 = vmatpush1.xpose.msra.mxu0 0.0
    %1712 = vmatprep.subr.mxu0 0.0
    %1713 = vmatpush1.xpose.msra.mxu0 0.0
    %1714 = vmatprep.subr.mxu0 0.0
    %1715 = vmatpush1.xpose.msra.mxu0 0.0
    %1716 = vmatprep.subr.mxu0 0.0
    %1717 = vmatpush1.xpose.msra.mxu0 0.0
    %1718 = vmatprep.subr.mxu0 0.0
    %1719 = vmatpush1.xpose.msra.mxu0 0.0
    %1720 = vmatprep.subr.mxu0 0.0
    %1721 = vmatpush1.xpose.msra.mxu0 0.0
    %1722 = vmatprep.subr.mxu0 0.0
    %1723 = vmatpush1.xpose.msra.mxu0 0.0
    %1724 = vmatprep.subr.mxu0 0.0
    %1725 = vmatpush1.xpose.msra.mxu0 0.0
    %1726 = vmatprep.subr.mxu0 0.0
    %1727 = vmatpush1.xpose.msra.mxu0 0.0
    %1728 = vmatprep.subr.mxu0 0.0
    %1729 = vmatpush1.xpose.msra.mxu0 0.0
    %1730 = vmatprep.subr.mxu0 0.0
    %1731 = vmatpush1.xpose.msra.mxu0 0.0
    %1732 = vmatprep.subr.mxu0 0.0
    %1733 = vmatpush1.xpose.msra.mxu0 0.0
    %1734 = vmatprep.subr.mxu0 0.0
    %1735 = vmatpush1.xpose.msra.mxu0 0.0
    %1736 = vmatprep.subr.mxu0 0.0
    %1737 = vmatpush1.xpose.msra.mxu0 0.0
    %1738 = vmatprep.subr.mxu0 0.0
    %1739 = vmatpush1.xpose.msra.mxu0 0.0
    %1740 = vmatprep.subr.mxu0 0.0
    %1741 = vmatpush1.xpose.msra.mxu0 0.0
    %1742 = vmatprep.subr.mxu0 0.0
    %1743 = vmatpush1.xpose.msra.mxu0 0.0
    %1744 = vmatprep.subr.mxu0 0.0
    %1745 = vmatpush1.xpose.msra.mxu0 0.0
    %1746 = vmatprep.subr.mxu0 0.0
    %1747 = vmatpush1.xpose.msra.mxu0 0.0
    %1748 = vmatprep.subr.mxu0 0.0
    %1749 = vmatpush1.xpose.msra.mxu0 0.0
    %1750 = vmatprep.subr.mxu0 0.0
    %1751 = vmatpush1.xpose.msra.mxu0 0.0
    %1752 = vmatprep.subr.mxu0 0.0
    %1753 = vmatpush1.xpose.msra.mxu0 0.0
    %1754 = vmatprep.subr.mxu0 0.0
    %1755 = vmatpush1.xpose.msra.mxu0 0.0
    %1756 = vmatprep.subr.mxu0 0.0
    %1757 = vmatpush1.xpose.msra.mxu0 0.0
    %1758 = vmatprep.subr.mxu0 0.0
    %1759 = vmatpush1.xpose.msra.mxu0 0.0
    %1760 = vmatprep.subr.mxu0 0.0
    %1761 = vmatpush1.xpose.msra.mxu0 0.0
    %1762 = vmatprep.subr.mxu0 0.0
    %1763 = vmatpush1.xpose.msra.mxu0 0.0
    %1764 = vmatprep.subr.mxu0 0.0
    %1765 = vmatpush1.xpose.msra.mxu0 0.0
    %1766 = vmatprep.subr.mxu0 0.0
    %1767 = vmatpush1.xpose.msra.mxu0 0.0
    %1768 = vmatprep.subr.mxu0 0.0
    %1769 = vmatpush1.xpose.msra.mxu0 0.0
    %1770 = vmatprep.mubr.f32.mxu0 0.0
    %1771 = vmatmul.mubr.f32.gmra.mrb[0].mxu0 %v1698
    %v1772 = vpop.f32.mrb[0].mxu0
    %v1773 = vadd.f32 0.0, %v1772
    %v1774 = vpop.f32.mrb[0].mxu0
    %1775 = vmatprep.mubr.f32.mxu0 0.0
    %1776 = vmatmul.mubr.f32.gmra.mrb[0].mxu0 %v1700
    %v1777 = vpop.f32.mrb[0].mxu0
    %v1778 = vadd.f32 0.0, %v1777
    %v1779 = vpop.f32.mrb[0].mxu0
    %1780 = vdwg.mxu0
    %1781 = vrot.lane.b32.xlu0 %v1597, 112
    %v1782 = vpop.permute.xlu0 %1781
    %1783 = vrot.lane.b32.xlu0 %v1598, 112
    %v1784 = vpop.permute.xlu0 %1783
    %1785 = vrot.lane.b32.xlu0 %v1589, 80
    %v1786 = vpop.permute.xlu0 %1785
    %1787 = vrot.lane.b32.xlu0 %v1594, 80
    %v1788 = vpop.permute.xlu0 %1787
    %v1789 = vsel %vm320, %v1782, 0
    %v1791 = vsel %vm320, %v1784, 0
    %v1793 = vsel %vm320, %v1786, 0
    %v1795 = vsel %vm320, %v1788, 0
    %1797 = vmatprep.subr.mxu0 0.0
    %1798 = vmatpush1.xpose.msra.mxu0 %v1793
    %1799 = vmatprep.subr.mxu0 0.0
    %1800 = vmatpush1.xpose.msra.mxu0 %v1795
    %1801 = vmatprep.subr.mxu0 0.0
    %1802 = vmatpush1.xpose.msra.mxu0 0.0
    %1803 = vmatprep.subr.mxu0 0.0
    %1804 = vmatpush1.xpose.msra.mxu0 0.0
    %1805 = vmatprep.subr.mxu0 0.0
    %1806 = vmatpush1.xpose.msra.mxu0 0.0
    %1807 = vmatprep.subr.mxu0 0.0
    %1808 = vmatpush1.xpose.msra.mxu0 0.0
    %1809 = vmatprep.subr.mxu0 0.0
    %1810 = vmatpush1.xpose.msra.mxu0 0.0
    %1811 = vmatprep.subr.mxu0 0.0
    %1812 = vmatpush1.xpose.msra.mxu0 0.0
    %1813 = vmatprep.subr.mxu0 0.0
    %1814 = vmatpush1.xpose.msra.mxu0 0.0
    %1815 = vmatprep.subr.mxu0 0.0
    %1816 = vmatpush1.xpose.msra.mxu0 0.0
    %1817 = vmatprep.subr.mxu0 0.0
    %1818 = vmatpush1.xpose.msra.mxu0 0.0
    %1819 = vmatprep.subr.mxu0 0.0
    %1820 = vmatpush1.xpose.msra.mxu0 0.0
    %1821 = vmatprep.subr.mxu0 0.0
    %1822 = vmatpush1.xpose.msra.mxu0 0.0
    %1823 = vmatprep.subr.mxu0 0.0
    %1824 = vmatpush1.xpose.msra.mxu0 0.0
    %1825 = vmatprep.subr.mxu0 0.0
    %1826 = vmatpush1.xpose.msra.mxu0 0.0
    %1827 = vmatprep.subr.mxu0 0.0
    %1828 = vmatpush1.xpose.msra.mxu0 0.0
    %1829 = vmatprep.subr.mxu0 0.0
    %1830 = vmatpush1.xpose.msra.mxu0 0.0
    %1831 = vmatprep.subr.mxu0 0.0
    %1832 = vmatpush1.xpose.msra.mxu0 0.0
    %1833 = vmatprep.subr.mxu0 0.0
    %1834 = vmatpush1.xpose.msra.mxu0 0.0
    %1835 = vmatprep.subr.mxu0 0.0
    %1836 = vmatpush1.xpose.msra.mxu0 0.0
    %1837 = vmatprep.subr.mxu0 0.0
    %1838 = vmatpush1.xpose.msra.mxu0 0.0
    %1839 = vmatprep.subr.mxu0 0.0
    %1840 = vmatpush1.xpose.msra.mxu0 0.0
    %1841 = vmatprep.subr.mxu0 0.0
    %1842 = vmatpush1.xpose.msra.mxu0 0.0
    %1843 = vmatprep.subr.mxu0 0.0
    %1844 = vmatpush1.xpose.msra.mxu0 0.0
    %1845 = vmatprep.subr.mxu0 0.0
    %1846 = vmatpush1.xpose.msra.mxu0 0.0
    %1847 = vmatprep.subr.mxu0 0.0
    %1848 = vmatpush1.xpose.msra.mxu0 0.0
    %1849 = vmatprep.subr.mxu0 0.0
    %1850 = vmatpush1.xpose.msra.mxu0 0.0
    %1851 = vmatprep.subr.mxu0 0.0
    %1852 = vmatpush1.xpose.msra.mxu0 0.0
    %1853 = vmatprep.subr.mxu0 0.0
    %1854 = vmatpush1.xpose.msra.mxu0 0.0
    %1855 = vmatprep.subr.mxu0 0.0
    %1856 = vmatpush1.xpose.msra.mxu0 0.0
    %1857 = vmatprep.subr.mxu0 0.0
    %1858 = vmatpush1.xpose.msra.mxu0 0.0
    %1859 = vmatprep.subr.mxu0 0.0
    %1860 = vmatpush1.xpose.msra.mxu0 0.0
    %1861 = vmatprep.mubr.f32.mxu0 0.0
    %1862 = vmatmul.mubr.f32.gmra.mrb[0].mxu0 %v1789
    %v1863 = vpop.f32.mrb[0].mxu0
    %v1864 = vadd.f32 0.0, %v1863
    %v1865 = vpop.f32.mrb[0].mxu0
    %1866 = vmatprep.mubr.f32.mxu0 0.0
    %1867 = vmatmul.mubr.f32.gmra.mrb[0].mxu0 %v1791
    %v1868 = vpop.f32.mrb[0].mxu0
    %v1869 = vadd.f32 0.0, %v1868
    %v1870 = vpop.f32.mrb[0].mxu0
    %1871 = vdwg.mxu0
    %1872 = vrot.lane.b32.xlu0 %v1597, 104
    %v1873 = vpop.permute.xlu0 %1872
    %1874 = vrot.lane.b32.xlu0 %v1598, 104
    %v1875 = vpop.permute.xlu0 %1874
    %1876 = vrot.lane.b32.xlu0 %v1589, 72
    %v1877 = vpop.permute.xlu0 %1876
    %1878 = vrot.lane.b32.xlu0 %v1594, 72
    %v1879 = vpop.permute.xlu0 %1878
    %v1880 = vsel %vm320, %v1873, 0
    %v1882 = vsel %vm320, %v1875, 0
    %v1884 = vsel %vm320, %v1877, 0
    %v1886 = vsel %vm320, %v1879, 0
    %1888 = vmatprep.subr.mxu0 0.0
    %1889 = vmatpush1.xpose.msra.mxu0 %v1884
    %1890 = vmatprep.subr.mxu0 0.0
    %1891 = vmatpush1.xpose.msra.mxu0 %v1886
    %1892 = vmatprep.subr.mxu0 0.0
    %1893 = vmatpush1.xpose.msra.mxu0 0.0
    %1894 = vmatprep.subr.mxu0 0.0
    %1895 = vmatpush1.xpose.msra.mxu0 0.0
    %1896 = vmatprep.subr.mxu0 0.0
    %1897 = vmatpush1.xpose.msra.mxu0 0.0
    %1898 = vmatprep.subr.mxu0 0.0
    %1899 = vmatpush1.xpose.msra.mxu0 0.0
    %1900 = vmatprep.subr.mxu0 0.0
    %1901 = vmatpush1.xpose.msra.mxu0 0.0
    %1902 = vmatprep.subr.mxu0 0.0
    %1903 = vmatpush1.xpose.msra.mxu0 0.0
    %1904 = vmatprep.subr.mxu0 0.0
    %1905 = vmatpush1.xpose.msra.mxu0 0.0
    %1906 = vmatprep.subr.mxu0 0.0
    %1907 = vmatpush1.xpose.msra.mxu0 0.0
    %1908 = vmatprep.subr.mxu0 0.0
    %1909 = vmatpush1.xpose.msra.mxu0 0.0
    %1910 = vmatprep.subr.mxu0 0.0
    %1911 = vmatpush1.xpose.msra.mxu0 0.0
    %1912 = vmatprep.subr.mxu0 0.0
    %1913 = vmatpush1.xpose.msra.mxu0 0.0
    %1914 = vmatprep.subr.mxu0 0.0
    %1915 = vmatpush1.xpose.msra.mxu0 0.0
    %1916 = vmatprep.subr.mxu0 0.0
    %1917 = vmatpush1.xpose.msra.mxu0 0.0
    %1918 = vmatprep.subr.mxu0 0.0
    %1919 = vmatpush1.xpose.msra.mxu0 0.0
    %1920 = vmatprep.subr.mxu0 0.0
    %1921 = vmatpush1.xpose.msra.mxu0 0.0
    %1922 = vmatprep.subr.mxu0 0.0
    %1923 = vmatpush1.xpose.msra.mxu0 0.0
    %1924 = vmatprep.subr.mxu0 0.0
    %1925 = vmatpush1.xpose.msra.mxu0 0.0
    %1926 = vmatprep.subr.mxu0 0.0
    %1927 = vmatpush1.xpose.msra.mxu0 0.0
    %1928 = vmatprep.subr.mxu0 0.0
    %1929 = vmatpush1.xpose.msra.mxu0 0.0
    %1930 = vmatprep.subr.mxu0 0.0
    %1931 = vmatpush1.xpose.msra.mxu0 0.0
    %1932 = vmatprep.subr.mxu0 0.0
    %1933 = vmatpush1.xpose.msra.mxu0 0.0
    %1934 = vmatprep.subr.mxu0 0.0
    %1935 = vmatpush1.xpose.msra.mxu0 0.0
    %1936 = vmatprep.subr.mxu0 0.0
    %1937 = vmatpush1.xpose.msra.mxu0 0.0
    %1938 = vmatprep.subr.mxu0 0.0
    %1939 = vmatpush1.xpose.msra.mxu0 0.0
    %1940 = vmatprep.subr.mxu0 0.0
    %1941 = vmatpush1.xpose.msra.mxu0 0.0
    %1942 = vmatprep.subr.mxu0 0.0
    %1943 = vmatpush1.xpose.msra.mxu0 0.0
    %1944 = vmatprep.subr.mxu0 0.0
    %1945 = vmatpush1.xpose.msra.mxu0 0.0
    %1946 = vmatprep.subr.mxu0 0.0
    %1947 = vmatpush1.xpose.msra.mxu0 0.0
    %1948 = vmatprep.subr.mxu0 0.0
    %1949 = vmatpush1.xpose.msra.mxu0 0.0
    %1950 = vmatprep.subr.mxu0 0.0
    %1951 = vmatpush1.xpose.msra.mxu0 0.0
    %1952 = vmatprep.mubr.f32.mxu0 0.0
    %1953 = vmatmul.mubr.f32.gmra.mrb[0].mxu0 %v1880
    %v1954 = vpop.f32.mrb[0].mxu0
    %v1955 = vadd.f32 0.0, %v1954
    %v1956 = vpop.f32.mrb[0].mxu0
    %1957 = vmatprep.mubr.f32.mxu0 0.0
    %1958 = vmatmul.mubr.f32.gmra.mrb[0].mxu0 %v1882
    %v1959 = vpop.f32.mrb[0].mxu0
    %v1960 = vadd.f32 0.0, %v1959
    %v1961 = vpop.f32.mrb[0].mxu0
    %1962 = vdwg.mxu0
    %v1963 = vadd.f32 %v1682, %v211
    %v1964 = vadd.f32 %v1687, %v212
    %v1965 = vadd.f32 %v1773, %v213
    %v1966 = vadd.f32 %v1778, %v214
    %v1967 = vadd.f32 %v1864, %v215
    %v1968 = vadd.f32 %v1869, %v216
    %v1969 = vadd.f32 %v1955, %v217
    %v1970 = vadd.f32 %v1960, %v218
    %v1971 = vsel %vm687, %v1963, -inf
    %1972 = vmax.xlane.f32.xlu0 %v1971
    %v1973 = vpop.xlane.xlu0 %1972
    %v1974 = vsel %vm687, %v1964, -inf
    %1975 = vmax.xlane.f32.xlu0 %v1974
    %v1976 = vpop.xlane.xlu0 %1975
    %v1977 = vsel %vm687, %v1965, -inf
    %1978 = vmax.xlane.f32.xlu0 %v1977
    %v1979 = vpop.xlane.xlu0 %1978
    %v1980 = vsel %vm687, %v1966, -inf
    %1981 = vmax.xlane.f32.xlu0 %v1980
    %v1982 = vpop.xlane.xlu0 %1981
    %v1983 = vsel %vm687, %v1967, -inf
    %1984 = vmax.xlane.f32.xlu0 %v1983
    %v1985 = vpop.xlane.xlu0 %1984
    %v1986 = vsel %vm687, %v1968, -inf
    %1987 = vmax.xlane.f32.xlu0 %v1986
    %v1988 = vpop.xlane.xlu0 %1987
    %v1989 = vsel %vm687, %v1969, -inf
    %1990 = vmax.xlane.f32.xlu0 %v1989
    %v1991 = vpop.xlane.xlu0 %1990
    %v1992 = vsel %vm687, %v1970, -inf
    %1993 = vmax.xlane.f32.xlu0 %v1992
    %v1994 = vpop.xlane.xlu0 %1993
    %v1995 = vsub.f32 %v1963, %v1973
    %v1996 = vsub.f32 %v1964, %v1976
    %v1997 = vsub.f32 %v1965, %v1979
    %v1998 = vsub.f32 %v1966, %v1982
    %v1999 = vsub.f32 %v1967, %v1985
    %v2000 = vsub.f32 %v1968, %v1988
    %v2001 = vsub.f32 %v1969, %v1991
    %v2002 = vsub.f32 %v1970, %v1994
    %v2003 = vmul.f32 %v1995, 1.442695
    %v2004 = vpow.pop %v2003
    %v2005 = vmul.f32 %v1996, 1.442695
    %v2006 = vpow.pop %v2005
    %v2007 = vmul.f32 %v1997, 1.442695
    %v2008 = vpow.pop %v2007
    %v2009 = vmul.f32 %v1998, 1.442695
    %v2010 = vpow.pop %v2009
    %v2011 = vmul.f32 %v1999, 1.442695
    %v2012 = vpow.pop %v2011
    %v2013 = vmul.f32 %v2000, 1.442695
    %v2014 = vpow.pop %v2013
    %v2015 = vmul.f32 %v2001, 1.442695
    %v2016 = vpow.pop %v2015
    %v2017 = vmul.f32 %v2002, 1.442695
    %v2018 = vpow.pop %v2017
    %v2019 = vsel %vm687, %v2004, 0.0
    %2020 = vadd.xlane.f32.xlu0 %v2019
    %v2021 = vpop.xlane.xlu0 %2020
    %v2022 = vsel %vm687, %v2006, 0.0
    %2023 = vadd.xlane.f32.xlu0 %v2022
    %v2024 = vpop.xlane.xlu0 %2023
    %v2025 = vsel %vm687, %v2008, 0.0
    %2026 = vadd.xlane.f32.xlu0 %v2025
    %v2027 = vpop.xlane.xlu0 %2026
    %v2028 = vsel %vm687, %v2010, 0.0
    %2029 = vadd.xlane.f32.xlu0 %v2028
    %v2030 = vpop.xlane.xlu0 %2029
    %v2031 = vsel %vm687, %v2012, 0.0
    %2032 = vadd.xlane.f32.xlu0 %v2031
    %v2033 = vpop.xlane.xlu0 %2032
    %v2034 = vsel %vm687, %v2014, 0.0
    %2035 = vadd.xlane.f32.xlu0 %v2034
    %v2036 = vpop.xlane.xlu0 %2035
    %v2037 = vsel %vm687, %v2016, 0.0
    %2038 = vadd.xlane.f32.xlu0 %v2037
    %v2039 = vpop.xlane.xlu0 %2038
    %v2040 = vsel %vm687, %v2018, 0.0
    %2041 = vadd.xlane.f32.xlu0 %v2040
    %v2042 = vpop.xlane.xlu0 %2041
    %v2043 = vrcp.pop %v2021
    %v2044 = vrcp.pop %v2024
    %v2045 = vrcp.pop %v2027
    %v2046 = vrcp.pop %v2030
    %v2047 = vrcp.pop %v2033
    %v2048 = vrcp.pop %v2036
    %v2049 = vrcp.pop %v2039
    %v2050 = vrcp.pop %v2042
    %v2051 = vmul.f32 %v2004, %v2043
    %v2052 = vmul.f32 %v2006, %v2044
    %v2053 = vmul.f32 %v2008, %v2045
    %v2054 = vmul.f32 %v2010, %v2046
    %v2055 = vmul.f32 %v2012, %v2047
    %v2056 = vmul.f32 %v2014, %v2048
    %v2057 = vmul.f32 %v2016, %v2049
    %v2058 = vmul.f32 %v2018, %v2050
    %2059 = vrot.lane.b32.xlu0 %v1589, 64
    %v2060 = vpop.permute.xlu0 %2059
    %2061 = vrot.lane.b32.xlu0 %v1594, 64
    %v2062 = vpop.permute.xlu0 %2061
    %v2066 = vsel %vm687, %v2051, 0
    %v2069 = vsel %vm687, %v2052, 0
    %2071 = vmatprep.subr.mxu0 0.0
    %2072 = vmatpush1.msra.mxu0 %v2060
    %2073 = vmatprep.subr.mxu0 0.0
    %2074 = vmatpush1.msra.mxu0 %v2062
    %2075 = vmatprep.subr.mxu0 0.0
    %2076 = vmatpush1.msra.mxu0 0.0
    %2077 = vmatprep.subr.mxu0 0.0
    %2078 = vmatpush1.msra.mxu0 0.0
    %2079 = vmatprep.subr.mxu0 0.0
    %2080 = vmatpush1.msra.mxu0 0.0
    %2081 = vmatprep.subr.mxu0 0.0
    %2082 = vmatpush1.msra.mxu0 0.0
    %2083 = vmatprep.subr.mxu0 0.0
    %2084 = vmatpush1.msra.mxu0 0.0
    %2085 = vmatprep.subr.mxu0 0.0
    %2086 = vmatpush1.msra.mxu0 0.0
    %2087 = vmatprep.subr.mxu0 0.0
    %2088 = vmatpush1.msra.mxu0 0.0
    %2089 = vmatprep.subr.mxu0 0.0
    %2090 = vmatpush1.msra.mxu0 0.0
    %2091 = vmatprep.subr.mxu0 0.0
    %2092 = vmatpush1.msra.mxu0 0.0
    %2093 = vmatprep.subr.mxu0 0.0
    %2094 = vmatpush1.msra.mxu0 0.0
    %2095 = vmatprep.subr.mxu0 0.0
    %2096 = vmatpush1.msra.mxu0 0.0
    %2097 = vmatprep.subr.mxu0 0.0
    %2098 = vmatpush1.msra.mxu0 0.0
    %2099 = vmatprep.subr.mxu0 0.0
    %2100 = vmatpush1.msra.mxu0 0.0
    %2101 = vmatprep.subr.mxu0 0.0
    %2102 = vmatpush1.msra.mxu0 0.0
    %2103 = vmatprep.subr.mxu0 0.0
    %2104 = vmatpush1.msra.mxu0 0.0
    %2105 = vmatprep.subr.mxu0 0.0
    %2106 = vmatpush1.msra.mxu0 0.0
    %2107 = vmatprep.subr.mxu0 0.0
    %2108 = vmatpush1.msra.mxu0 0.0
    %2109 = vmatprep.subr.mxu0 0.0
    %2110 = vmatpush1.msra.mxu0 0.0
    %2111 = vmatprep.subr.mxu0 0.0
    %2112 = vmatpush1.msra.mxu0 0.0
    %2113 = vmatprep.subr.mxu0 0.0
    %2114 = vmatpush1.msra.mxu0 0.0
    %2115 = vmatprep.subr.mxu0 0.0
    %2116 = vmatpush1.msra.mxu0 0.0
    %2117 = vmatprep.subr.mxu0 0.0
    %2118 = vmatpush1.msra.mxu0 0.0
    %2119 = vmatprep.subr.mxu0 0.0
    %2120 = vmatpush1.msra.mxu0 0.0
    %2121 = vmatprep.subr.mxu0 0.0
    %2122 = vmatpush1.msra.mxu0 0.0
    %2123 = vmatprep.subr.mxu0 0.0
    %2124 = vmatpush1.msra.mxu0 0.0
    %2125 = vmatprep.subr.mxu0 0.0
    %2126 = vmatpush1.msra.mxu0 0.0
    %2127 = vmatprep.subr.mxu0 0.0
    %2128 = vmatpush1.msra.mxu0 0.0
    %2129 = vmatprep.subr.mxu0 0.0
    %2130 = vmatpush1.msra.mxu0 0.0
    %2131 = vmatprep.subr.mxu0 0.0
    %2132 = vmatpush1.msra.mxu0 0.0
    %2133 = vmatprep.subr.mxu0 0.0
    %2134 = vmatpush1.msra.mxu0 0.0
    %2135 = vmatprep.mubr.f32.mxu0 0.0
    %2136 = vmatmul.mubr.f32.gmra.mrb[0].mxu0 %v2066
    %v2137 = vpop.f32.mrb[0].mxu0
    %v2138 = vadd.f32 0.0, %v2137
    %v2139 = vpop.f32.mrb[0].mxu0
    %2140 = vmatprep.mubr.f32.mxu0 0.0
    %2141 = vmatmul.mubr.f32.gmra.mrb[0].mxu0 %v2069
    %v2142 = vpop.f32.mrb[0].mxu0
    %v2143 = vadd.f32 0.0, %v2142
    %v2144 = vpop.f32.mrb[0].mxu0
    %2145 = vdwg.mxu0
    %2146 = vrot.lane.b32.xlu0 %v1589, 56
    %v2147 = vpop.permute.xlu0 %2146
    %2148 = vrot.lane.b32.xlu0 %v1594, 56
    %v2149 = vpop.permute.xlu0 %2148
    %v2153 = vsel %vm687, %v2053, 0
    %v2156 = vsel %vm687, %v2054, 0
    %2158 = vmatprep.subr.mxu0 0.0
    %2159 = vmatpush1.msra.mxu0 %v2147
    %2160 = vmatprep.subr.mxu0 0.0
    %2161 = vmatpush1.msra.mxu0 %v2149
    %2162 = vmatprep.subr.mxu0 0.0
    %2163 = vmatpush1.msra.mxu0 0.0
    %2164 = vmatprep.subr.mxu0 0.0
    %2165 = vmatpush1.msra.mxu0 0.0
    %2166 = vmatprep.subr.mxu0 0.0
    %2167 = vmatpush1.msra.mxu0 0.0
    %2168 = vmatprep.subr.mxu0 0.0
    %2169 = vmatpush1.msra.mxu0 0.0
    %2170 = vmatprep.subr.mxu0 0.0
    %2171 = vmatpush1.msra.mxu0 0.0
    %2172 = vmatprep.subr.mxu0 0.0
    %2173 = vmatpush1.msra.mxu0 0.0
    %2174 = vmatprep.subr.mxu0 0.0
    %2175 = vmatpush1.msra.mxu0 0.0
    %2176 = vmatprep.subr.mxu0 0.0
    %2177 = vmatpush1.msra.mxu0 0.0
    %2178 = vmatprep.subr.mxu0 0.0
    %2179 = vmatpush1.msra.mxu0 0.0
    %2180 = vmatprep.subr.mxu0 0.0
    %2181 = vmatpush1.msra.mxu0 0.0
    %2182 = vmatprep.subr.mxu0 0.0
    %2183 = vmatpush1.msra.mxu0 0.0
    %2184 = vmatprep.subr.mxu0 0.0
    %2185 = vmatpush1.msra.mxu0 0.0
    %2186 = vmatprep.subr.mxu0 0.0
    %2187 = vmatpush1.msra.mxu0 0.0
    %2188 = vmatprep.subr.mxu0 0.0
    %2189 = vmatpush1.msra.mxu0 0.0
    %2190 = vmatprep.subr.mxu0 0.0
    %2191 = vmatpush1.msra.mxu0 0.0
    %2192 = vmatprep.subr.mxu0 0.0
    %2193 = vmatpush1.msra.mxu0 0.0
    %2194 = vmatprep.subr.mxu0 0.0
    %2195 = vmatpush1.msra.mxu0 0.0
    %2196 = vmatprep.subr.mxu0 0.0
    %2197 = vmatpush1.msra.mxu0 0.0
    %2198 = vmatprep.subr.mxu0 0.0
    %2199 = vmatpush1.msra.mxu0 0.0
    %2200 = vmatprep.subr.mxu0 0.0
    %2201 = vmatpush1.msra.mxu0 0.0
    %2202 = vmatprep.subr.mxu0 0.0
    %2203 = vmatpush1.msra.mxu0 0.0
    %2204 = vmatprep.subr.mxu0 0.0
    %2205 = vmatpush1.msra.mxu0 0.0
    %2206 = vmatprep.subr.mxu0 0.0
    %2207 = vmatpush1.msra.mxu0 0.0
    %2208 = vmatprep.subr.mxu0 0.0
    %2209 = vmatpush1.msra.mxu0 0.0
    %2210 = vmatprep.subr.mxu0 0.0
    %2211 = vmatpush1.msra.mxu0 0.0
    %2212 = vmatprep.subr.mxu0 0.0
    %2213 = vmatpush1.msra.mxu0 0.0
    %2214 = vmatprep.subr.mxu0 0.0
    %2215 = vmatpush1.msra.mxu0 0.0
    %2216 = vmatprep.subr.mxu0 0.0
    %2217 = vmatpush1.msra.mxu0 0.0
    %2218 = vmatprep.subr.mxu0 0.0
    %2219 = vmatpush1.msra.mxu0 0.0
    %2220 = vmatprep.subr.mxu0 0.0
    %2221 = vmatpush1.msra.mxu0 0.0
    %2222 = vmatprep.mubr.f32.mxu0 0.0
    %2223 = vmatmul.mubr.f32.gmra.mrb[0].mxu0 %v2153
    %v2224 = vpop.f32.mrb[0].mxu0
    %v2225 = vadd.f32 0.0, %v2224
    %v2226 = vpop.f32.mrb[0].mxu0
    %2227 = vmatprep.mubr.f32.mxu0 0.0
    %2228 = vmatmul.mubr.f32.gmra.mrb[0].mxu0 %v2156
    %v2229 = vpop.f32.mrb[0].mxu0
    %v2230 = vadd.f32 0.0, %v2229
    %v2231 = vpop.f32.mrb[0].mxu0
    %2232 = vdwg.mxu0
    %2233 = vrot.lane.b32.xlu0 %v1589, 48
    %v2234 = vpop.permute.xlu0 %2233
    %2235 = vrot.lane.b32.xlu0 %v1594, 48
    %v2236 = vpop.permute.xlu0 %2235
    %v2240 = vsel %vm687, %v2055, 0
    %v2243 = vsel %vm687, %v2056, 0
    %2245 = vmatprep.subr.mxu0 0.0
    %2246 = vmatpush1.msra.mxu0 %v2234
    %2247 = vmatprep.subr.mxu0 0.0
    %2248 = vmatpush1.msra.mxu0 %v2236
    %2249 = vmatprep.subr.mxu0 0.0
    %2250 = vmatpush1.msra.mxu0 0.0
    %2251 = vmatprep.subr.mxu0 0.0
    %2252 = vmatpush1.msra.mxu0 0.0
    %2253 = vmatprep.subr.mxu0 0.0
    %2254 = vmatpush1.msra.mxu0 0.0
    %2255 = vmatprep.subr.mxu0 0.0
    %2256 = vmatpush1.msra.mxu0 0.0
    %2257 = vmatprep.subr.mxu0 0.0
    %2258 = vmatpush1.msra.mxu0 0.0
    %2259 = vmatprep.subr.mxu0 0.0
    %2260 = vmatpush1.msra.mxu0 0.0
    %2261 = vmatprep.subr.mxu0 0.0
    %2262 = vmatpush1.msra.mxu0 0.0
    %2263 = vmatprep.subr.mxu0 0.0
    %2264 = vmatpush1.msra.mxu0 0.0
    %2265 = vmatprep.subr.mxu0 0.0
    %2266 = vmatpush1.msra.mxu0 0.0
    %2267 = vmatprep.subr.mxu0 0.0
    %2268 = vmatpush1.msra.mxu0 0.0
    %2269 = vmatprep.subr.mxu0 0.0
    %2270 = vmatpush1.msra.mxu0 0.0
    %2271 = vmatprep.subr.mxu0 0.0
    %2272 = vmatpush1.msra.mxu0 0.0
    %2273 = vmatprep.subr.mxu0 0.0
    %2274 = vmatpush1.msra.mxu0 0.0
    %2275 = vmatprep.subr.mxu0 0.0
    %2276 = vmatpush1.msra.mxu0 0.0
    %2277 = vmatprep.subr.mxu0 0.0
    %2278 = vmatpush1.msra.mxu0 0.0
    %2279 = vmatprep.subr.mxu0 0.0
    %2280 = vmatpush1.msra.mxu0 0.0
    %2281 = vmatprep.subr.mxu0 0.0
    %2282 = vmatpush1.msra.mxu0 0.0
    %2283 = vmatprep.subr.mxu0 0.0
    %2284 = vmatpush1.msra.mxu0 0.0
    %2285 = vmatprep.subr.mxu0 0.0
    %2286 = vmatpush1.msra.mxu0 0.0
    %2287 = vmatprep.subr.mxu0 0.0
    %2288 = vmatpush1.msra.mxu0 0.0
    %2289 = vmatprep.subr.mxu0 0.0
    %2290 = vmatpush1.msra.mxu0 0.0
    %2291 = vmatprep.subr.mxu0 0.0
    %2292 = vmatpush1.msra.mxu0 0.0
    %2293 = vmatprep.subr.mxu0 0.0
    %2294 = vmatpush1.msra.mxu0 0.0
    %2295 = vmatprep.subr.mxu0 0.0
    %2296 = vmatpush1.msra.mxu0 0.0
    %2297 = vmatprep.subr.mxu0 0.0
    %2298 = vmatpush1.msra.mxu0 0.0
    %2299 = vmatprep.subr.mxu0 0.0
    %2300 = vmatpush1.msra.mxu0 0.0
    %2301 = vmatprep.subr.mxu0 0.0
    %2302 = vmatpush1.msra.mxu0 0.0
    %2303 = vmatprep.subr.mxu0 0.0
    %2304 = vmatpush1.msra.mxu0 0.0
    %2305 = vmatprep.subr.mxu0 0.0
    %2306 = vmatpush1.msra.mxu0 0.0
    %2307 = vmatprep.subr.mxu0 0.0
    %2308 = vmatpush1.msra.mxu0 0.0
    %2309 = vmatprep.mubr.f32.mxu0 0.0
    %2310 = vmatmul.mubr.f32.gmra.mrb[0].mxu0 %v2240
    %v2311 = vpop.f32.mrb[0].mxu0
    %v2312 = vadd.f32 0.0, %v2311
    %v2313 = vpop.f32.mrb[0].mxu0
    %2314 = vmatprep.mubr.f32.mxu0 0.0
    %2315 = vmatmul.mubr.f32.gmra.mrb[0].mxu0 %v2243
    %v2316 = vpop.f32.mrb[0].mxu0
    %v2317 = vadd.f32 0.0, %v2316
    %v2318 = vpop.f32.mrb[0].mxu0
    %2319 = vdwg.mxu0
    %2320 = vrot.lane.b32.xlu0 %v1589, 40
    %v2321 = vpop.permute.xlu0 %2320
    %2322 = vrot.lane.b32.xlu0 %v1594, 40
    %v2323 = vpop.permute.xlu0 %2322
    %v2327 = vsel %vm687, %v2057, 0
    %v2330 = vsel %vm687, %v2058, 0
    %2332 = vmatprep.subr.mxu0 0.0
    %2333 = vmatpush1.msra.mxu0 %v2321
    %2334 = vmatprep.subr.mxu0 0.0
    %2335 = vmatpush1.msra.mxu0 %v2323
    %2336 = vmatprep.subr.mxu0 0.0
    %2337 = vmatpush1.msra.mxu0 0.0
    %2338 = vmatprep.subr.mxu0 0.0
    %2339 = vmatpush1.msra.mxu0 0.0
    %2340 = vmatprep.subr.mxu0 0.0
    %2341 = vmatpush1.msra.mxu0 0.0
    %2342 = vmatprep.subr.mxu0 0.0
    %2343 = vmatpush1.msra.mxu0 0.0
    %2344 = vmatprep.subr.mxu0 0.0
    %2345 = vmatpush1.msra.mxu0 0.0
    %2346 = vmatprep.subr.mxu0 0.0
    %2347 = vmatpush1.msra.mxu0 0.0
    %2348 = vmatprep.subr.mxu0 0.0
    %2349 = vmatpush1.msra.mxu0 0.0
    %2350 = vmatprep.subr.mxu0 0.0
    %2351 = vmatpush1.msra.mxu0 0.0
    %2352 = vmatprep.subr.mxu0 0.0
    %2353 = vmatpush1.msra.mxu0 0.0
    %2354 = vmatprep.subr.mxu0 0.0
    %2355 = vmatpush1.msra.mxu0 0.0
    %2356 = vmatprep.subr.mxu0 0.0
    %2357 = vmatpush1.msra.mxu0 0.0
    %2358 = vmatprep.subr.mxu0 0.0
    %2359 = vmatpush1.msra.mxu0 0.0
    %2360 = vmatprep.subr.mxu0 0.0
    %2361 = vmatpush1.msra.mxu0 0.0
    %2362 = vmatprep.subr.mxu0 0.0
    %2363 = vmatpush1.msra.mxu0 0.0
    %2364 = vmatprep.subr.mxu0 0.0
    %2365 = vmatpush1.msra.mxu0 0.0
    %2366 = vmatprep.subr.mxu0 0.0
    %2367 = vmatpush1.msra.mxu0 0.0
    %2368 = vmatprep.subr.mxu0 0.0
    %2369 = vmatpush1.msra.mxu0 0.0
    %2370 = vmatprep.subr.mxu0 0.0
    %2371 = vmatpush1.msra.mxu0 0.0
    %2372 = vmatprep.subr.mxu0 0.0
    %2373 = vmatpush1.msra.mxu0 0.0
    %2374 = vmatprep.subr.mxu0 0.0
    %2375 = vmatpush1.msra.mxu0 0.0
    %2376 = vmatprep.subr.mxu0 0.0
    %2377 = vmatpush1.msra.mxu0 0.0
    %2378 = vmatprep.subr.mxu0 0.0
    %2379 = vmatpush1.msra.mxu0 0.0
    %2380 = vmatprep.subr.mxu0 0.0
    %2381 = vmatpush1.msra.mxu0 0.0
    %2382 = vmatprep.subr.mxu0 0.0
    %2383 = vmatpush1.msra.mxu0 0.0
    %2384 = vmatprep.subr.mxu0 0.0
    %2385 = vmatpush1.msra.mxu0 0.0
    %2386 = vmatprep.subr.mxu0 0.0
    %2387 = vmatpush1.msra.mxu0 0.0
    %2388 = vmatprep.subr.mxu0 0.0
    %2389 = vmatpush1.msra.mxu0 0.0
    %2390 = vmatprep.subr.mxu0 0.0
    %2391 = vmatpush1.msra.mxu0 0.0
    %2392 = vmatprep.subr.mxu0 0.0
    %2393 = vmatpush1.msra.mxu0 0.0
    %2394 = vmatprep.subr.mxu0 0.0
    %2395 = vmatpush1.msra.mxu0 0.0
    %2396 = vmatprep.mubr.f32.mxu0 0.0
    %2397 = vmatmul.mubr.f32.gmra.mrb[0].mxu0 %v2327
    %v2398 = vpop.f32.mrb[0].mxu0
    %v2399 = vadd.f32 0.0, %v2398
    %v2400 = vpop.f32.mrb[0].mxu0
    %2401 = vmatprep.mubr.f32.mxu0 0.0
    %2402 = vmatmul.mubr.f32.gmra.mrb[0].mxu0 %v2330
    %v2403 = vpop.f32.mrb[0].mxu0
    %v2404 = vadd.f32 0.0, %v2403
    %v2405 = vpop.f32.mrb[0].mxu0
    %2406 = vdwg.mxu0
    %2409 = vrot.lane.b32.xlu0 %v2225, 8
    %v2410 = vpop.permute.xlu0 %2409
    %2411 = vrot.lane.b32.xlu0 %v2230, 8
    %v2412 = vpop.permute.xlu0 %2411
    %2417 = vrot.lane.b32.xlu0 %v2312, 16
    %v2418 = vpop.permute.xlu0 %2417
    %2419 = vrot.lane.b32.xlu0 %v2317, 16
    %v2420 = vpop.permute.xlu0 %2419
    %2425 = vrot.lane.b32.xlu0 %v2399, 24
    %v2426 = vpop.permute.xlu0 %2425
    %2427 = vrot.lane.b32.xlu0 %v2404, 24
    %v2428 = vpop.permute.xlu0 %2427
    %v2431 = vsel %vm320, %v2138, %v2410
    %v2432 = vsel %vm320, %v2143, %v2412
    %v2433 = vsel %vm687, %v2431, %v2418
    %v2434 = vsel %vm687, %v2432, %v2420
    %v2435 = vsel %vm1152, %v2433, %v2426
    %v2436 = vsel %vm1152, %v2434, %v2428
    %s2437 = scalar_lea.vmem %s7, 32
    %v2438 = vld [vmem:[%s2437] sm:$0xff]
    %v2439 = vld [vmem:[%s2437 + $0x8] sm:$0xff]
    %v2440 = vld [vmem:[%s2437 + $0x10] sm:$0xff]
    %v2441 = vld [vmem:[%s2437 + $0x18] sm:$0xff]
    %s2442 = scalar_lea.vmem [#allocation4], 1
    %v2443 = vld [vmem:[%s2442] sm:$0x1]
    %v2445 = vlaneseq
    %v2446 = vshrl.u32 %v2445, 7
    %v2447 = vsub.s32 0, %v2446
    %v2448 = vrot.slane %v2443, %v2447
    %v2451 = vsel %vm230, %v2435, 0
    %v2454 = vsel %vm230, %v2436, 0
    %2456 = vmatprep.subr.mxu0 0.0
    %2457 = vmatpush1.msra.mxu0 %v2438
    %2458 = vmatprep.subr.mxu0 0.0
    %2459 = vmatpush1.msra.mxu0 %v2439
    %2460 = vmatprep.subr.mxu0 0.0
    %2461 = vmatpush1.msra.mxu0 %v2440
    %2462 = vmatprep.subr.mxu0 0.0
    %2463 = vmatpush1.msra.mxu0 %v2441
    %2464 = vmatprep.subr.mxu0 0.0
    %2465 = vmatpush1.msra.mxu0 0.0
    %2466 = vmatprep.subr.mxu0 0.0
    %2467 = vmatpush1.msra.mxu0 0.0
    %2468 = vmatprep.subr.mxu0 0.0
    %2469 = vmatpush1.msra.mxu0 0.0
    %2470 = vmatprep.subr.mxu0 0.0
    %2471 = vmatpush1.msra.mxu0 0.0
    %2472 = vmatprep.subr.mxu0 0.0
    %2473 = vmatpush1.msra.mxu0 0.0
    %2474 = vmatprep.subr.mxu0 0.0
    %2475 = vmatpush1.msra.mxu0 0.0
    %2476 = vmatprep.subr.mxu0 0.0
    %2477 = vmatpush1.msra.mxu0 0.0
    %2478 = vmatprep.subr.mxu0 0.0
    %2479 = vmatpush1.msra.mxu0 0.0
    %2480 = vmatprep.subr.mxu0 0.0
    %2481 = vmatpush1.msra.mxu0 0.0
    %2482 = vmatprep.subr.mxu0 0.0
    %2483 = vmatpush1.msra.mxu0 0.0
    %2484 = vmatprep.subr.mxu0 0.0
    %2485 = vmatpush1.msra.mxu0 0.0
    %2486 = vmatprep.subr.mxu0 0.0
    %2487 = vmatpush1.msra.mxu0 0.0
    %2488 = vmatprep.subr.mxu0 0.0
    %2489 = vmatpush1.msra.mxu0 0.0
    %2490 = vmatprep.subr.mxu0 0.0
    %2491 = vmatpush1.msra.mxu0 0.0
    %2492 = vmatprep.subr.mxu0 0.0
    %2493 = vmatpush1.msra.mxu0 0.0
    %2494 = vmatprep.subr.mxu0 0.0
    %2495 = vmatpush1.msra.mxu0 0.0
    %2496 = vmatprep.subr.mxu0 0.0
    %2497 = vmatpush1.msra.mxu0 0.0
    %2498 = vmatprep.subr.mxu0 0.0
    %2499 = vmatpush1.msra.mxu0 0.0
    %2500 = vmatprep.subr.mxu0 0.0
    %2501 = vmatpush1.msra.mxu0 0.0
    %2502 = vmatprep.subr.mxu0 0.0
    %2503 = vmatpush1.msra.mxu0 0.0
    %2504 = vmatprep.subr.mxu0 0.0
    %2505 = vmatpush1.msra.mxu0 0.0
    %2506 = vmatprep.subr.mxu0 0.0
    %2507 = vmatpush1.msra.mxu0 0.0
    %2508 = vmatprep.subr.mxu0 0.0
    %2509 = vmatpush1.msra.mxu0 0.0
    %2510 = vmatprep.subr.mxu0 0.0
    %2511 = vmatpush1.msra.mxu0 0.0
    %2512 = vmatprep.subr.mxu0 0.0
    %2513 = vmatpush1.msra.mxu0 0.0
    %2514 = vmatprep.subr.mxu0 0.0
    %2515 = vmatpush1.msra.mxu0 0.0
    %2516 = vmatprep.subr.mxu0 0.0
    %2517 = vmatpush1.msra.mxu0 0.0
    %2518 = vmatprep.subr.mxu0 0.0
    %2519 = vmatpush1.msra.mxu0 0.0
    %2520 = vmatprep.mubr.f32.mxu0 0.0
    %2521 = vmatmul.mubr.f32.gmra.mrb[0].mxu0 %v2451
    %v2522 = vpop.f32.mrb[0].mxu0
    %v2523 = vadd.f32 %v2448, %v2522
    %v2524 = vpop.f32.mrb[0].mxu0
    %2525 = vmatprep.mubr.f32.mxu0 0.0
    %2526 = vmatmul.mubr.f32.gmra.mrb[0].mxu0 %v2454
    %v2527 = vpop.f32.mrb[0].mxu0
    %v2528 = vadd.f32 %v2448, %v2527
    %v2529 = vpop.f32.mrb[0].mxu0
    %2530 = vdwg.mxu0
    %v2531 = vadd.f32 %v1501, %v2523
    %v2532 = vadd.f32 %v1502, %v2528
    %v2533 = vsel %vm230, %v2531, 0.0
    %2534 = vadd.xlane.f32.xlu0 %v2533
    %v2535 = vpop.xlane.xlu0 %2534
    %v2536 = vsel %vm230, %v2532, 0.0
    %2537 = vadd.xlane.f32.xlu0 %v2536
    %v2538 = vpop.xlane.xlu0 %2537
    %v2539 = vmul.f32 %v2535, %v1255
    %v2540 = vmul.f32 %v2538, %v1255
    %v2541 = vsub.f32 %v2531, %v2539
    %v2542 = vsub.f32 %v2532, %v2540
    %v2543 = vmul.f32 %v2541, %v2541
    %v2544 = vmul.f32 %v2542, %v2542
    %v2545 = vsel %vm230, %v2543, 0.0
    %2546 = vadd.xlane.f32.xlu0 %v2545
    %v2547 = vpop.xlane.xlu0 %2546
    %v2548 = vsel %vm230, %v2544, 0.0
    %2549 = vadd.xlane.f32.xlu0 %v2548
    %v2550 = vpop.xlane.xlu0 %2549
    %v2551 = vmul.f32 %v2547, %v1255
    %v2552 = vmul.f32 %v2550, %v1255
    %v2553 = vadd.f32 %v2551, 1e-05
    %v2554 = vadd.f32 %v2552, 1e-05
    %v2555 = vrsqrt.pop %v2553
    %v2556 = vrsqrt.pop %v2554
    %v2557 = vmul.f32 %v2541, %v2555
    %v2558 = vmul.f32 %v2542, %v2556
    %s2559 = scalar_lea.vmem %s9, 32
    %v2560 = vld [vmem:[%s2559] sm:$0xff]
    %v2561 = vld [vmem:[%s2559 + $0x8] sm:$0xff]
    %v2562 = vld [vmem:[%s2559 + $0x10] sm:$0xff]
    %v2563 = vld [vmem:[%s2559 + $0x18] sm:$0xff]
    %s2564 = scalar_lea.vmem [#allocation6], 1
    %v2565 = vld [vmem:[%s2564] sm:$0x1]
    %v2567 = vlaneseq
    %v2568 = vshrl.u32 %v2567, 7
    %v2569 = vsub.s32 0, %v2568
    %v2570 = vrot.slane %v2565, %v2569
    %v2573 = vsel %vm230, %v2557, 0
    %v2576 = vsel %vm230, %v2558, 0
    %2578 = vmatprep.subr.mxu0 0.0
    %2579 = vmatpush1.msra.mxu0 %v2560
    %2580 = vmatprep.subr.mxu0 0.0
    %2581 = vmatpush1.msra.mxu0 %v2561
    %2582 = vmatprep.subr.mxu0 0.0
    %2583 = vmatpush1.msra.mxu0 %v2562
    %2584 = vmatprep.subr.mxu0 0.0
    %2585 = vmatpush1.msra.mxu0 %v2563
    %2586 = vmatprep.subr.mxu0 0.0
    %2587 = vmatpush1.msra.mxu0 0.0
    %2588 = vmatprep.subr.mxu0 0.0
    %2589 = vmatpush1.msra.mxu0 0.0
    %2590 = vmatprep.subr.mxu0 0.0
    %2591 = vmatpush1.msra.mxu0 0.0
    %2592 = vmatprep.subr.mxu0 0.0
    %2593 = vmatpush1.msra.mxu0 0.0
    %2594 = vmatprep.subr.mxu0 0.0
    %2595 = vmatpush1.msra.mxu0 0.0
    %2596 = vmatprep.subr.mxu0 0.0
    %2597 = vmatpush1.msra.mxu0 0.0
    %2598 = vmatprep.subr.mxu0 0.0
    %2599 = vmatpush1.msra.mxu0 0.0
    %2600 = vmatprep.subr.mxu0 0.0
    %2601 = vmatpush1.msra.mxu0 0.0
    %2602 = vmatprep.subr.mxu0 0.0
    %2603 = vmatpush1.msra.mxu0 0.0
    %2604 = vmatprep.subr.mxu0 0.0
    %2605 = vmatpush1.msra.mxu0 0.0
    %2606 = vmatprep.subr.mxu0 0.0
    %2607 = vmatpush1.msra.mxu0 0.0
    %2608 = vmatprep.subr.mxu0 0.0
    %2609 = vmatpush1.msra.mxu0 0.0
    %2610 = vmatprep.subr.mxu0 0.0
    %2611 = vmatpush1.msra.mxu0 0.0
    %2612 = vmatprep.subr.mxu0 0.0
    %2613 = vmatpush1.msra.mxu0 0.0
    %2614 = vmatprep.subr.mxu0 0.0
    %2615 = vmatpush1.msra.mxu0 0.0
    %2616 = vmatprep.subr.mxu0 0.0
    %2617 = vmatpush1.msra.mxu0 0.0
    %2618 = vmatprep.subr.mxu0 0.0
    %2619 = vmatpush1.msra.mxu0 0.0
    %2620 = vmatprep.subr.mxu0 0.0
    %2621 = vmatpush1.msra.mxu0 0.0
    %2622 = vmatprep.subr.mxu0 0.0
    %2623 = vmatpush1.msra.mxu0 0.0
    %2624 = vmatprep.subr.mxu0 0.0
    %2625 = vmatpush1.msra.mxu0 0.0
    %2626 = vmatprep.subr.mxu0 0.0
    %2627 = vmatpush1.msra.mxu0 0.0
    %2628 = vmatprep.subr.mxu0 0.0
    %2629 = vmatpush1.msra.mxu0 0.0
    %2630 = vmatprep.subr.mxu0 0.0
    %2631 = vmatpush1.msra.mxu0 0.0
    %2632 = vmatprep.subr.mxu0 0.0
    %2633 = vmatpush1.msra.mxu0 0.0
    %2634 = vmatprep.subr.mxu0 0.0
    %2635 = vmatpush1.msra.mxu0 0.0
    %2636 = vmatprep.subr.mxu0 0.0
    %2637 = vmatpush1.msra.mxu0 0.0
    %2638 = vmatprep.subr.mxu0 0.0
    %2639 = vmatpush1.msra.mxu0 0.0
    %2640 = vmatprep.subr.mxu0 0.0
    %2641 = vmatpush1.msra.mxu0 0.0
    %2642 = vmatprep.mubr.f32.mxu0 0.0
    %2643 = vmatmul.mubr.f32.gmra.mrb[0].mxu0 %v2573
    %v2644 = vpop.f32.mrb[0].mxu0
    %v2645 = vadd.f32 %v2570, %v2644
    %v2646 = vpop.f32.mrb[0].mxu0
    %2647 = vmatprep.mubr.f32.mxu0 0.0
    %2648 = vmatmul.mubr.f32.gmra.mrb[0].mxu0 %v2576
    %v2649 = vpop.f32.mrb[0].mxu0
    %v2650 = vadd.f32 %v2570, %v2649
    %v2651 = vpop.f32.mrb[0].mxu0
    %2652 = vdwg.mxu0
    %v2653 = vmul.f32 %v2645, 0.5
    %v2654 = vmul.f32 %v2650, 0.5
    %v2655 = vmul.f32 %v2645, 0.70710677
    %v2656 = vmul.f32 %v2650, 0.70710677
    %v2657 = verf.f32.pop %v2655
    %v2658 = verf.f32.pop %v2656
    %v2659 = vadd.f32 %v2657, 1.0
    %v2660 = vadd.f32 %v2658, 1.0
    %v2661 = vmul.f32 %v2653, %v2659
    %v2662 = vmul.f32 %v2654, %v2660
    %s2663 = scalar_lea.vmem %s11, 64
    %v2664 = vld [vmem:[%s2663] sm:$0xff]
    %v2665 = vld [vmem:[%s2663 + $0x8] sm:$0xff]
    %v2666 = vld [vmem:[%s2663 + $0x10] sm:$0xff]
    %v2667 = vld [vmem:[%s2663 + $0x18] sm:$0xff]
    %v2668 = vld [vmem:[%s2663 + $0x20] sm:$0xff]
    %v2669 = vld [vmem:[%s2663 + $0x28] sm:$0xff]
    %v2670 = vld [vmem:[%s2663 + $0x30] sm:$0xff]
    %v2671 = vld [vmem:[%s2663 + $0x38] sm:$0xff]
    %s2672 = scalar_lea.vmem [#allocation7], 1
    %v2673 = vld [vmem:[%s2672] sm:$0x1]
    %v2675 = vlaneseq
    %v2676 = vshrl.u32 %v2675, 7
    %v2677 = vsub.s32 0, %v2676
    %v2678 = vrot.slane %v2673, %v2677
    %v2681 = vsel %vm1393, %v2661, 0
    %v2684 = vsel %vm1393, %v2662, 0
    %2686 = vmatprep.subr.mxu0 0.0
    %2687 = vmatpush1.msra.mxu0 %v2664
    %2688 = vmatprep.subr.mxu0 0.0
    %2689 = vmatpush1.msra.mxu0 %v2665
    %2690 = vmatprep.subr.mxu0 0.0
    %2691 = vmatpush1.msra.mxu0 %v2666
    %2692 = vmatprep.subr.mxu0 0.0
    %2693 = vmatpush1.msra.mxu0 %v2667
    %2694 = vmatprep.subr.mxu0 0.0
    %2695 = vmatpush1.msra.mxu0 %v2668
    %2696 = vmatprep.subr.mxu0 0.0
    %2697 = vmatpush1.msra.mxu0 %v2669
    %2698 = vmatprep.subr.mxu0 0.0
    %2699 = vmatpush1.msra.mxu0 %v2670
    %2700 = vmatprep.subr.mxu0 0.0
    %2701 = vmatpush1.msra.mxu0 %v2671
    %2702 = vmatprep.subr.mxu0 0.0
    %2703 = vmatpush1.msra.mxu0 0.0
    %2704 = vmatprep.subr.mxu0 0.0
    %2705 = vmatpush1.msra.mxu0 0.0
    %2706 = vmatprep.subr.mxu0 0.0
    %2707 = vmatpush1.msra.mxu0 0.0
    %2708 = vmatprep.subr.mxu0 0.0
    %2709 = vmatpush1.msra.mxu0 0.0
    %2710 = vmatprep.subr.mxu0 0.0
    %2711 = vmatpush1.msra.mxu0 0.0
    %2712 = vmatprep.subr.mxu0 0.0
    %2713 = vmatpush1.msra.mxu0 0.0
    %2714 = vmatprep.subr.mxu0 0.0
    %2715 = vmatpush1.msra.mxu0 0.0
    %2716 = vmatprep.subr.mxu0 0.0
    %2717 = vmatpush1.msra.mxu0 0.0
    %2718 = vmatprep.subr.mxu0 0.0
    %2719 = vmatpush1.msra.mxu0 0.0
    %2720 = vmatprep.subr.mxu0 0.0
    %2721 = vmatpush1.msra.mxu0 0.0
    %2722 = vmatprep.subr.mxu0 0.0
    %2723 = vmatpush1.msra.mxu0 0.0
    %2724 = vmatprep.subr.mxu0 0.0
    %2725 = vmatpush1.msra.mxu0 0.0
    %2726 = vmatprep.subr.mxu0 0.0
    %2727 = vmatpush1.msra.mxu0 0.0
    %2728 = vmatprep.subr.mxu0 0.0
    %2729 = vmatpush1.msra.mxu0 0.0
    %2730 = vmatprep.subr.mxu0 0.0
    %2731 = vmatpush1.msra.mxu0 0.0
    %2732 = vmatprep.subr.mxu0 0.0
    %2733 = vmatpush1.msra.mxu0 0.0
    %2734 = vmatprep.subr.mxu0 0.0
    %2735 = vmatpush1.msra.mxu0 0.0
    %2736 = vmatprep.subr.mxu0 0.0
    %2737 = vmatpush1.msra.mxu0 0.0
    %2738 = vmatprep.subr.mxu0 0.0
    %2739 = vmatpush1.msra.mxu0 0.0
    %2740 = vmatprep.subr.mxu0 0.0
    %2741 = vmatpush1.msra.mxu0 0.0
    %2742 = vmatprep.subr.mxu0 0.0
    %2743 = vmatpush1.msra.mxu0 0.0
    %2744 = vmatprep.subr.mxu0 0.0
    %2745 = vmatpush1.msra.mxu0 0.0
    %2746 = vmatprep.subr.mxu0 0.0
    %2747 = vmatpush1.msra.mxu0 0.0
    %2748 = vmatprep.subr.mxu0 0.0
    %2749 = vmatpush1.msra.mxu0 0.0
    %2750 = vmatprep.mubr.f32.mxu0 0.0
    %2751 = vmatmul.mubr.f32.gmra.mrb[0].mxu0 %v2681
    %v2752 = vpop.f32.mrb[0].mxu0
    %v2753 = vadd.f32 %v2678, %v2752
    %v2754 = vpop.f32.mrb[0].mxu0
    %2755 = vmatprep.mubr.f32.mxu0 0.0
    %2756 = vmatmul.mubr.f32.gmra.mrb[0].mxu0 %v2684
    %v2757 = vpop.f32.mrb[0].mxu0
    %v2758 = vadd.f32 %v2678, %v2757
    %v2759 = vpop.f32.mrb[0].mxu0
    %2760 = vdwg.mxu0
    %v2761 = vadd.f32 %v2557, %v2753
    %v2762 = vadd.f32 %v2558, %v2758
    %v2763 = vsel %vm230, %v2761, 0.0
    %2764 = vadd.xlane.f32.xlu0 %v2763
    %v2765 = vpop.xlane.xlu0 %2764
    %v2766 = vsel %vm230, %v2762, 0.0
    %2767 = vadd.xlane.f32.xlu0 %v2766
    %v2768 = vpop.xlane.xlu0 %2767
    %v2769 = vmul.f32 %v2765, %v1255
    %v2770 = vmul.f32 %v2768, %v1255
    %v2771 = vsub.f32 %v2761, %v2769
    %v2772 = vsub.f32 %v2762, %v2770
    %v2773 = vmul.f32 %v2771, %v2771
    %v2774 = vmul.f32 %v2772, %v2772
    %v2775 = vsel %vm230, %v2773, 0.0
    %2776 = vadd.xlane.f32.xlu0 %v2775
    %v2777 = vpop.xlane.xlu0 %2776
    %v2778 = vsel %vm230, %v2774, 0.0
    %2779 = vadd.xlane.f32.xlu0 %v2778
    %v2780 = vpop.xlane.xlu0 %2779
    %v2781 = vmul.f32 %v2777, %v1255
    %v2782 = vmul.f32 %v2780, %v1255
    %v2783 = vadd.f32 %v2781, 1e-05
    %v2784 = vadd.f32 %v2782, 1e-05
    %v2785 = vrsqrt.pop %v2783
    %v2786 = vrsqrt.pop %v2784
    %v2787 = vmul.f32 %v2771, %v2785
    %v2788 = vmul.f32 %v2772, %v2786
    %v2789 = vsel %vm230, %v2787, 0.0
    %2790 = vadd.xlane.f32.xlu0 %v2789
    %v2791 = vpop.xlane.xlu0 %2790
    %v2792 = vsel %vm230, %v2788, 0.0
    %2793 = vadd.xlane.f32.xlu0 %v2792
    %v2794 = vpop.xlane.xlu0 %2793
    %v2795 = vmul.f32 %v2791, %v1255
    %v2796 = vmul.f32 %v2794, %v1255
    %v2797 = vsub.f32 %v2787, %v2795
    %v2798 = vsub.f32 %v2788, %v2796
    %v2799 = vmul.f32 %v2797, %v2797
    %v2800 = vmul.f32 %v2798, %v2798
    %v2801 = vsel %vm230, %v2799, 0.0
    %2802 = vadd.xlane.f32.xlu0 %v2801
    %v2803 = vpop.xlane.xlu0 %2802
    %v2804 = vsel %vm230, %v2800, 0.0
    %2805 = vadd.xlane.f32.xlu0 %v2804
    %v2806 = vpop.xlane.xlu0 %2805
    %v2807 = vmul.f32 %v2803, %v1255
    %v2808 = vmul.f32 %v2806, %v1255
    %v2809 = vadd.f32 %v2807, 1e-05
    %v2810 = vadd.f32 %v2808, 1e-05
    %v2811 = vrsqrt.pop %v2809
    %v2812 = vrsqrt.pop %v2810
    %v2813 = vmul.f32 %v2797, %v2811
    %v2814 = vmul.f32 %v2798, %v2812
    %v2815 = vld [vmem:[%s13] sm:$0xff]
    %v2816 = vld [vmem:[%s13 + $0x8] sm:$0xff]
    %v2817 = vld [vmem:[%s13 + $0x10] sm:$0xff]
    %v2818 = vld [vmem:[%s13 + $0x18] sm:$0xff]
    %v2819 = vld [vmem:[%s14] sm:$0x1]
    %v2821 = vlaneseq
    %v2822 = vshrl.u32 %v2821, 7
    %v2823 = vsub.s32 0, %v2822
    %v2824 = vrot.slane %v2819, %v2823
    %v2827 = vsel %vm230, %v2813, 0
    %v2830 = vsel %vm230, %v2814, 0
    %2832 = vmatprep.subr.mxu0 0.0
    %2833 = vmatpush1.msra.mxu0 %v2815
    %2834 = vmatprep.subr.mxu0 0.0
    %2835 = vmatpush1.msra.mxu0 %v2816
    %2836 = vmatprep.subr.mxu0 0.0
    %2837 = vmatpush1.msra.mxu0 %v2817
    %2838 = vmatprep.subr.mxu0 0.0
    %2839 = vmatpush1.msra.mxu0 %v2818
    %2840 = vmatprep.subr.mxu0 0.0
    %2841 = vmatpush1.msra.mxu0 0.0
    %2842 = vmatprep.subr.mxu0 0.0
    %2843 = vmatpush1.msra.mxu0 0.0
    %2844 = vmatprep.subr.mxu0 0.0
    %2845 = vmatpush1.msra.mxu0 0.0
    %2846 = vmatprep.subr.mxu0 0.0
    %2847 = vmatpush1.msra.mxu0 0.0
    %2848 = vmatprep.subr.mxu0 0.0
    %2849 = vmatpush1.msra.mxu0 0.0
    %2850 = vmatprep.subr.mxu0 0.0
    %2851 = vmatpush1.msra.mxu0 0.0
    %2852 = vmatprep.subr.mxu0 0.0
    %2853 = vmatpush1.msra.mxu0 0.0
    %2854 = vmatprep.subr.mxu0 0.0
    %2855 = vmatpush1.msra.mxu0 0.0
    %2856 = vmatprep.subr.mxu0 0.0
    %2857 = vmatpush1.msra.mxu0 0.0
    %2858 = vmatprep.subr.mxu0 0.0
    %2859 = vmatpush1.msra.mxu0 0.0
    %2860 = vmatprep.subr.mxu0 0.0
    %2861 = vmatpush1.msra.mxu0 0.0
    %2862 = vmatprep.subr.mxu0 0.0
    %2863 = vmatpush1.msra.mxu0 0.0
    %2864 = vmatprep.subr.mxu0 0.0
    %2865 = vmatpush1.msra.mxu0 0.0
    %2866 = vmatprep.subr.mxu0 0.0
    %2867 = vmatpush1.msra.mxu0 0.0
    %2868 = vmatprep.subr.mxu0 0.0
    %2869 = vmatpush1.msra.mxu0 0.0
    %2870 = vmatprep.subr.mxu0 0.0
    %2871 = vmatpush1.msra.mxu0 0.0
    %2872 = vmatprep.subr.mxu0 0.0
    %2873 = vmatpush1.msra.mxu0 0.0
    %2874 = vmatprep.subr.mxu0 0.0
    %2875 = vmatpush1.msra.mxu0 0.0
    %2876 = vmatprep.subr.mxu0 0.0
    %2877 = vmatpush1.msra.mxu0 0.0
    %2878 = vmatprep.subr.mxu0 0.0
    %2879 = vmatpush1.msra.mxu0 0.0
    %2880 = vmatprep.subr.mxu0 0.0
    %2881 = vmatpush1.msra.mxu0 0.0
    %2882 = vmatprep.subr.mxu0 0.0
    %2883 = vmatpush1.msra.mxu0 0.0
    %2884 = vmatprep.subr.mxu0 0.0
    %2885 = vmatpush1.msra.mxu0 0.0
    %2886 = vmatprep.subr.mxu0 0.0
    %2887 = vmatpush1.msra.mxu0 0.0
    %2888 = vmatprep.subr.mxu0 0.0
    %2889 = vmatpush1.msra.mxu0 0.0
    %2890 = vmatprep.subr.mxu0 0.0
    %2891 = vmatpush1.msra.mxu0 0.0
    %2892 = vmatprep.subr.mxu0 0.0
    %2893 = vmatpush1.msra.mxu0 0.0
    %2894 = vmatprep.subr.mxu0 0.0
    %2895 = vmatpush1.msra.mxu0 0.0
    %2896 = vmatprep.mubr.f32.mxu0 0.0
    %2897 = vmatmul.mubr.f32.gmra.mrb[0].mxu0 %v2827
    %v2898 = vpop.f32.mrb[0].mxu0
    %v2899 = vadd.f32 %v2824, %v2898
    %v2900 = vpop.f32.mrb[0].mxu0
    %2901 = vmatprep.mubr.f32.mxu0 0.0
    %2902 = vmatmul.mubr.f32.gmra.mrb[0].mxu0 %v2830
    %v2903 = vpop.f32.mrb[0].mxu0
    %v2904 = vadd.f32 %v2824, %v2903
    %v2905 = vpop.f32.mrb[0].mxu0
    %2906 = vdwg.mxu0
    %v2907 = vmul.f32 %v2899, 0.5
    %v2908 = vmul.f32 %v2904, 0.5
    %v2909 = vmul.f32 %v2899, 0.70710677
    %v2910 = vmul.f32 %v2904, 0.70710677
    %v2911 = verf.f32.pop %v2909
    %v2912 = verf.f32.pop %v2910
    %v2913 = vadd.f32 %v2911, 1.0
    %v2914 = vadd.f32 %v2912, 1.0
    %v2915 = vmul.f32 %v2907, %v2913
    %v2916 = vmul.f32 %v2908, %v2914
    %v2917 = vld [vmem:[%s15] sm:$0xff]
    %v2918 = vld [vmem:[%s15 + $0x8] sm:$0xff]
    %v2919 = vld [vmem:[%s15 + $0x10] sm:$0xff]
    %v2920 = vld [vmem:[%s15 + $0x18] sm:$0xff]
    %v2921 = vld [vmem:[%s16] sm:$0x1]
    %v2923 = vlaneseq
    %v2924 = vshrl.u32 %v2923, 7
    %v2925 = vsub.s32 0, %v2924
    %v2926 = vrot.slane %v2921, %v2925
    %v2929 = vsel %vm230, %v2915, 0
    %v2932 = vsel %vm230, %v2916, 0
    %2934 = vmatprep.subr.mxu0 0.0
    %2935 = vmatpush1.msra.mxu0 %v2917
    %2936 = vmatprep.subr.mxu0 0.0
    %2937 = vmatpush1.msra.mxu0 %v2918
    %2938 = vmatprep.subr.mxu0 0.0
    %2939 = vmatpush1.msra.mxu0 %v2919
    %2940 = vmatprep.subr.mxu0 0.0
    %2941 = vmatpush1.msra.mxu0 %v2920
    %2942 = vmatprep.subr.mxu0 0.0
    %2943 = vmatpush1.msra.mxu0 0.0
    %2944 = vmatprep.subr.mxu0 0.0
    %2945 = vmatpush1.msra.mxu0 0.0
    %2946 = vmatprep.subr.mxu0 0.0
    %2947 = vmatpush1.msra.mxu0 0.0
    %2948 = vmatprep.subr.mxu0 0.0
    %2949 = vmatpush1.msra.mxu0 0.0
    %2950 = vmatprep.subr.mxu0 0.0
    %2951 = vmatpush1.msra.mxu0 0.0
    %2952 = vmatprep.subr.mxu0 0.0
    %2953 = vmatpush1.msra.mxu0 0.0
    %2954 = vmatprep.subr.mxu0 0.0
    %2955 = vmatpush1.msra.mxu0 0.0
    %2956 = vmatprep.subr.mxu0 0.0
    %2957 = vmatpush1.msra.mxu0 0.0
    %2958 = vmatprep.subr.mxu0 0.0
    %2959 = vmatpush1.msra.mxu0 0.0
    %2960 = vmatprep.subr.mxu0 0.0
    %2961 = vmatpush1.msra.mxu0 0.0
    %2962 = vmatprep.subr.mxu0 0.0
    %2963 = vmatpush1.msra.mxu0 0.0
    %2964 = vmatprep.subr.mxu0 0.0
    %2965 = vmatpush1.msra.mxu0 0.0
    %2966 = vmatprep.subr.mxu0 0.0
    %2967 = vmatpush1.msra.mxu0 0.0
    %2968 = vmatprep.subr.mxu0 0.0
    %2969 = vmatpush1.msra.mxu0 0.0
    %2970 = vmatprep.subr.mxu0 0.0
    %2971 = vmatpush1.msra.mxu0 0.0
    %2972 = vmatprep.subr.mxu0 0.0
    %2973 = vmatpush1.msra.mxu0 0.0
    %2974 = vmatprep.subr.mxu0 0.0
    %2975 = vmatpush1.msra.mxu0 0.0
    %2976 = vmatprep.subr.mxu0 0.0
    %2977 = vmatpush1.msra.mxu0 0.0
    %2978 = vmatprep.subr.mxu0 0.0
    %2979 = vmatpush1.msra.mxu0 0.0
    %2980 = vmatprep.subr.mxu0 0.0
    %2981 = vmatpush1.msra.mxu0 0.0
    %2982 = vmatprep.subr.mxu0 0.0
    %2983 = vmatpush1.msra.mxu0 0.0
    %2984 = vmatprep.subr.mxu0 0.0
    %2985 = vmatpush1.msra.mxu0 0.0
    %2986 = vmatprep.subr.mxu0 0.0
    %2987 = vmatpush1.msra.mxu0 0.0
    %2988 = vmatprep.subr.mxu0 0.0
    %2989 = vmatpush1.msra.mxu0 0.0
    %2990 = vmatprep.subr.mxu0 0.0
    %2991 = vmatpush1.msra.mxu0 0.0
    %2992 = vmatprep.subr.mxu0 0.0
    %2993 = vmatpush1.msra.mxu0 0.0
    %2994 = vmatprep.subr.mxu0 0.0
    %2995 = vmatpush1.msra.mxu0 0.0
    %2996 = vmatprep.subr.mxu0 0.0
    %2997 = vmatpush1.msra.mxu0 0.0
    %2998 = vmatprep.mubr.f32.mxu0 0.0
    %2999 = vmatmul.mubr.f32.gmra.mrb[0].mxu0 %v2929
    %v3000 = vpop.f32.mrb[0].mxu0
    %v3001 = vadd.f32 %v2926, %v3000
    %v3002 = vpop.f32.mrb[0].mxu0
    %3003 = vmatprep.mubr.f32.mxu0 0.0
    %3004 = vmatmul.mubr.f32.gmra.mrb[0].mxu0 %v2932
    %v3005 = vpop.f32.mrb[0].mxu0
    %v3006 = vadd.f32 %v2926, %v3005
    %v3007 = vpop.f32.mrb[0].mxu0
    %3008 = vdwg.mxu0
    %3009 = vst [vmem:[%s17] sm:$0xff] %v3001
    %3010 = vst [vmem:[%s17 + $0x8] sm:$0xff] %v3006
    // Predicated region
    $region86: #{music_transformer_forward.1} parent=1 // pred_check
      _
    $region87: #{music_transformer_forward.1} parent=1 // pred_check_branch
      %3012 = sbr.rel (0) target = $region89
    $region88: #{music_transformer_forward.1} parent=1 // pred_region
      _
    $region89: #{music_transformer_forward.1} parent=1 // pred_fallthru
      _
    // Predicated region
    $region90: #{music_transformer_forward.1} parent=1 // pred_check
      _
    $region91: #{music_transformer_forward.1} parent=1 // pred_check_branch
      %3014 = sbr.rel (0) target = $region93
    $region92: #{music_transformer_forward.1} parent=1 // pred_region
      _
    $region93: #{music_transformer_forward.1} parent=1 // pred_fallthru
      _
    %3015 = vsyncpa [#allocation3], 1
    %3016 = vsyncpa [#allocation5], 1
    %3017 = vsyncpa [#allocation8], 1

</llo_original>
